<compile_context>
chip_gen: v7x
topology: tpu7x:2x2x1
jax: 0.10.0
libtpu: 0.0.40
codegen_flags: <defaults>
</compile_context>

<pallas_src>
import math

import jax
import jax.numpy as jnp
from jax.experimental import pallas as pl
from jax.experimental.pallas import tpu as pltpu

# ---------------- model dims (small, synthetic stand-in for the wrapped CLIP) ----------------
BATCH = 2
IMG_C, IMG_HW, PATCH = 3, 16, 8
N_PATCH = (IMG_HW // PATCH) ** 2          # 4
PATCH_DIM = IMG_C * PATCH * PATCH         # 192
HIDDEN = 32
N_HEADS = 2
HEAD_DIM = HIDDEN // N_HEADS              # 16
MLP_DIM = 64
VIS_LEN = N_PATCH + 1                     # CLS + patches = 5
SEQ = 8                                   # padded seq len (vision 5->8; text = 8)
TXT_LEN = 8
VOCAB = 64
TYPE_VOCAB = 2
PROJ_DIM = 32
LORA_R = 8
LORA_ALPHA = 8
LORA_SCALE = LORA_ALPHA / LORA_R          # 1.0
LN_EPS = 1e-5
SM_SCALE = 1.0 / math.sqrt(HEAD_DIM)


def _vmem_specs(n):
    return [pl.BlockSpec(memory_space=pltpu.MemorySpace.VMEM) for _ in range(n)]


def _out_spec():
    return pl.BlockSpec(memory_space=pltpu.MemorySpace.VMEM)


# ---------------- in-kernel helpers (traced into the fused kernels) ----------------
def _dot(a, b):
    return jnp.dot(a, b, preferred_element_type=jnp.float32)


def _dot_t(a, b):
    # a @ b.T without an explicit transpose (contract last dims on the MXU).
    return jax.lax.dot_general(a, b, (((1,), (1,)), ((), ())),
                               preferred_element_type=jnp.float32)


def _ln(x, g, b):
    mu = jnp.mean(x, axis=-1, keepdims=True)
    var = jnp.mean(jnp.square(x - mu), axis=-1, keepdims=True)
    return (x - mu) * jax.lax.rsqrt(var + LN_EPS) * g + b


def _pool_cls(x):
    # Select the CLS row of each sequence (rows b*SEQ) with a tiny selection
    # matmul (avoids in-kernel row gather).
    rows = jax.lax.broadcasted_iota(jnp.int32, (BATCH, BATCH * SEQ), 1)
    want = jax.lax.broadcasted_iota(jnp.int32, (BATCH, BATCH * SEQ), 0) * SEQ
    sel = (rows == want).astype(jnp.float32)
    return _dot(sel, x)                                   # [BATCH, HIDDEN]


def _transformer_block(x, masks, wqkv, bqkv, wo, bo,
                       ln1_g, ln1_b, w1, b1, w2, b2, ln2_g, ln2_b):
    """Post-LN transformer block on a [BATCH*SEQ, HIDDEN] activation.

    masks: list of BATCH additive key masks, each [1, SEQ].
    Heads handled with static in-kernel slices (no transposes, no HBM traffic).
    """
    qkv = _dot(x, wqkv) + bqkv                            # fused QKV: [B*S, 3H]
    q = qkv[:, 0:HIDDEN]
    k = qkv[:, HIDDEN:2 * HIDDEN]
    v = qkv[:, 2 * HIDDEN:3 * HIDDEN]

    ctx_rows = []
    for b in range(BATCH):                                # static loops: B=2, H=2
        r0 = b * SEQ
        heads = []
        for h in range(N_HEADS):
            c0 = h * HEAD_DIM
            qb = q[r0:r0 + SEQ, c0:c0 + HEAD_DIM]
            kb = k[r0:r0 + SEQ, c0:c0 + HEAD_DIM]
            vb = v[r0:r0 + SEQ, c0:c0 + HEAD_DIM]
            s = _dot_t(qb, kb) * SM_SCALE + masks[b]      # [S, S]
            s = s - jnp.max(s, axis=-1, keepdims=True)
            p = jnp.exp(s)
            p = p * pl.reciprocal(jnp.sum(p, axis=-1, keepdims=True), approx=True)
            heads.append(_dot(p, vb))                     # [S, Dh]
        ctx_rows.append(jnp.concatenate(heads, axis=-1))  # [S, H]
    ctx = jnp.concatenate(ctx_rows, axis=0)               # [B*S, H]

    ctx = _dot(ctx, wo) + bo
    h1 = _ln(x + ctx, ln1_g, ln1_b)                       # post-LN (BERT-style)
    ff = jax.nn.gelu(_dot(h1, w1) + b1, approximate=True)
    ff = _dot(ff, w2) + b2
    return _ln(h1 + ff, ln2_g, ln2_b)


# ---------------- fused tower kernels ----------------
def _vision_tower_kernel(
    patches_ref, patch_w_ref, row_add_ref,
    wqkv_ref, bqkv_ref, wo_ref, bo_ref,
    ln1_g_ref, ln1_b_ref, w1_ref, b1_ref, w2_ref, b2_ref, ln2_g_ref, ln2_b_ref,
    post_g_ref, post_b_ref, proj_w_ref, proj_b_ref,
    out_ref,
):
    # Patch embedding (== ViT patchify conv): zero rows at CLS/pad positions stay
    # zero through the matmul; row_add carries CLS token, patch bias and pos emb.
    x = _dot(patches_ref[...], patch_w_ref[...]) + row_add_ref[...]     # [B*S, H]

    # Mask padded key positions (queries on pad rows are never read downstream).
    kpos = jax.lax.broadcasted_iota(jnp.int32, (1, SEQ), 1)
    key_mask = jnp.where(kpos < VIS_LEN, 0.0, -1e9)
    masks = [key_mask] * BATCH

    x = _transformer_block(
        x, masks, wqkv_ref[...], bqkv_ref[...], wo_ref[...], bo_ref[...],
        ln1_g_ref[...], ln1_b_ref[...], w1_ref[...], b1_ref[...],
        w2_ref[...], b2_ref[...], ln2_g_ref[...], ln2_b_ref[...])

    pooled = _ln(_pool_cls(x), post_g_ref[...], post_b_ref[...])
    out_ref[...] = (_dot(pooled, proj_w_ref[...]) + proj_b_ref[...]).astype(out_ref.dtype)


def _text_tower_kernel(
    ids_ref, type_ids_ref, attn_mask_ref,
    tok_emb_ref, type_emb_ref, pos_ref, emb_ln_g_ref, emb_ln_b_ref,
    wqkv_ref, bqkv_ref, wo_ref, bo_ref,
    ln1_g_ref, ln1_b_ref, w1_ref, b1_ref, w2_ref, b2_ref, ln2_g_ref, ln2_b_ref,
    proj_w_ref, proj_b_ref,
    out_ref,
):
    # Token embedding gather as a one-hot matmul (in-kernel, MXU).
    ids = ids_ref[...]                                                  # [B*S, 1] int32
    tok_oh = (jax.lax.broadcasted_iota(jnp.int32, (BATCH * SEQ, VOCAB), 1)
              == ids).astype(jnp.float32)
    tok = _dot(tok_oh, tok_emb_ref[...])                                # [B*S, H]

    # Token-type embedding: 2-way select (TYPE_VOCAB == 2).
    te = type_emb_ref[...]
    tids = type_ids_ref[...]                                            # [B*S, 1] int32
    typ = jnp.where(tids == 0, te[0:1, :], te[1:2, :])

    x = _ln(tok + typ + pos_ref[...], emb_ln_g_ref[...], emb_ln_b_ref[...])

    am = attn_mask_ref[...]                                             # [B, S] float
    masks = [(1.0 - am[b:b + 1, :]) * (-1e9) for b in range(BATCH)]

    x = _transformer_block(
        x, masks, wqkv_ref[...], bqkv_ref[...], wo_ref[...], bo_ref[...],
        ln1_g_ref[...], ln1_b_ref[...], w1_ref[...], b1_ref[...],
        w2_ref[...], b2_ref[...], ln2_g_ref[...], ln2_b_ref[...])

    pooled = _pool_cls(x)                                               # CLS pooling
    out_ref[...] = (_dot(pooled, proj_w_ref[...]) + proj_b_ref[...]).astype(out_ref.dtype)


def _clip_loss_kernel(scale_ref, img_ref, txt_ref, loss_ref):
    img = img_ref[...].astype(jnp.float32)
    txt = txt_ref[...].astype(jnp.float32)
    img = img * jax.lax.rsqrt(jnp.sum(img * img, axis=-1, keepdims=True) + 1e-12)
    txt = txt * jax.lax.rsqrt(jnp.sum(txt * txt, axis=-1, keepdims=True) + 1e-12)
    ls = scale_ref[0]                                     # exp(logit_scale), SMEM scalar
    logits_i = ls * _dot_t(img, txt)                      # [B, B]
    logits_t = ls * _dot_t(txt, img)
    b = logits_i.shape[0]
    eye = jnp.eye(b, dtype=jnp.float32)

    def ce_rows(lg):
        lg = lg - jnp.max(lg, axis=-1, keepdims=True)
        lse = jnp.log(jnp.sum(jnp.exp(lg), axis=-1, keepdims=True))
        return -jnp.sum(eye * (lg - lse), axis=-1, keepdims=True)       # [b, 1]

    per = 0.5 * (ce_rows(logits_i) + ce_rows(logits_t))
    loss_ref[...] = jnp.sum(per, axis=0, keepdims=True) * (1.0 / b)


# ---------------- wrappers (layout / parameter prep only) ----------------
def _merged_qkv(blk):
    # PEFT LoRA (r=8, alpha=8) on query/value. Eval-mode forward, so the adapter
    # merges exactly into the base weight: W_eff = W + scale * A @ B.
    # TODO(synk): lora_dropout=0.1 is train-time only (identity here); do not
    # merge the adapter if this path is ever differentiated for training.
    wq = blk["wq"] + LORA_SCALE * (blk["q_lora_a"] @ blk["q_lora_b"])
    wv = blk["wv"] + LORA_SCALE * (blk["v_lora_a"] @ blk["v_lora_b"])
    w_qkv = jnp.concatenate([wq, blk["wk"], wv], axis=1)                # [H, 3H]
    b_qkv = jnp.concatenate([blk["bq"], blk["bk"], blk["bv"]]).reshape(1, -1)
    return w_qkv, b_qkv


def _block_args(blk):
    w_qkv, b_qkv = _merged_qkv(blk)
    return (
        w_qkv, b_qkv,
        blk["wo"], blk["bo"].reshape(1, -1),
        blk["ln1_g"].reshape(1, -1), blk["ln1_b"].reshape(1, -1),
        blk["w1"], blk["b1"].reshape(1, -1),
        blk["w2"], blk["b2"].reshape(1, -1),
        blk["ln2_g"].reshape(1, -1), blk["ln2_b"].reshape(1, -1),
    )


def vision_tower(params, imgs):
    b, c, hh, ww = imgs.shape
    gh, gw = hh // PATCH, ww // PATCH
    # NCHW -> [B, num_patches, C*P*P], then pad to SEQ rows per batch
    # (row 0 = CLS slot, rows 1..4 = patches, rows 5..7 = pad) -> [B*SEQ, 192].
    patches = imgs.reshape(b, c, gh, PATCH, gw, PATCH).transpose(0, 2, 4, 1, 3, 5)
    patches = patches.reshape(b, N_PATCH, PATCH_DIM)
    patches = jnp.pad(patches, ((0, 0), (1, SEQ - 1 - N_PATCH), (0, 0)))
    patches = patches.reshape(b * SEQ, PATCH_DIM)

    # Per-row additive term: CLS token at row 0, patch-proj bias on patch rows,
    # positional embedding on all real rows, zeros on pad rows.
    pos_pad = jnp.pad(params["vis_pos"], ((0, SEQ - VIS_LEN), (0, 0)))
    rid = jnp.arange(SEQ)[:, None]
    row_add = (pos_pad
               + jnp.where((rid >= 1) & (rid < VIS_LEN), params["patch_b"][None, :], 0.0)
               + jnp.where(rid == 0, params["cls"], 0.0))               # [SEQ, H]
    row_add = jnp.tile(row_add, (b, 1))                                 # [B*SEQ, H]

    args = (
        patches, params["patch_w"], row_add,
        *_block_args(params["vis_block"]),
        params["vis_ln_g"].reshape(1, -1), params["vis_ln_b"].reshape(1, -1),
        params["vis_proj_w"], params["vis_proj_b"].reshape(1, -1),
    )
    return pl.pallas_call(
        _vision_tower_kernel,
        out_shape=jax.ShapeDtypeStruct((BATCH, PROJ_DIM), jnp.float32),
        in_specs=_vmem_specs(len(args)),
        out_specs=_out_spec(),
    )(*args)


def text_tower(params, input_ids, attention_mask, token_type_ids):
    b, l = input_ids.shape
    pos = jnp.tile(params["txt_pos"], (b, 1))                           # [B*L, H]
    args = (
        input_ids.astype(jnp.int32).reshape(b * l, 1),
        token_type_ids.astype(jnp.int32).reshape(b * l, 1),
        attention_mask.astype(jnp.float32),
        params["tok_emb"], params["type_emb"], pos,
        params["emb_ln_g"].reshape(1, -1), params["emb_ln_b"].reshape(1, -1),
        *_block_args(params["txt_block"]),
        params["txt_proj_w"], params["txt_proj_b"].reshape(1, -1),
    )
    return pl.pallas_call(
        _text_tower_kernel,
        out_shape=jax.ShapeDtypeStruct((BATCH, PROJ_DIM), jnp.float32),
        in_specs=_vmem_specs(len(args)),
        out_specs=_out_spec(),
    )(*args)


def clip_loss(img_embeds, txt_embeds, logit_scale):
    scale = jnp.exp(logit_scale).reshape(1)              # exp folded; SMEM scalar
    out = pl.pallas_call(
        _clip_loss_kernel,
        out_shape=jax.ShapeDtypeStruct((1, 1), jnp.float32),
        in_specs=[pl.BlockSpec(memory_space=pltpu.MemorySpace.SMEM),
                  pl.BlockSpec(memory_space=pltpu.MemorySpace.VMEM),
                  pl.BlockSpec(memory_space=pltpu.MemorySpace.VMEM)],
        out_specs=_out_spec(),
    )(scale, img_embeds, txt_embeds)
    return out[0, 0]


def retina_clip_forward(params, imgs, input_ids, attention_mask, token_type_ids):
    # token_type_ids stands in for the module's 4th forward arg (`coocurrence`).
    img_embeds = vision_tower(params, imgs)
    text_embeds = text_tower(params, input_ids, attention_mask, token_type_ids)
    loss = clip_loss(img_embeds, text_embeds, params["logit_scale"])
    return loss, img_embeds, text_embeds


# ---------------- deterministic parameter init ----------------
def _block_params(key):
    ks = jax.random.split(key, 8)
    std = 0.02

    def nrm(k, shape):
        return std * jax.random.normal(k, shape, jnp.float32)

    return {
        "wq": nrm(ks[0], (HIDDEN, HIDDEN)), "bq": jnp.zeros((HIDDEN,), jnp.float32),
        "wk": nrm(ks[1], (HIDDEN, HIDDEN)), "bk": jnp.zeros((HIDDEN,), jnp.float32),
        "wv": nrm(ks[2], (HIDDEN, HIDDEN)), "bv": jnp.zeros((HIDDEN,), jnp.float32),
        "wo": nrm(ks[3], (HIDDEN, HIDDEN)), "bo": jnp.zeros((HIDDEN,), jnp.float32),
        # PEFT LoRA init: A random, B zero (adapter starts as identity delta).
        "q_lora_a": nrm(ks[4], (HIDDEN, LORA_R)),
        "q_lora_b": jnp.zeros((LORA_R, HIDDEN), jnp.float32),
        "v_lora_a": nrm(ks[5], (HIDDEN, LORA_R)),
        "v_lora_b": jnp.zeros((LORA_R, HIDDEN), jnp.float32),
        "w1": nrm(ks[6], (HIDDEN, MLP_DIM)), "b1": jnp.zeros((MLP_DIM,), jnp.float32),
        "w2": nrm(ks[7], (MLP_DIM, HIDDEN)), "b2": jnp.zeros((HIDDEN,), jnp.float32),
        "ln1_g": jnp.ones((HIDDEN,), jnp.float32), "ln1_b": jnp.zeros((HIDDEN,), jnp.float32),
        "ln2_g": jnp.ones((HIDDEN,), jnp.float32), "ln2_b": jnp.zeros((HIDDEN,), jnp.float32),
    }


def init_params(key):
    ks = jax.random.split(key, 12)
    std = 0.02

    def nrm(k, shape):
        return std * jax.random.normal(k, shape, jnp.float32)

    return {
        "patch_w": nrm(ks[0], (PATCH_DIM, HIDDEN)),
        "patch_b": jnp.zeros((HIDDEN,), jnp.float32),
        "cls": nrm(ks[1], (1, HIDDEN)),
        "vis_pos": nrm(ks[2], (VIS_LEN, HIDDEN)),
        "vis_block": _block_params(ks[3]),
        "vis_ln_g": jnp.ones((HIDDEN,), jnp.float32),
        "vis_ln_b": jnp.zeros((HIDDEN,), jnp.float32),
        "vis_proj_w": nrm(ks[4], (HIDDEN, PROJ_DIM)),
        "vis_proj_b": jnp.zeros((PROJ_DIM,), jnp.float32),
        "tok_emb": nrm(ks[5], (VOCAB, HIDDEN)),
        "txt_pos": nrm(ks[6], (TXT_LEN, HIDDEN)),
        "type_emb": nrm(ks[7], (TYPE_VOCAB, HIDDEN)),
        "emb_ln_g": jnp.ones((HIDDEN,), jnp.float32),
        "emb_ln_b": jnp.zeros((HIDDEN,), jnp.float32),
        "txt_block": _block_params(ks[8]),
        "txt_proj_w": nrm(ks[9], (HIDDEN, PROJ_DIM)),
        "txt_proj_b": jnp.zeros((PROJ_DIM,), jnp.float32),
        "logit_scale": jnp.array(math.log(1.0 / 0.07), jnp.float32),
    }


if __name__ == "__main__":
    key = jax.random.PRNGKey(0)
    k_img, k_ids = jax.random.split(key, 2)
    imgs = jax.random.normal(k_img, (BATCH, IMG_C, IMG_HW, IMG_HW), jnp.float32)
    input_ids = jax.random.randint(k_ids, (BATCH, TXT_LEN), 0, VOCAB, dtype=jnp.int32)
    attention_mask = jnp.array(
        [[1, 1, 1, 1, 1, 1, 0, 0], [1, 1, 1, 1, 1, 1, 1, 1]], jnp.int32
    )
    token_type_ids = jnp.zeros((BATCH, TXT_LEN), jnp.int32)

    params = init_params(jax.random.PRNGKey(42))
    fwd = jax.jit(retina_clip_forward)
    loss, img_embeds, text_embeds = fwd(
        params, imgs, input_ids, attention_mask, token_type_ids
    )
    jax.block_until_ready((loss, img_embeds, text_embeds))
    assert img_embeds.shape == (BATCH, PROJ_DIM)
    assert text_embeds.shape == (BATCH, PROJ_DIM)
    assert loss.shape == ()
    print("KERNEL_OK")
</pallas_src>

<mosaic_0001>
module attributes {stable_mosaic.version = 11 : i64} {
  func.func @_vision_tower_kernel(%arg0: memref<16x192xf32, #tpu.memory_space<vmem>>, %arg1: memref<192x32xf32, #tpu.memory_space<vmem>>, %arg2: memref<16x32xf32, #tpu.memory_space<vmem>>, %arg3: memref<32x96xf32, #tpu.memory_space<vmem>>, %arg4: memref<1x96xf32, #tpu.memory_space<vmem>>, %arg5: memref<32x32xf32, #tpu.memory_space<vmem>>, %arg6: memref<1x32xf32, #tpu.memory_space<vmem>>, %arg7: memref<1x32xf32, #tpu.memory_space<vmem>>, %arg8: memref<1x32xf32, #tpu.memory_space<vmem>>, %arg9: memref<32x64xf32, #tpu.memory_space<vmem>>, %arg10: memref<1x64xf32, #tpu.memory_space<vmem>>, %arg11: memref<64x32xf32, #tpu.memory_space<vmem>>, %arg12: memref<1x32xf32, #tpu.memory_space<vmem>>, %arg13: memref<1x32xf32, #tpu.memory_space<vmem>>, %arg14: memref<1x32xf32, #tpu.memory_space<vmem>>, %arg15: memref<1x32xf32, #tpu.memory_space<vmem>>, %arg16: memref<1x32xf32, #tpu.memory_space<vmem>>, %arg17: memref<32x32xf32, #tpu.memory_space<vmem>>, %arg18: memref<1x32xf32, #tpu.memory_space<vmem>>, %arg19: memref<2x32xf32, #tpu.memory_space<vmem>>) attributes {dimension_semantics = [], scalar_prefetch = 0 : i64, scratch_operands = 0 : i64, tpu.core_type = #tpu.core_type<tc>} {
    %c0 = arith.constant 0 : index
    %c0_0 = arith.constant 0 : index
    %0 = vector.load %arg0[%c0, %c0_0] : memref<16x192xf32, #tpu.memory_space<vmem>>, vector<16x192xf32>
    %c0_1 = arith.constant 0 : index
    %c0_2 = arith.constant 0 : index
    %1 = vector.load %arg1[%c0_1, %c0_2] : memref<192x32xf32, #tpu.memory_space<vmem>>, vector<192x32xf32>
    %cst = arith.constant dense<0.000000e+00> : vector<16x32xf32>
    %2 = tpu.matmul %0, %1, %cst {dimension_numbers = #tpu.dot_dimension_numbers<[1], [0], [0], [1], [0, 0, 1, 1], [], []>} : vector<16x192xf32>, vector<192x32xf32>, vector<16x32xf32> -> vector<16x32xf32>
    %c0_3 = arith.constant 0 : index
    %c0_4 = arith.constant 0 : index
    %3 = vector.load %arg2[%c0_3, %c0_4] : memref<16x32xf32, #tpu.memory_space<vmem>>, vector<16x32xf32>
    %4 = arith.addf %2, %3 : vector<16x32xf32>
    %5 = tpu.iota {dimensions = array<i32: 1>} : vector<1x8xi32>
    %c5_i32 = arith.constant 5 : i32
    %6 = vector.broadcast %c5_i32 : i32 to vector<1x8xi32>
    %7 = arith.cmpi slt, %5, %6 : vector<1x8xi32>
    %cst_5 = arith.constant 0.000000e+00 : f32
    %cst_6 = arith.constant -1.000000e+09 : f32
    %8 = vector.broadcast %cst_5 : f32 to vector<1x8xf32>
    %9 = vector.broadcast %cst_6 : f32 to vector<1x8xf32>
    %10 = arith.select %7, %8, %9 : vector<1x8xi1>, vector<1x8xf32>
    %c0_7 = arith.constant 0 : index
    %c0_8 = arith.constant 0 : index
    %11 = vector.load %arg3[%c0_7, %c0_8] : memref<32x96xf32, #tpu.memory_space<vmem>>, vector<32x96xf32>
    %c0_9 = arith.constant 0 : index
    %c0_10 = arith.constant 0 : index
    %12 = vector.load %arg4[%c0_9, %c0_10] : memref<1x96xf32, #tpu.memory_space<vmem>>, vector<1x96xf32>
    %c0_11 = arith.constant 0 : index
    %c0_12 = arith.constant 0 : index
    %13 = vector.load %arg5[%c0_11, %c0_12] : memref<32x32xf32, #tpu.memory_space<vmem>>, vector<32x32xf32>
    %c0_13 = arith.constant 0 : index
    %c0_14 = arith.constant 0 : index
    %14 = vector.load %arg6[%c0_13, %c0_14] : memref<1x32xf32, #tpu.memory_space<vmem>>, vector<1x32xf32>
    %c0_15 = arith.constant 0 : index
    %c0_16 = arith.constant 0 : index
    %15 = vector.load %arg7[%c0_15, %c0_16] : memref<1x32xf32, #tpu.memory_space<vmem>>, vector<1x32xf32>
    %c0_17 = arith.constant 0 : index
    %c0_18 = arith.constant 0 : index
    %16 = vector.load %arg8[%c0_17, %c0_18] : memref<1x32xf32, #tpu.memory_space<vmem>>, vector<1x32xf32>
    %c0_19 = arith.constant 0 : index
    %c0_20 = arith.constant 0 : index
    %17 = vector.load %arg9[%c0_19, %c0_20] : memref<32x64xf32, #tpu.memory_space<vmem>>, vector<32x64xf32>
    %c0_21 = arith.constant 0 : index
    %c0_22 = arith.constant 0 : index
    %18 = vector.load %arg10[%c0_21, %c0_22] : memref<1x64xf32, #tpu.memory_space<vmem>>, vector<1x64xf32>
    %c0_23 = arith.constant 0 : index
    %c0_24 = arith.constant 0 : index
    %19 = vector.load %arg11[%c0_23, %c0_24] : memref<64x32xf32, #tpu.memory_space<vmem>>, vector<64x32xf32>
    %c0_25 = arith.constant 0 : index
    %c0_26 = arith.constant 0 : index
    %20 = vector.load %arg12[%c0_25, %c0_26] : memref<1x32xf32, #tpu.memory_space<vmem>>, vector<1x32xf32>
    %c0_27 = arith.constant 0 : index
    %c0_28 = arith.constant 0 : index
    %21 = vector.load %arg13[%c0_27, %c0_28] : memref<1x32xf32, #tpu.memory_space<vmem>>, vector<1x32xf32>
    %c0_29 = arith.constant 0 : index
    %c0_30 = arith.constant 0 : index
    %22 = vector.load %arg14[%c0_29, %c0_30] : memref<1x32xf32, #tpu.memory_space<vmem>>, vector<1x32xf32>
    %cst_31 = arith.constant dense<0.000000e+00> : vector<16x96xf32>
    %23 = tpu.matmul %4, %11, %cst_31 {dimension_numbers = #tpu.dot_dimension_numbers<[1], [0], [0], [1], [0, 0, 1, 1], [], []>} : vector<16x32xf32>, vector<32x96xf32>, vector<16x96xf32> -> vector<16x96xf32>
    %24 = vector.broadcast %12 : vector<1x96xf32> to vector<16x96xf32>
    %25 = arith.addf %23, %24 : vector<16x96xf32>
    %26 = vector.extract_strided_slice %25 {offsets = [0, 0], sizes = [16, 32], strides = [1, 1]} : vector<16x96xf32> to vector<16x32xf32>
    %27 = vector.extract_strided_slice %25 {offsets = [0, 32], sizes = [16, 32], strides = [1, 1]} : vector<16x96xf32> to vector<16x32xf32>
    %28 = vector.extract_strided_slice %25 {offsets = [0, 64], sizes = [16, 32], strides = [1, 1]} : vector<16x96xf32> to vector<16x32xf32>
    %29 = vector.extract_strided_slice %26 {offsets = [0, 0], sizes = [8, 16], strides = [1, 1]} : vector<16x32xf32> to vector<8x16xf32>
    %30 = vector.extract_strided_slice %27 {offsets = [0, 0], sizes = [8, 16], strides = [1, 1]} : vector<16x32xf32> to vector<8x16xf32>
    %31 = vector.extract_strided_slice %28 {offsets = [0, 0], sizes = [8, 16], strides = [1, 1]} : vector<16x32xf32> to vector<8x16xf32>
    %cst_32 = arith.constant dense<0.000000e+00> : vector<8x8xf32>
    %32 = tpu.matmul %29, %30, %cst_32 {dimension_numbers = #tpu.dot_dimension_numbers<[1], [1], [0], [0], [0, 0, 1, 0], [], []>} : vector<8x16xf32>, vector<8x16xf32>, vector<8x8xf32> -> vector<8x8xf32>
    %cst_33 = arith.constant 2.500000e-01 : f32
    %33 = vector.broadcast %cst_33 : f32 to vector<8x8xf32>
    %34 = arith.mulf %32, %33 : vector<8x8xf32>
    %35 = vector.broadcast %10 : vector<1x8xf32> to vector<8x8xf32>
    %36 = arith.addf %34, %35 : vector<8x8xf32>
    %cst_34 = arith.constant dense<0xFF800000> : vector<8xf32>
    %37 = vector.multi_reduction <maximumf>, %36, %cst_34 [1] : vector<8x8xf32> to vector<8xf32>
    %38 = vector.shape_cast %37 : vector<8xf32> to vector<8x1xf32>
    %39 = vector.broadcast %38 : vector<8x1xf32> to vector<8x8xf32>
    %40 = arith.subf %36, %39 : vector<8x8xf32>
    %41 = math.exp %40 : vector<8x8xf32>
    %cst_35 = arith.constant dense<0.000000e+00> : vector<8xf32>
    %42 = vector.multi_reduction <add>, %41, %cst_35 [1] : vector<8x8xf32> to vector<8xf32>
    %43 = vector.shape_cast %42 : vector<8xf32> to vector<8x1xf32>
    %44 = tpu.reciprocal %43 {approx = true} : vector<8x1xf32> -> vector<8x1xf32>
    %45 = vector.broadcast %44 : vector<8x1xf32> to vector<8x8xf32>
    %46 = arith.mulf %41, %45 : vector<8x8xf32>
    %cst_36 = arith.constant dense<0.000000e+00> : vector<8x16xf32>
    %47 = tpu.matmul %46, %31, %cst_36 {dimension_numbers = #tpu.dot_dimension_numbers<[1], [0], [0], [1], [0, 0, 1, 1], [], []>} : vector<8x8xf32>, vector<8x16xf32>, vector<8x16xf32> -> vector<8x16xf32>
    %48 = vector.extract_strided_slice %26 {offsets = [0, 16], sizes = [8, 16], strides = [1, 1]} : vector<16x32xf32> to vector<8x16xf32>
    %49 = vector.extract_strided_slice %27 {offsets = [0, 16], sizes = [8, 16], strides = [1, 1]} : vector<16x32xf32> to vector<8x16xf32>
    %50 = vector.extract_strided_slice %28 {offsets = [0, 16], sizes = [8, 16], strides = [1, 1]} : vector<16x32xf32> to vector<8x16xf32>
    %cst_37 = arith.constant dense<0.000000e+00> : vector<8x8xf32>
    %51 = tpu.matmul %48, %49, %cst_37 {dimension_numbers = #tpu.dot_dimension_numbers<[1], [1], [0], [0], [0, 0, 1, 0], [], []>} : vector<8x16xf32>, vector<8x16xf32>, vector<8x8xf32> -> vector<8x8xf32>
    %cst_38 = arith.constant 2.500000e-01 : f32
    %52 = vector.broadcast %cst_38 : f32 to vector<8x8xf32>
    %53 = arith.mulf %51, %52 : vector<8x8xf32>
    %54 = vector.broadcast %10 : vector<1x8xf32> to vector<8x8xf32>
    %55 = arith.addf %53, %54 : vector<8x8xf32>
    %cst_39 = arith.constant dense<0xFF800000> : vector<8xf32>
    %56 = vector.multi_reduction <maximumf>, %55, %cst_39 [1] : vector<8x8xf32> to vector<8xf32>
    %57 = vector.shape_cast %56 : vector<8xf32> to vector<8x1xf32>
    %58 = vector.broadcast %57 : vector<8x1xf32> to vector<8x8xf32>
    %59 = arith.subf %55, %58 : vector<8x8xf32>
    %60 = math.exp %59 : vector<8x8xf32>
    %cst_40 = arith.constant dense<0.000000e+00> : vector<8xf32>
    %61 = vector.multi_reduction <add>, %60, %cst_40 [1] : vector<8x8xf32> to vector<8xf32>
    %62 = vector.shape_cast %61 : vector<8xf32> to vector<8x1xf32>
    %63 = tpu.reciprocal %62 {approx = true} : vector<8x1xf32> -> vector<8x1xf32>
    %64 = vector.broadcast %63 : vector<8x1xf32> to vector<8x8xf32>
    %65 = arith.mulf %60, %64 : vector<8x8xf32>
    %cst_41 = arith.constant dense<0.000000e+00> : vector<8x16xf32>
    %66 = tpu.matmul %65, %50, %cst_41 {dimension_numbers = #tpu.dot_dimension_numbers<[1], [0], [0], [1], [0, 0, 1, 1], [], []>} : vector<8x8xf32>, vector<8x16xf32>, vector<8x16xf32> -> vector<8x16xf32>
    %67 = tpu.concatenate %47, %66 in 1 : vector<8x16xf32>, vector<8x16xf32> -> vector<8x32xf32>
    %68 = vector.extract_strided_slice %26 {offsets = [8, 0], sizes = [8, 16], strides = [1, 1]} : vector<16x32xf32> to vector<8x16xf32>
    %69 = vector.extract_strided_slice %27 {offsets = [8, 0], sizes = [8, 16], strides = [1, 1]} : vector<16x32xf32> to vector<8x16xf32>
    %70 = vector.extract_strided_slice %28 {offsets = [8, 0], sizes = [8, 16], strides = [1, 1]} : vector<16x32xf32> to vector<8x16xf32>
    %cst_42 = arith.constant dense<0.000000e+00> : vector<8x8xf32>
    %71 = tpu.matmul %68, %69, %cst_42 {dimension_numbers = #tpu.dot_dimension_numbers<[1], [1], [0], [0], [0, 0, 1, 0], [], []>} : vector<8x16xf32>, vector<8x16xf32>, vector<8x8xf32> -> vector<8x8xf32>
    %cst_43 = arith.constant 2.500000e-01 : f32
    %72 = vector.broadcast %cst_43 : f32 to vector<8x8xf32>
    %73 = arith.mulf %71, %72 : vector<8x8xf32>
    %74 = vector.broadcast %10 : vector<1x8xf32> to vector<8x8xf32>
    %75 = arith.addf %73, %74 : vector<8x8xf32>
    %cst_44 = arith.constant dense<0xFF800000> : vector<8xf32>
    %76 = vector.multi_reduction <maximumf>, %75, %cst_44 [1] : vector<8x8xf32> to vector<8xf32>
    %77 = vector.shape_cast %76 : vector<8xf32> to vector<8x1xf32>
    %78 = vector.broadcast %77 : vector<8x1xf32> to vector<8x8xf32>
    %79 = arith.subf %75, %78 : vector<8x8xf32>
    %80 = math.exp %79 : vector<8x8xf32>
    %cst_45 = arith.constant dense<0.000000e+00> : vector<8xf32>
    %81 = vector.multi_reduction <add>, %80, %cst_45 [1] : vector<8x8xf32> to vector<8xf32>
    %82 = vector.shape_cast %81 : vector<8xf32> to vector<8x1xf32>
    %83 = tpu.reciprocal %82 {approx = true} : vector<8x1xf32> -> vector<8x1xf32>
    %84 = vector.broadcast %83 : vector<8x1xf32> to vector<8x8xf32>
    %85 = arith.mulf %80, %84 : vector<8x8xf32>
    %cst_46 = arith.constant dense<0.000000e+00> : vector<8x16xf32>
    %86 = tpu.matmul %85, %70, %cst_46 {dimension_numbers = #tpu.dot_dimension_numbers<[1], [0], [0], [1], [0, 0, 1, 1], [], []>} : vector<8x8xf32>, vector<8x16xf32>, vector<8x16xf32> -> vector<8x16xf32>
    %87 = vector.extract_strided_slice %26 {offsets = [8, 16], sizes = [8, 16], strides = [1, 1]} : vector<16x32xf32> to vector<8x16xf32>
    %88 = vector.extract_strided_slice %27 {offsets = [8, 16], sizes = [8, 16], strides = [1, 1]} : vector<16x32xf32> to vector<8x16xf32>
    %89 = vector.extract_strided_slice %28 {offsets = [8, 16], sizes = [8, 16], strides = [1, 1]} : vector<16x32xf32> to vector<8x16xf32>
    %cst_47 = arith.constant dense<0.000000e+00> : vector<8x8xf32>
    %90 = tpu.matmul %87, %88, %cst_47 {dimension_numbers = #tpu.dot_dimension_numbers<[1], [1], [0], [0], [0, 0, 1, 0], [], []>} : vector<8x16xf32>, vector<8x16xf32>, vector<8x8xf32> -> vector<8x8xf32>
    %cst_48 = arith.constant 2.500000e-01 : f32
    %91 = vector.broadcast %cst_48 : f32 to vector<8x8xf32>
    %92 = arith.mulf %90, %91 : vector<8x8xf32>
    %93 = vector.broadcast %10 : vector<1x8xf32> to vector<8x8xf32>
    %94 = arith.addf %92, %93 : vector<8x8xf32>
    %cst_49 = arith.constant dense<0xFF800000> : vector<8xf32>
    %95 = vector.multi_reduction <maximumf>, %94, %cst_49 [1] : vector<8x8xf32> to vector<8xf32>
    %96 = vector.shape_cast %95 : vector<8xf32> to vector<8x1xf32>
    %97 = vector.broadcast %96 : vector<8x1xf32> to vector<8x8xf32>
    %98 = arith.subf %94, %97 : vector<8x8xf32>
    %99 = math.exp %98 : vector<8x8xf32>
    %cst_50 = arith.constant dense<0.000000e+00> : vector<8xf32>
    %100 = vector.multi_reduction <add>, %99, %cst_50 [1] : vector<8x8xf32> to vector<8xf32>
    %101 = vector.shape_cast %100 : vector<8xf32> to vector<8x1xf32>
    %102 = tpu.reciprocal %101 {approx = true} : vector<8x1xf32> -> vector<8x1xf32>
    %103 = vector.broadcast %102 : vector<8x1xf32> to vector<8x8xf32>
    %104 = arith.mulf %99, %103 : vector<8x8xf32>
    %cst_51 = arith.constant dense<0.000000e+00> : vector<8x16xf32>
    %105 = tpu.matmul %104, %89, %cst_51 {dimension_numbers = #tpu.dot_dimension_numbers<[1], [0], [0], [1], [0, 0, 1, 1], [], []>} : vector<8x8xf32>, vector<8x16xf32>, vector<8x16xf32> -> vector<8x16xf32>
    %106 = tpu.concatenate %86, %105 in 1 : vector<8x16xf32>, vector<8x16xf32> -> vector<8x32xf32>
    %107 = tpu.concatenate %67, %106 in 0 : vector<8x32xf32>, vector<8x32xf32> -> vector<16x32xf32>
    %cst_52 = arith.constant dense<0.000000e+00> : vector<16x32xf32>
    %108 = tpu.matmul %107, %13, %cst_52 {dimension_numbers = #tpu.dot_dimension_numbers<[1], [0], [0], [1], [0, 0, 1, 1], [], []>} : vector<16x32xf32>, vector<32x32xf32>, vector<16x32xf32> -> vector<16x32xf32>
    %109 = vector.broadcast %14 : vector<1x32xf32> to vector<16x32xf32>
    %110 = arith.addf %108, %109 : vector<16x32xf32>
    %111 = arith.addf %4, %110 : vector<16x32xf32>
    %cst_53 = arith.constant dense<0.000000e+00> : vector<16xf32>
    %112 = vector.multi_reduction <add>, %111, %cst_53 [1] : vector<16x32xf32> to vector<16xf32>
    %113 = vector.shape_cast %112 : vector<16xf32> to vector<16x1xf32>
    %cst_54 = arith.constant 3.200000e+01 : f32
    %114 = vector.broadcast %cst_54 : f32 to vector<16x1xf32>
    %115 = arith.divf %113, %114 : vector<16x1xf32>
    %116 = vector.broadcast %115 : vector<16x1xf32> to vector<16x32xf32>
    %117 = arith.subf %111, %116 : vector<16x32xf32>
    %118 = arith.mulf %117, %117 : vector<16x32xf32>
    %cst_55 = arith.constant dense<0.000000e+00> : vector<16xf32>
    %119 = vector.multi_reduction <add>, %118, %cst_55 [1] : vector<16x32xf32> to vector<16xf32>
    %120 = vector.shape_cast %119 : vector<16xf32> to vector<16x1xf32>
    %cst_56 = arith.constant 3.200000e+01 : f32
    %121 = vector.broadcast %cst_56 : f32 to vector<16x1xf32>
    %122 = arith.divf %120, %121 : vector<16x1xf32>
    %123 = vector.broadcast %115 : vector<16x1xf32> to vector<16x32xf32>
    %124 = arith.subf %111, %123 : vector<16x32xf32>
    %cst_57 = arith.constant 9.99999974E-6 : f32
    %125 = vector.broadcast %cst_57 : f32 to vector<16x1xf32>
    %126 = arith.addf %122, %125 : vector<16x1xf32>
    %127 = math.rsqrt %126 : vector<16x1xf32>
    %128 = vector.broadcast %127 : vector<16x1xf32> to vector<16x32xf32>
    %129 = arith.mulf %124, %128 : vector<16x32xf32>
    %130 = vector.broadcast %15 : vector<1x32xf32> to vector<16x32xf32>
    %131 = arith.mulf %129, %130 : vector<16x32xf32>
    %132 = vector.broadcast %16 : vector<1x32xf32> to vector<16x32xf32>
    %133 = arith.addf %131, %132 : vector<16x32xf32>
    %cst_58 = arith.constant dense<0.000000e+00> : vector<16x64xf32>
    %134 = tpu.matmul %133, %17, %cst_58 {dimension_numbers = #tpu.dot_dimension_numbers<[1], [0], [0], [1], [0, 0, 1, 1], [], []>} : vector<16x32xf32>, vector<32x64xf32>, vector<16x64xf32> -> vector<16x64xf32>
    %135 = vector.broadcast %18 : vector<1x64xf32> to vector<16x64xf32>
    %136 = arith.addf %134, %135 : vector<16x64xf32>
    %137 = arith.mulf %136, %136 : vector<16x64xf32>
    %138 = arith.mulf %136, %137 : vector<16x64xf32>
    %cst_59 = arith.constant 4.471500e-02 : f32
    %139 = vector.broadcast %cst_59 : f32 to vector<16x64xf32>
    %140 = arith.mulf %139, %138 : vector<16x64xf32>
    %141 = arith.addf %136, %140 : vector<16x64xf32>
    %cst_60 = arith.constant 0.797884583 : f32
    %142 = vector.broadcast %cst_60 : f32 to vector<16x64xf32>
    %143 = arith.mulf %142, %141 : vector<16x64xf32>
    %144 = math.tanh %143 : vector<16x64xf32>
    %cst_61 = arith.constant 1.000000e+00 : f32
    %145 = vector.broadcast %cst_61 : f32 to vector<16x64xf32>
    %146 = arith.addf %145, %144 : vector<16x64xf32>
    %cst_62 = arith.constant 5.000000e-01 : f32
    %147 = vector.broadcast %cst_62 : f32 to vector<16x64xf32>
    %148 = arith.mulf %147, %146 : vector<16x64xf32>
    %149 = arith.mulf %136, %148 : vector<16x64xf32>
    %cst_63 = arith.constant dense<0.000000e+00> : vector<16x32xf32>
    %150 = tpu.matmul %149, %19, %cst_63 {dimension_numbers = #tpu.dot_dimension_numbers<[1], [0], [0], [1], [0, 0, 1, 1], [], []>} : vector<16x64xf32>, vector<64x32xf32>, vector<16x32xf32> -> vector<16x32xf32>
    %151 = vector.broadcast %20 : vector<1x32xf32> to vector<16x32xf32>
    %152 = arith.addf %150, %151 : vector<16x32xf32>
    %153 = arith.addf %133, %152 : vector<16x32xf32>
    %cst_64 = arith.constant dense<0.000000e+00> : vector<16xf32>
    %154 = vector.multi_reduction <add>, %153, %cst_64 [1] : vector<16x32xf32> to vector<16xf32>
    %155 = vector.shape_cast %154 : vector<16xf32> to vector<16x1xf32>
    %cst_65 = arith.constant 3.200000e+01 : f32
    %156 = vector.broadcast %cst_65 : f32 to vector<16x1xf32>
    %157 = arith.divf %155, %156 : vector<16x1xf32>
    %158 = vector.broadcast %157 : vector<16x1xf32> to vector<16x32xf32>
    %159 = arith.subf %153, %158 : vector<16x32xf32>
    %160 = arith.mulf %159, %159 : vector<16x32xf32>
    %cst_66 = arith.constant dense<0.000000e+00> : vector<16xf32>
    %161 = vector.multi_reduction <add>, %160, %cst_66 [1] : vector<16x32xf32> to vector<16xf32>
    %162 = vector.shape_cast %161 : vector<16xf32> to vector<16x1xf32>
    %cst_67 = arith.constant 3.200000e+01 : f32
    %163 = vector.broadcast %cst_67 : f32 to vector<16x1xf32>
    %164 = arith.divf %162, %163 : vector<16x1xf32>
    %165 = vector.broadcast %157 : vector<16x1xf32> to vector<16x32xf32>
    %166 = arith.subf %153, %165 : vector<16x32xf32>
    %cst_68 = arith.constant 9.99999974E-6 : f32
    %167 = vector.broadcast %cst_68 : f32 to vector<16x1xf32>
    %168 = arith.addf %164, %167 : vector<16x1xf32>
    %169 = math.rsqrt %168 : vector<16x1xf32>
    %170 = vector.broadcast %169 : vector<16x1xf32> to vector<16x32xf32>
    %171 = arith.mulf %166, %170 : vector<16x32xf32>
    %172 = vector.broadcast %21 : vector<1x32xf32> to vector<16x32xf32>
    %173 = arith.mulf %171, %172 : vector<16x32xf32>
    %174 = vector.broadcast %22 : vector<1x32xf32> to vector<16x32xf32>
    %175 = arith.addf %173, %174 : vector<16x32xf32>
    %176 = tpu.iota {dimensions = array<i32: 1>} : vector<2x16xi32>
    %177 = tpu.iota {dimensions = array<i32: 0>} : vector<2x16xi32>
    %c8_i32 = arith.constant 8 : i32
    %178 = vector.broadcast %c8_i32 : i32 to vector<2x16xi32>
    %179 = arith.muli %177, %178 : vector<2x16xi32>
    %180 = arith.cmpi eq, %176, %179 : vector<2x16xi32>
    %181 = arith.extui %180 : vector<2x16xi1> to vector<2x16xi32>
    %182 = arith.sitofp %181 : vector<2x16xi32> to vector<2x16xf32>
    %cst_69 = arith.constant dense<0.000000e+00> : vector<2x32xf32>
    %183 = tpu.matmul %182, %175, %cst_69 {dimension_numbers = #tpu.dot_dimension_numbers<[1], [0], [0], [1], [0, 0, 1, 1], [], []>} : vector<2x16xf32>, vector<16x32xf32>, vector<2x32xf32> -> vector<2x32xf32>
    %c0_70 = arith.constant 0 : index
    %c0_71 = arith.constant 0 : index
    %184 = vector.load %arg15[%c0_70, %c0_71] : memref<1x32xf32, #tpu.memory_space<vmem>>, vector<1x32xf32>
    %c0_72 = arith.constant 0 : index
    %c0_73 = arith.constant 0 : index
    %185 = vector.load %arg16[%c0_72, %c0_73] : memref<1x32xf32, #tpu.memory_space<vmem>>, vector<1x32xf32>
    %cst_74 = arith.constant dense<0.000000e+00> : vector<2xf32>
    %186 = vector.multi_reduction <add>, %183, %cst_74 [1] : vector<2x32xf32> to vector<2xf32>
    %187 = vector.shape_cast %186 : vector<2xf32> to vector<2x1xf32>
    %cst_75 = arith.constant 3.200000e+01 : f32
    %188 = vector.broadcast %cst_75 : f32 to vector<2x1xf32>
    %189 = arith.divf %187, %188 : vector<2x1xf32>
    %190 = vector.broadcast %189 : vector<2x1xf32> to vector<2x32xf32>
    %191 = arith.subf %183, %190 : vector<2x32xf32>
    %192 = arith.mulf %191, %191 : vector<2x32xf32>
    %cst_76 = arith.constant dense<0.000000e+00> : vector<2xf32>
    %193 = vector.multi_reduction <add>, %192, %cst_76 [1] : vector<2x32xf32> to vector<2xf32>
    %194 = vector.shape_cast %193 : vector<2xf32> to vector<2x1xf32>
    %cst_77 = arith.constant 3.200000e+01 : f32
    %195 = vector.broadcast %cst_77 : f32 to vector<2x1xf32>
    %196 = arith.divf %194, %195 : vector<2x1xf32>
    %197 = vector.broadcast %189 : vector<2x1xf32> to vector<2x32xf32>
    %198 = arith.subf %183, %197 : vector<2x32xf32>
    %cst_78 = arith.constant 9.99999974E-6 : f32
    %199 = vector.broadcast %cst_78 : f32 to vector<2x1xf32>
    %200 = arith.addf %196, %199 : vector<2x1xf32>
    %201 = math.rsqrt %200 : vector<2x1xf32>
    %202 = vector.broadcast %201 : vector<2x1xf32> to vector<2x32xf32>
    %203 = arith.mulf %198, %202 : vector<2x32xf32>
    %204 = vector.broadcast %184 : vector<1x32xf32> to vector<2x32xf32>
    %205 = arith.mulf %203, %204 : vector<2x32xf32>
    %206 = vector.broadcast %185 : vector<1x32xf32> to vector<2x32xf32>
    %207 = arith.addf %205, %206 : vector<2x32xf32>
    %c0_79 = arith.constant 0 : index
    %c0_80 = arith.constant 0 : index
    %208 = vector.load %arg17[%c0_79, %c0_80] : memref<32x32xf32, #tpu.memory_space<vmem>>, vector<32x32xf32>
    %cst_81 = arith.constant dense<0.000000e+00> : vector<2x32xf32>
    %209 = tpu.matmul %207, %208, %cst_81 {dimension_numbers = #tpu.dot_dimension_numbers<[1], [0], [0], [1], [0, 0, 1, 1], [], []>} : vector<2x32xf32>, vector<32x32xf32>, vector<2x32xf32> -> vector<2x32xf32>
    %c0_82 = arith.constant 0 : index
    %c0_83 = arith.constant 0 : index
    %210 = vector.load %arg18[%c0_82, %c0_83] : memref<1x32xf32, #tpu.memory_space<vmem>>, vector<1x32xf32>
    %211 = vector.broadcast %210 : vector<1x32xf32> to vector<2x32xf32>
    %212 = arith.addf %209, %211 : vector<2x32xf32>
    %c0_84 = arith.constant 0 : index
    %c0_85 = arith.constant 0 : index
    %213 = vector.load %arg19[%c0_84, %c0_85] : memref<2x32xf32, #tpu.memory_space<vmem>>, vector<2x32xf32>
    tpu.vector_store %arg19[%c0_84, %c0_85], %212 {strides = array<i32>} : memref<2x32xf32, #tpu.memory_space<vmem>>, vector<2x32xf32>,
    return
  }
}

module attributes {stable_mosaic.version = 11 : i64} {
  func.func @_clip_loss_kernel(%arg0: memref<1xf32, #tpu.memory_space<smem>>, %arg1: memref<2x32xf32, #tpu.memory_space<vmem>>, %arg2: memref<2x32xf32, #tpu.memory_space<vmem>>, %arg3: memref<1x1xf32, #tpu.memory_space<vmem>>) attributes {dimension_semantics = [], scalar_prefetch = 0 : i64, scratch_operands = 0 : i64, tpu.core_type = #tpu.core_type<tc>} {
    %c0 = arith.constant 0 : index
    %c0_0 = arith.constant 0 : index
    %0 = vector.load %arg1[%c0, %c0_0] : memref<2x32xf32, #tpu.memory_space<vmem>>, vector<2x32xf32>
    %c0_1 = arith.constant 0 : index
    %c0_2 = arith.constant 0 : index
    %1 = vector.load %arg2[%c0_1, %c0_2] : memref<2x32xf32, #tpu.memory_space<vmem>>, vector<2x32xf32>
    %2 = arith.mulf %0, %0 : vector<2x32xf32>
    %cst = arith.constant dense<0.000000e+00> : vector<2xf32>
    %3 = vector.multi_reduction <add>, %2, %cst [1] : vector<2x32xf32> to vector<2xf32>
    %4 = vector.shape_cast %3 : vector<2xf32> to vector<2x1xf32>
    %cst_3 = arith.constant 9.99999996E-13 : f32
    %5 = vector.broadcast %cst_3 : f32 to vector<2x1xf32>
    %6 = arith.addf %4, %5 : vector<2x1xf32>
    %7 = math.rsqrt %6 : vector<2x1xf32>
    %8 = vector.broadcast %7 : vector<2x1xf32> to vector<2x32xf32>
    %9 = arith.mulf %0, %8 : vector<2x32xf32>
    %10 = arith.mulf %1, %1 : vector<2x32xf32>
    %cst_4 = arith.constant dense<0.000000e+00> : vector<2xf32>
    %11 = vector.multi_reduction <add>, %10, %cst_4 [1] : vector<2x32xf32> to vector<2xf32>
    %12 = vector.shape_cast %11 : vector<2xf32> to vector<2x1xf32>
    %cst_5 = arith.constant 9.99999996E-13 : f32
    %13 = vector.broadcast %cst_5 : f32 to vector<2x1xf32>
    %14 = arith.addf %12, %13 : vector<2x1xf32>
    %15 = math.rsqrt %14 : vector<2x1xf32>
    %16 = vector.broadcast %15 : vector<2x1xf32> to vector<2x32xf32>
    %17 = arith.mulf %1, %16 : vector<2x32xf32>
    %c0_6 = arith.constant 0 : index
    %18 = memref.load %arg0[%c0_6] : memref<1xf32, #tpu.memory_space<smem>>
    %cst_7 = arith.constant dense<0.000000e+00> : vector<2x2xf32>
    %19 = tpu.matmul %9, %17, %cst_7 {dimension_numbers = #tpu.dot_dimension_numbers<[1], [1], [0], [0], [0, 0, 1, 0], [], []>} : vector<2x32xf32>, vector<2x32xf32>, vector<2x2xf32> -> vector<2x2xf32>
    %20 = vector.broadcast %18 : f32 to vector<2x2xf32>
    %21 = arith.mulf %20, %19 : vector<2x2xf32>
    %cst_8 = arith.constant dense<0.000000e+00> : vector<2x2xf32>
    %22 = tpu.matmul %17, %9, %cst_8 {dimension_numbers = #tpu.dot_dimension_numbers<[1], [1], [0], [0], [0, 0, 1, 0], [], []>} : vector<2x32xf32>, vector<2x32xf32>, vector<2x2xf32> -> vector<2x2xf32>
    %23 = vector.broadcast %18 : f32 to vector<2x2xf32>
    %24 = arith.mulf %23, %22 : vector<2x2xf32>
    %25 = tpu.iota {dimensions = array<i32: 0>} : vector<2x2xi32>
    %26 = tpu.iota {dimensions = array<i32: 1>} : vector<2x2xi32>
    %c0_i32 = arith.constant 0 : i32
    %27 = vector.broadcast %c0_i32 : i32 to vector<2x2xi32>
    %28 = arith.addi %25, %27 : vector<2x2xi32>
    %29 = arith.cmpi eq, %28, %26 : vector<2x2xi32>
    %30 = arith.extui %29 : vector<2x2xi1> to vector<2x2xi32>
    %31 = arith.sitofp %30 : vector<2x2xi32> to vector<2x2xf32>
    %cst_9 = arith.constant dense<0xFF800000> : vector<2xf32>
    %32 = vector.multi_reduction <maximumf>, %21, %cst_9 [1] : vector<2x2xf32> to vector<2xf32>
    %33 = vector.shape_cast %32 : vector<2xf32> to vector<2x1xf32>
    %34 = vector.broadcast %33 : vector<2x1xf32> to vector<2x2xf32>
    %35 = arith.subf %21, %34 : vector<2x2xf32>
    %36 = math.exp %35 : vector<2x2xf32>
    %cst_10 = arith.constant dense<0.000000e+00> : vector<2xf32>
    %37 = vector.multi_reduction <add>, %36, %cst_10 [1] : vector<2x2xf32> to vector<2xf32>
    %38 = vector.shape_cast %37 : vector<2xf32> to vector<2x1xf32>
    %39 = math.log %38 : vector<2x1xf32>
    %40 = vector.broadcast %39 : vector<2x1xf32> to vector<2x2xf32>
    %41 = arith.subf %35, %40 : vector<2x2xf32>
    %42 = arith.mulf %31, %41 : vector<2x2xf32>
    %cst_11 = arith.constant dense<0.000000e+00> : vector<2xf32>
    %43 = vector.multi_reduction <add>, %42, %cst_11 [1] : vector<2x2xf32> to vector<2xf32>
    %44 = vector.shape_cast %43 : vector<2xf32> to vector<2x1xf32>
    %cst_12 = arith.constant 0.000000e+00 : f32
    %45 = vector.broadcast %cst_12 : f32 to vector<2x1xf32>
    %46 = arith.subf %45, %44 : vector<2x1xf32>
    %cst_13 = arith.constant dense<0xFF800000> : vector<2xf32>
    %47 = vector.multi_reduction <maximumf>, %24, %cst_13 [1] : vector<2x2xf32> to vector<2xf32>
    %48 = vector.shape_cast %47 : vector<2xf32> to vector<2x1xf32>
    %49 = vector.broadcast %48 : vector<2x1xf32> to vector<2x2xf32>
    %50 = arith.subf %24, %49 : vector<2x2xf32>
    %51 = math.exp %50 : vector<2x2xf32>
    %cst_14 = arith.constant dense<0.000000e+00> : vector<2xf32>
    %52 = vector.multi_reduction <add>, %51, %cst_14 [1] : vector<2x2xf32> to vector<2xf32>
    %53 = vector.shape_cast %52 : vector<2xf32> to vector<2x1xf32>
    %54 = math.log %53 : vector<2x1xf32>
    %55 = vector.broadcast %54 : vector<2x1xf32> to vector<2x2xf32>
    %56 = arith.subf %50, %55 : vector<2x2xf32>
    %57 = arith.mulf %31, %56 : vector<2x2xf32>
    %cst_15 = arith.constant dense<0.000000e+00> : vector<2xf32>
    %58 = vector.multi_reduction <add>, %57, %cst_15 [1] : vector<2x2xf32> to vector<2xf32>
    %59 = vector.shape_cast %58 : vector<2xf32> to vector<2x1xf32>
    %cst_16 = arith.constant 0.000000e+00 : f32
    %60 = vector.broadcast %cst_16 : f32 to vector<2x1xf32>
    %61 = arith.subf %60, %59 : vector<2x1xf32>
    %62 = arith.addf %46, %61 : vector<2x1xf32>
    %cst_17 = arith.constant 5.000000e-01 : f32
    %63 = vector.broadcast %cst_17 : f32 to vector<2x1xf32>
    %64 = arith.mulf %63, %62 : vector<2x1xf32>
    %cst_18 = arith.constant dense<0.000000e+00> : vector<1xf32>
    %65 = vector.multi_reduction <add>, %64, %cst_18 [0] : vector<2x1xf32> to vector<1xf32>
    %66 = vector.shape_cast %65 : vector<1xf32> to vector<1x1xf32>
    %cst_19 = arith.constant 5.000000e-01 : f32
    %67 = vector.broadcast %cst_19 : f32 to vector<1x1xf32>
    %68 = arith.mulf %66, %67 : vector<1x1xf32>
    %c0_20 = arith.constant 0 : index
    %c0_21 = arith.constant 0 : index
    %69 = vector.load %arg3[%c0_20, %c0_21] : memref<1x1xf32, #tpu.memory_space<vmem>>, vector<1x1xf32>
    tpu.vector_store %arg3[%c0_20, %c0_21], %68 {strides = array<i32>} : memref<1x1xf32, #tpu.memory_space<vmem>>, vector<1x1xf32>,
    return
  }
}

module attributes {stable_mosaic.version = 11 : i64} {
  func.func @_text_tower_kernel(%arg0: memref<16x1xi32, #tpu.memory_space<vmem>>, %arg1: memref<16x1xi32, #tpu.memory_space<vmem>>, %arg2: memref<2x8xf32, #tpu.memory_space<vmem>>, %arg3: memref<64x32xf32, #tpu.memory_space<vmem>>, %arg4: memref<2x32xf32, #tpu.memory_space<vmem>>, %arg5: memref<16x32xf32, #tpu.memory_space<vmem>>, %arg6: memref<1x32xf32, #tpu.memory_space<vmem>>, %arg7: memref<1x32xf32, #tpu.memory_space<vmem>>, %arg8: memref<32x96xf32, #tpu.memory_space<vmem>>, %arg9: memref<1x96xf32, #tpu.memory_space<vmem>>, %arg10: memref<32x32xf32, #tpu.memory_space<vmem>>, %arg11: memref<1x32xf32, #tpu.memory_space<vmem>>, %arg12: memref<1x32xf32, #tpu.memory_space<vmem>>, %arg13: memref<1x32xf32, #tpu.memory_space<vmem>>, %arg14: memref<32x64xf32, #tpu.memory_space<vmem>>, %arg15: memref<1x64xf32, #tpu.memory_space<vmem>>, %arg16: memref<64x32xf32, #tpu.memory_space<vmem>>, %arg17: memref<1x32xf32, #tpu.memory_space<vmem>>, %arg18: memref<1x32xf32, #tpu.memory_space<vmem>>, %arg19: memref<1x32xf32, #tpu.memory_space<vmem>>, %arg20: memref<32x32xf32, #tpu.memory_space<vmem>>, %arg21: memref<1x32xf32, #tpu.memory_space<vmem>>, %arg22: memref<2x32xf32, #tpu.memory_space<vmem>>) attributes {dimension_semantics = [], scalar_prefetch = 0 : i64, scratch_operands = 0 : i64, tpu.core_type = #tpu.core_type<tc>} {
    %c0 = arith.constant 0 : index
    %c0_0 = arith.constant 0 : index
    %0 = vector.load %arg0[%c0, %c0_0] : memref<16x1xi32, #tpu.memory_space<vmem>>, vector<16x1xi32>
    %1 = tpu.iota {dimensions = array<i32: 1>} : vector<16x64xi32>
    %2 = vector.broadcast %0 : vector<16x1xi32> to vector<16x64xi32>
    %3 = arith.cmpi eq, %1, %2 : vector<16x64xi32>
    %4 = arith.extui %3 : vector<16x64xi1> to vector<16x64xi32>
    %5 = arith.sitofp %4 : vector<16x64xi32> to vector<16x64xf32>
    %c0_1 = arith.constant 0 : index
    %c0_2 = arith.constant 0 : index
    %6 = vector.load %arg3[%c0_1, %c0_2] : memref<64x32xf32, #tpu.memory_space<vmem>>, vector<64x32xf32>
    %cst = arith.constant dense<0.000000e+00> : vector<16x32xf32>
    %7 = tpu.matmul %5, %6, %cst {dimension_numbers = #tpu.dot_dimension_numbers<[1], [0], [0], [1], [0, 0, 1, 1], [], []>} : vector<16x64xf32>, vector<64x32xf32>, vector<16x32xf32> -> vector<16x32xf32>
    %c0_3 = arith.constant 0 : index
    %c0_4 = arith.constant 0 : index
    %8 = vector.load %arg4[%c0_3, %c0_4] : memref<2x32xf32, #tpu.memory_space<vmem>>, vector<2x32xf32>
    %c0_5 = arith.constant 0 : index
    %c0_6 = arith.constant 0 : index
    %9 = vector.load %arg1[%c0_5, %c0_6] : memref<16x1xi32, #tpu.memory_space<vmem>>, vector<16x1xi32>
    %c0_i32 = arith.constant 0 : i32
    %10 = vector.broadcast %c0_i32 : i32 to vector<16x1xi32>
    %11 = arith.cmpi eq, %9, %10 : vector<16x1xi32>
    %12 = vector.extract_strided_slice %8 {offsets = [0, 0], sizes = [1, 32], strides = [1, 1]} : vector<2x32xf32> to vector<1x32xf32>
    %13 = vector.extract_strided_slice %8 {offsets = [1, 0], sizes = [1, 32], strides = [1, 1]} : vector<2x32xf32> to vector<1x32xf32>
    %14 = vector.shape_cast %11 : vector<16x1xi1> to vector<16x1xi1>
    %15 = vector.broadcast %14 : vector<16x1xi1> to vector<16x32xi1>
    %16 = vector.shape_cast %12 : vector<1x32xf32> to vector<1x32xf32>
    %17 = vector.broadcast %16 : vector<1x32xf32> to vector<16x32xf32>
    %18 = vector.shape_cast %13 : vector<1x32xf32> to vector<1x32xf32>
    %19 = vector.broadcast %18 : vector<1x32xf32> to vector<16x32xf32>
    %20 = arith.select %15, %17, %19 : vector<16x32xi1>, vector<16x32xf32>
    %21 = arith.addf %7, %20 : vector<16x32xf32>
    %c0_7 = arith.constant 0 : index
    %c0_8 = arith.constant 0 : index
    %22 = vector.load %arg5[%c0_7, %c0_8] : memref<16x32xf32, #tpu.memory_space<vmem>>, vector<16x32xf32>
    %23 = arith.addf %21, %22 : vector<16x32xf32>
    %c0_9 = arith.constant 0 : index
    %c0_10 = arith.constant 0 : index
    %24 = vector.load %arg6[%c0_9, %c0_10] : memref<1x32xf32, #tpu.memory_space<vmem>>, vector<1x32xf32>
    %c0_11 = arith.constant 0 : index
    %c0_12 = arith.constant 0 : index
    %25 = vector.load %arg7[%c0_11, %c0_12] : memref<1x32xf32, #tpu.memory_space<vmem>>, vector<1x32xf32>
    %cst_13 = arith.constant dense<0.000000e+00> : vector<16xf32>
    %26 = vector.multi_reduction <add>, %23, %cst_13 [1] : vector<16x32xf32> to vector<16xf32>
    %27 = vector.shape_cast %26 : vector<16xf32> to vector<16x1xf32>
    %cst_14 = arith.constant 3.200000e+01 : f32
    %28 = vector.broadcast %cst_14 : f32 to vector<16x1xf32>
    %29 = arith.divf %27, %28 : vector<16x1xf32>
    %30 = vector.broadcast %29 : vector<16x1xf32> to vector<16x32xf32>
    %31 = arith.subf %23, %30 : vector<16x32xf32>
    %32 = arith.mulf %31, %31 : vector<16x32xf32>
    %cst_15 = arith.constant dense<0.000000e+00> : vector<16xf32>
    %33 = vector.multi_reduction <add>, %32, %cst_15 [1] : vector<16x32xf32> to vector<16xf32>
    %34 = vector.shape_cast %33 : vector<16xf32> to vector<16x1xf32>
    %cst_16 = arith.constant 3.200000e+01 : f32
    %35 = vector.broadcast %cst_16 : f32 to vector<16x1xf32>
    %36 = arith.divf %34, %35 : vector<16x1xf32>
    %37 = vector.broadcast %29 : vector<16x1xf32> to vector<16x32xf32>
    %38 = arith.subf %23, %37 : vector<16x32xf32>
    %cst_17 = arith.constant 9.99999974E-6 : f32
    %39 = vector.broadcast %cst_17 : f32 to vector<16x1xf32>
    %40 = arith.addf %36, %39 : vector<16x1xf32>
    %41 = math.rsqrt %40 : vector<16x1xf32>
    %42 = vector.broadcast %41 : vector<16x1xf32> to vector<16x32xf32>
    %43 = arith.mulf %38, %42 : vector<16x32xf32>
    %44 = vector.broadcast %24 : vector<1x32xf32> to vector<16x32xf32>
    %45 = arith.mulf %43, %44 : vector<16x32xf32>
    %46 = vector.broadcast %25 : vector<1x32xf32> to vector<16x32xf32>
    %47 = arith.addf %45, %46 : vector<16x32xf32>
    %c0_18 = arith.constant 0 : index
    %c0_19 = arith.constant 0 : index
    %48 = vector.load %arg2[%c0_18, %c0_19] : memref<2x8xf32, #tpu.memory_space<vmem>>, vector<2x8xf32>
    %49 = vector.extract_strided_slice %48 {offsets = [0, 0], sizes = [1, 8], strides = [1, 1]} : vector<2x8xf32> to vector<1x8xf32>
    %cst_20 = arith.constant 1.000000e+00 : f32
    %50 = vector.broadcast %cst_20 : f32 to vector<1x8xf32>
    %51 = arith.subf %50, %49 : vector<1x8xf32>
    %cst_21 = arith.constant -1.000000e+09 : f32
    %52 = vector.broadcast %cst_21 : f32 to vector<1x8xf32>
    %53 = arith.mulf %51, %52 : vector<1x8xf32>
    %54 = vector.extract_strided_slice %48 {offsets = [1, 0], sizes = [1, 8], strides = [1, 1]} : vector<2x8xf32> to vector<1x8xf32>
    %cst_22 = arith.constant 1.000000e+00 : f32
    %55 = vector.broadcast %cst_22 : f32 to vector<1x8xf32>
    %56 = arith.subf %55, %54 : vector<1x8xf32>
    %cst_23 = arith.constant -1.000000e+09 : f32
    %57 = vector.broadcast %cst_23 : f32 to vector<1x8xf32>
    %58 = arith.mulf %56, %57 : vector<1x8xf32>
    %c0_24 = arith.constant 0 : index
    %c0_25 = arith.constant 0 : index
    %59 = vector.load %arg8[%c0_24, %c0_25] : memref<32x96xf32, #tpu.memory_space<vmem>>, vector<32x96xf32>
    %c0_26 = arith.constant 0 : index
    %c0_27 = arith.constant 0 : index
    %60 = vector.load %arg9[%c0_26, %c0_27] : memref<1x96xf32, #tpu.memory_space<vmem>>, vector<1x96xf32>
    %c0_28 = arith.constant 0 : index
    %c0_29 = arith.constant 0 : index
    %61 = vector.load %arg10[%c0_28, %c0_29] : memref<32x32xf32, #tpu.memory_space<vmem>>, vector<32x32xf32>
    %c0_30 = arith.constant 0 : index
    %c0_31 = arith.constant 0 : index
    %62 = vector.load %arg11[%c0_30, %c0_31] : memref<1x32xf32, #tpu.memory_space<vmem>>, vector<1x32xf32>
    %c0_32 = arith.constant 0 : index
    %c0_33 = arith.constant 0 : index
    %63 = vector.load %arg12[%c0_32, %c0_33] : memref<1x32xf32, #tpu.memory_space<vmem>>, vector<1x32xf32>
    %c0_34 = arith.constant 0 : index
    %c0_35 = arith.constant 0 : index
    %64 = vector.load %arg13[%c0_34, %c0_35] : memref<1x32xf32, #tpu.memory_space<vmem>>, vector<1x32xf32>
    %c0_36 = arith.constant 0 : index
    %c0_37 = arith.constant 0 : index
    %65 = vector.load %arg14[%c0_36, %c0_37] : memref<32x64xf32, #tpu.memory_space<vmem>>, vector<32x64xf32>
    %c0_38 = arith.constant 0 : index
    %c0_39 = arith.constant 0 : index
    %66 = vector.load %arg15[%c0_38, %c0_39] : memref<1x64xf32, #tpu.memory_space<vmem>>, vector<1x64xf32>
    %c0_40 = arith.constant 0 : index
    %c0_41 = arith.constant 0 : index
    %67 = vector.load %arg16[%c0_40, %c0_41] : memref<64x32xf32, #tpu.memory_space<vmem>>, vector<64x32xf32>
    %c0_42 = arith.constant 0 : index
    %c0_43 = arith.constant 0 : index
    %68 = vector.load %arg17[%c0_42, %c0_43] : memref<1x32xf32, #tpu.memory_space<vmem>>, vector<1x32xf32>
    %c0_44 = arith.constant 0 : index
    %c0_45 = arith.constant 0 : index
    %69 = vector.load %arg18[%c0_44, %c0_45] : memref<1x32xf32, #tpu.memory_space<vmem>>, vector<1x32xf32>
    %c0_46 = arith.constant 0 : index
    %c0_47 = arith.constant 0 : index
    %70 = vector.load %arg19[%c0_46, %c0_47] : memref<1x32xf32, #tpu.memory_space<vmem>>, vector<1x32xf32>
    %cst_48 = arith.constant dense<0.000000e+00> : vector<16x96xf32>
    %71 = tpu.matmul %47, %59, %cst_48 {dimension_numbers = #tpu.dot_dimension_numbers<[1], [0], [0], [1], [0, 0, 1, 1], [], []>} : vector<16x32xf32>, vector<32x96xf32>, vector<16x96xf32> -> vector<16x96xf32>
    %72 = vector.broadcast %60 : vector<1x96xf32> to vector<16x96xf32>
    %73 = arith.addf %71, %72 : vector<16x96xf32>
    %74 = vector.extract_strided_slice %73 {offsets = [0, 0], sizes = [16, 32], strides = [1, 1]} : vector<16x96xf32> to vector<16x32xf32>
    %75 = vector.extract_strided_slice %73 {offsets = [0, 32], sizes = [16, 32], strides = [1, 1]} : vector<16x96xf32> to vector<16x32xf32>
    %76 = vector.extract_strided_slice %73 {offsets = [0, 64], sizes = [16, 32], strides = [1, 1]} : vector<16x96xf32> to vector<16x32xf32>
    %77 = vector.extract_strided_slice %74 {offsets = [0, 0], sizes = [8, 16], strides = [1, 1]} : vector<16x32xf32> to vector<8x16xf32>
    %78 = vector.extract_strided_slice %75 {offsets = [0, 0], sizes = [8, 16], strides = [1, 1]} : vector<16x32xf32> to vector<8x16xf32>
    %79 = vector.extract_strided_slice %76 {offsets = [0, 0], sizes = [8, 16], strides = [1, 1]} : vector<16x32xf32> to vector<8x16xf32>
    %cst_49 = arith.constant dense<0.000000e+00> : vector<8x8xf32>
    %80 = tpu.matmul %77, %78, %cst_49 {dimension_numbers = #tpu.dot_dimension_numbers<[1], [1], [0], [0], [0, 0, 1, 0], [], []>} : vector<8x16xf32>, vector<8x16xf32>, vector<8x8xf32> -> vector<8x8xf32>
    %cst_50 = arith.constant 2.500000e-01 : f32
    %81 = vector.broadcast %cst_50 : f32 to vector<8x8xf32>
    %82 = arith.mulf %80, %81 : vector<8x8xf32>
    %83 = vector.broadcast %53 : vector<1x8xf32> to vector<8x8xf32>
    %84 = arith.addf %82, %83 : vector<8x8xf32>
    %cst_51 = arith.constant dense<0xFF800000> : vector<8xf32>
    %85 = vector.multi_reduction <maximumf>, %84, %cst_51 [1] : vector<8x8xf32> to vector<8xf32>
    %86 = vector.shape_cast %85 : vector<8xf32> to vector<8x1xf32>
    %87 = vector.broadcast %86 : vector<8x1xf32> to vector<8x8xf32>
    %88 = arith.subf %84, %87 : vector<8x8xf32>
    %89 = math.exp %88 : vector<8x8xf32>
    %cst_52 = arith.constant dense<0.000000e+00> : vector<8xf32>
    %90 = vector.multi_reduction <add>, %89, %cst_52 [1] : vector<8x8xf32> to vector<8xf32>
    %91 = vector.shape_cast %90 : vector<8xf32> to vector<8x1xf32>
    %92 = tpu.reciprocal %91 {approx = true} : vector<8x1xf32> -> vector<8x1xf32>
    %93 = vector.broadcast %92 : vector<8x1xf32> to vector<8x8xf32>
    %94 = arith.mulf %89, %93 : vector<8x8xf32>
    %cst_53 = arith.constant dense<0.000000e+00> : vector<8x16xf32>
    %95 = tpu.matmul %94, %79, %cst_53 {dimension_numbers = #tpu.dot_dimension_numbers<[1], [0], [0], [1], [0, 0, 1, 1], [], []>} : vector<8x8xf32>, vector<8x16xf32>, vector<8x16xf32> -> vector<8x16xf32>
    %96 = vector.extract_strided_slice %74 {offsets = [0, 16], sizes = [8, 16], strides = [1, 1]} : vector<16x32xf32> to vector<8x16xf32>
    %97 = vector.extract_strided_slice %75 {offsets = [0, 16], sizes = [8, 16], strides = [1, 1]} : vector<16x32xf32> to vector<8x16xf32>
    %98 = vector.extract_strided_slice %76 {offsets = [0, 16], sizes = [8, 16], strides = [1, 1]} : vector<16x32xf32> to vector<8x16xf32>
    %cst_54 = arith.constant dense<0.000000e+00> : vector<8x8xf32>
    %99 = tpu.matmul %96, %97, %cst_54 {dimension_numbers = #tpu.dot_dimension_numbers<[1], [1], [0], [0], [0, 0, 1, 0], [], []>} : vector<8x16xf32>, vector<8x16xf32>, vector<8x8xf32> -> vector<8x8xf32>
    %cst_55 = arith.constant 2.500000e-01 : f32
    %100 = vector.broadcast %cst_55 : f32 to vector<8x8xf32>
    %101 = arith.mulf %99, %100 : vector<8x8xf32>
    %102 = vector.broadcast %53 : vector<1x8xf32> to vector<8x8xf32>
    %103 = arith.addf %101, %102 : vector<8x8xf32>
    %cst_56 = arith.constant dense<0xFF800000> : vector<8xf32>
    %104 = vector.multi_reduction <maximumf>, %103, %cst_56 [1] : vector<8x8xf32> to vector<8xf32>
    %105 = vector.shape_cast %104 : vector<8xf32> to vector<8x1xf32>
    %106 = vector.broadcast %105 : vector<8x1xf32> to vector<8x8xf32>
    %107 = arith.subf %103, %106 : vector<8x8xf32>
    %108 = math.exp %107 : vector<8x8xf32>
    %cst_57 = arith.constant dense<0.000000e+00> : vector<8xf32>
    %109 = vector.multi_reduction <add>, %108, %cst_57 [1] : vector<8x8xf32> to vector<8xf32>
    %110 = vector.shape_cast %109 : vector<8xf32> to vector<8x1xf32>
    %111 = tpu.reciprocal %110 {approx = true} : vector<8x1xf32> -> vector<8x1xf32>
    %112 = vector.broadcast %111 : vector<8x1xf32> to vector<8x8xf32>
    %113 = arith.mulf %108, %112 : vector<8x8xf32>
    %cst_58 = arith.constant dense<0.000000e+00> : vector<8x16xf32>
    %114 = tpu.matmul %113, %98, %cst_58 {dimension_numbers = #tpu.dot_dimension_numbers<[1], [0], [0], [1], [0, 0, 1, 1], [], []>} : vector<8x8xf32>, vector<8x16xf32>, vector<8x16xf32> -> vector<8x16xf32>
    %115 = tpu.concatenate %95, %114 in 1 : vector<8x16xf32>, vector<8x16xf32> -> vector<8x32xf32>
    %116 = vector.extract_strided_slice %74 {offsets = [8, 0], sizes = [8, 16], strides = [1, 1]} : vector<16x32xf32> to vector<8x16xf32>
    %117 = vector.extract_strided_slice %75 {offsets = [8, 0], sizes = [8, 16], strides = [1, 1]} : vector<16x32xf32> to vector<8x16xf32>
    %118 = vector.extract_strided_slice %76 {offsets = [8, 0], sizes = [8, 16], strides = [1, 1]} : vector<16x32xf32> to vector<8x16xf32>
    %cst_59 = arith.constant dense<0.000000e+00> : vector<8x8xf32>
    %119 = tpu.matmul %116, %117, %cst_59 {dimension_numbers = #tpu.dot_dimension_numbers<[1], [1], [0], [0], [0, 0, 1, 0], [], []>} : vector<8x16xf32>, vector<8x16xf32>, vector<8x8xf32> -> vector<8x8xf32>
    %cst_60 = arith.constant 2.500000e-01 : f32
    %120 = vector.broadcast %cst_60 : f32 to vector<8x8xf32>
    %121 = arith.mulf %119, %120 : vector<8x8xf32>
    %122 = vector.broadcast %58 : vector<1x8xf32> to vector<8x8xf32>
    %123 = arith.addf %121, %122 : vector<8x8xf32>
    %cst_61 = arith.constant dense<0xFF800000> : vector<8xf32>
    %124 = vector.multi_reduction <maximumf>, %123, %cst_61 [1] : vector<8x8xf32> to vector<8xf32>
    %125 = vector.shape_cast %124 : vector<8xf32> to vector<8x1xf32>
    %126 = vector.broadcast %125 : vector<8x1xf32> to vector<8x8xf32>
    %127 = arith.subf %123, %126 : vector<8x8xf32>
    %128 = math.exp %127 : vector<8x8xf32>
    %cst_62 = arith.constant dense<0.000000e+00> : vector<8xf32>
    %129 = vector.multi_reduction <add>, %128, %cst_62 [1] : vector<8x8xf32> to vector<8xf32>
    %130 = vector.shape_cast %129 : vector<8xf32> to vector<8x1xf32>
    %131 = tpu.reciprocal %130 {approx = true} : vector<8x1xf32> -> vector<8x1xf32>
    %132 = vector.broadcast %131 : vector<8x1xf32> to vector<8x8xf32>
    %133 = arith.mulf %128, %132 : vector<8x8xf32>
    %cst_63 = arith.constant dense<0.000000e+00> : vector<8x16xf32>
    %134 = tpu.matmul %133, %118, %cst_63 {dimension_numbers = #tpu.dot_dimension_numbers<[1], [0], [0], [1], [0, 0, 1, 1], [], []>} : vector<8x8xf32>, vector<8x16xf32>, vector<8x16xf32> -> vector<8x16xf32>
    %135 = vector.extract_strided_slice %74 {offsets = [8, 16], sizes = [8, 16], strides = [1, 1]} : vector<16x32xf32> to vector<8x16xf32>
    %136 = vector.extract_strided_slice %75 {offsets = [8, 16], sizes = [8, 16], strides = [1, 1]} : vector<16x32xf32> to vector<8x16xf32>
    %137 = vector.extract_strided_slice %76 {offsets = [8, 16], sizes = [8, 16], strides = [1, 1]} : vector<16x32xf32> to vector<8x16xf32>
    %cst_64 = arith.constant dense<0.000000e+00> : vector<8x8xf32>
    %138 = tpu.matmul %135, %136, %cst_64 {dimension_numbers = #tpu.dot_dimension_numbers<[1], [1], [0], [0], [0, 0, 1, 0], [], []>} : vector<8x16xf32>, vector<8x16xf32>, vector<8x8xf32> -> vector<8x8xf32>
    %cst_65 = arith.constant 2.500000e-01 : f32
    %139 = vector.broadcast %cst_65 : f32 to vector<8x8xf32>
    %140 = arith.mulf %138, %139 : vector<8x8xf32>
    %141 = vector.broadcast %58 : vector<1x8xf32> to vector<8x8xf32>
    %142 = arith.addf %140, %141 : vector<8x8xf32>
    %cst_66 = arith.constant dense<0xFF800000> : vector<8xf32>
    %143 = vector.multi_reduction <maximumf>, %142, %cst_66 [1] : vector<8x8xf32> to vector<8xf32>
    %144 = vector.shape_cast %143 : vector<8xf32> to vector<8x1xf32>
    %145 = vector.broadcast %144 : vector<8x1xf32> to vector<8x8xf32>
    %146 = arith.subf %142, %145 : vector<8x8xf32>
    %147 = math.exp %146 : vector<8x8xf32>
    %cst_67 = arith.constant dense<0.000000e+00> : vector<8xf32>
    %148 = vector.multi_reduction <add>, %147, %cst_67 [1] : vector<8x8xf32> to vector<8xf32>
    %149 = vector.shape_cast %148 : vector<8xf32> to vector<8x1xf32>
    %150 = tpu.reciprocal %149 {approx = true} : vector<8x1xf32> -> vector<8x1xf32>
    %151 = vector.broadcast %150 : vector<8x1xf32> to vector<8x8xf32>
    %152 = arith.mulf %147, %151 : vector<8x8xf32>
    %cst_68 = arith.constant dense<0.000000e+00> : vector<8x16xf32>
    %153 = tpu.matmul %152, %137, %cst_68 {dimension_numbers = #tpu.dot_dimension_numbers<[1], [0], [0], [1], [0, 0, 1, 1], [], []>} : vector<8x8xf32>, vector<8x16xf32>, vector<8x16xf32> -> vector<8x16xf32>
    %154 = tpu.concatenate %134, %153 in 1 : vector<8x16xf32>, vector<8x16xf32> -> vector<8x32xf32>
    %155 = tpu.concatenate %115, %154 in 0 : vector<8x32xf32>, vector<8x32xf32> -> vector<16x32xf32>
    %cst_69 = arith.constant dense<0.000000e+00> : vector<16x32xf32>
    %156 = tpu.matmul %155, %61, %cst_69 {dimension_numbers = #tpu.dot_dimension_numbers<[1], [0], [0], [1], [0, 0, 1, 1], [], []>} : vector<16x32xf32>, vector<32x32xf32>, vector<16x32xf32> -> vector<16x32xf32>
    %157 = vector.broadcast %62 : vector<1x32xf32> to vector<16x32xf32>
    %158 = arith.addf %156, %157 : vector<16x32xf32>
    %159 = arith.addf %47, %158 : vector<16x32xf32>
    %cst_70 = arith.constant dense<0.000000e+00> : vector<16xf32>
    %160 = vector.multi_reduction <add>, %159, %cst_70 [1] : vector<16x32xf32> to vector<16xf32>
    %161 = vector.shape_cast %160 : vector<16xf32> to vector<16x1xf32>
    %cst_71 = arith.constant 3.200000e+01 : f32
    %162 = vector.broadcast %cst_71 : f32 to vector<16x1xf32>
    %163 = arith.divf %161, %162 : vector<16x1xf32>
    %164 = vector.broadcast %163 : vector<16x1xf32> to vector<16x32xf32>
    %165 = arith.subf %159, %164 : vector<16x32xf32>
    %166 = arith.mulf %165, %165 : vector<16x32xf32>
    %cst_72 = arith.constant dense<0.000000e+00> : vector<16xf32>
    %167 = vector.multi_reduction <add>, %166, %cst_72 [1] : vector<16x32xf32> to vector<16xf32>
    %168 = vector.shape_cast %167 : vector<16xf32> to vector<16x1xf32>
    %cst_73 = arith.constant 3.200000e+01 : f32
    %169 = vector.broadcast %cst_73 : f32 to vector<16x1xf32>
    %170 = arith.divf %168, %169 : vector<16x1xf32>
    %171 = vector.broadcast %163 : vector<16x1xf32> to vector<16x32xf32>
    %172 = arith.subf %159, %171 : vector<16x32xf32>
    %cst_74 = arith.constant 9.99999974E-6 : f32
    %173 = vector.broadcast %cst_74 : f32 to vector<16x1xf32>
    %174 = arith.addf %170, %173 : vector<16x1xf32>
    %175 = math.rsqrt %174 : vector<16x1xf32>
    %176 = vector.broadcast %175 : vector<16x1xf32> to vector<16x32xf32>
    %177 = arith.mulf %172, %176 : vector<16x32xf32>
    %178 = vector.broadcast %63 : vector<1x32xf32> to vector<16x32xf32>
    %179 = arith.mulf %177, %178 : vector<16x32xf32>
    %180 = vector.broadcast %64 : vector<1x32xf32> to vector<16x32xf32>
    %181 = arith.addf %179, %180 : vector<16x32xf32>
    %cst_75 = arith.constant dense<0.000000e+00> : vector<16x64xf32>
    %182 = tpu.matmul %181, %65, %cst_75 {dimension_numbers = #tpu.dot_dimension_numbers<[1], [0], [0], [1], [0, 0, 1, 1], [], []>} : vector<16x32xf32>, vector<32x64xf32>, vector<16x64xf32> -> vector<16x64xf32>
    %183 = vector.broadcast %66 : vector<1x64xf32> to vector<16x64xf32>
    %184 = arith.addf %182, %183 : vector<16x64xf32>
    %185 = arith.mulf %184, %184 : vector<16x64xf32>
    %186 = arith.mulf %184, %185 : vector<16x64xf32>
    %cst_76 = arith.constant 4.471500e-02 : f32
    %187 = vector.broadcast %cst_76 : f32 to vector<16x64xf32>
    %188 = arith.mulf %187, %186 : vector<16x64xf32>
    %189 = arith.addf %184, %188 : vector<16x64xf32>
    %cst_77 = arith.constant 0.797884583 : f32
    %190 = vector.broadcast %cst_77 : f32 to vector<16x64xf32>
    %191 = arith.mulf %190, %189 : vector<16x64xf32>
    %192 = math.tanh %191 : vector<16x64xf32>
    %cst_78 = arith.constant 1.000000e+00 : f32
    %193 = vector.broadcast %cst_78 : f32 to vector<16x64xf32>
    %194 = arith.addf %193, %192 : vector<16x64xf32>
    %cst_79 = arith.constant 5.000000e-01 : f32
    %195 = vector.broadcast %cst_79 : f32 to vector<16x64xf32>
    %196 = arith.mulf %195, %194 : vector<16x64xf32>
    %197 = arith.mulf %184, %196 : vector<16x64xf32>
    %cst_80 = arith.constant dense<0.000000e+00> : vector<16x32xf32>
    %198 = tpu.matmul %197, %67, %cst_80 {dimension_numbers = #tpu.dot_dimension_numbers<[1], [0], [0], [1], [0, 0, 1, 1], [], []>} : vector<16x64xf32>, vector<64x32xf32>, vector<16x32xf32> -> vector<16x32xf32>
    %199 = vector.broadcast %68 : vector<1x32xf32> to vector<16x32xf32>
    %200 = arith.addf %198, %199 : vector<16x32xf32>
    %201 = arith.addf %181, %200 : vector<16x32xf32>
    %cst_81 = arith.constant dense<0.000000e+00> : vector<16xf32>
    %202 = vector.multi_reduction <add>, %201, %cst_81 [1] : vector<16x32xf32> to vector<16xf32>
    %203 = vector.shape_cast %202 : vector<16xf32> to vector<16x1xf32>
    %cst_82 = arith.constant 3.200000e+01 : f32
    %204 = vector.broadcast %cst_82 : f32 to vector<16x1xf32>
    %205 = arith.divf %203, %204 : vector<16x1xf32>
    %206 = vector.broadcast %205 : vector<16x1xf32> to vector<16x32xf32>
    %207 = arith.subf %201, %206 : vector<16x32xf32>
    %208 = arith.mulf %207, %207 : vector<16x32xf32>
    %cst_83 = arith.constant dense<0.000000e+00> : vector<16xf32>
    %209 = vector.multi_reduction <add>, %208, %cst_83 [1] : vector<16x32xf32> to vector<16xf32>
    %210 = vector.shape_cast %209 : vector<16xf32> to vector<16x1xf32>
    %cst_84 = arith.constant 3.200000e+01 : f32
    %211 = vector.broadcast %cst_84 : f32 to vector<16x1xf32>
    %212 = arith.divf %210, %211 : vector<16x1xf32>
    %213 = vector.broadcast %205 : vector<16x1xf32> to vector<16x32xf32>
    %214 = arith.subf %201, %213 : vector<16x32xf32>
    %cst_85 = arith.constant 9.99999974E-6 : f32
    %215 = vector.broadcast %cst_85 : f32 to vector<16x1xf32>
    %216 = arith.addf %212, %215 : vector<16x1xf32>
    %217 = math.rsqrt %216 : vector<16x1xf32>
    %218 = vector.broadcast %217 : vector<16x1xf32> to vector<16x32xf32>
    %219 = arith.mulf %214, %218 : vector<16x32xf32>
    %220 = vector.broadcast %69 : vector<1x32xf32> to vector<16x32xf32>
    %221 = arith.mulf %219, %220 : vector<16x32xf32>
    %222 = vector.broadcast %70 : vector<1x32xf32> to vector<16x32xf32>
    %223 = arith.addf %221, %222 : vector<16x32xf32>
    %224 = tpu.iota {dimensions = array<i32: 1>} : vector<2x16xi32>
    %225 = tpu.iota {dimensions = array<i32: 0>} : vector<2x16xi32>
    %c8_i32 = arith.constant 8 : i32
    %226 = vector.broadcast %c8_i32 : i32 to vector<2x16xi32>
    %227 = arith.muli %225, %226 : vector<2x16xi32>
    %228 = arith.cmpi eq, %224, %227 : vector<2x16xi32>
    %229 = arith.extui %228 : vector<2x16xi1> to vector<2x16xi32>
    %230 = arith.sitofp %229 : vector<2x16xi32> to vector<2x16xf32>
    %cst_86 = arith.constant dense<0.000000e+00> : vector<2x32xf32>
    %231 = tpu.matmul %230, %223, %cst_86 {dimension_numbers = #tpu.dot_dimension_numbers<[1], [0], [0], [1], [0, 0, 1, 1], [], []>} : vector<2x16xf32>, vector<16x32xf32>, vector<2x32xf32> -> vector<2x32xf32>
    %c0_87 = arith.constant 0 : index
    %c0_88 = arith.constant 0 : index
    %232 = vector.load %arg20[%c0_87, %c0_88] : memref<32x32xf32, #tpu.memory_space<vmem>>, vector<32x32xf32>
    %cst_89 = arith.constant dense<0.000000e+00> : vector<2x32xf32>
    %233 = tpu.matmul %231, %232, %cst_89 {dimension_numbers = #tpu.dot_dimension_numbers<[1], [0], [0], [1], [0, 0, 1, 1], [], []>} : vector<2x32xf32>, vector<32x32xf32>, vector<2x32xf32> -> vector<2x32xf32>
    %c0_90 = arith.constant 0 : index
    %c0_91 = arith.constant 0 : index
    %234 = vector.load %arg21[%c0_90, %c0_91] : memref<1x32xf32, #tpu.memory_space<vmem>>, vector<1x32xf32>
    %235 = vector.broadcast %234 : vector<1x32xf32> to vector<2x32xf32>
    %236 = arith.addf %233, %235 : vector<2x32xf32>
    %c0_92 = arith.constant 0 : index
    %c0_93 = arith.constant 0 : index
    %237 = vector.load %arg22[%c0_92, %c0_93] : memref<2x32xf32, #tpu.memory_space<vmem>>, vector<2x32xf32>
    tpu.vector_store %arg22[%c0_92, %c0_93], %236 {strides = array<i32>} : memref<2x32xf32, #tpu.memory_space<vmem>>, vector<2x32xf32>,
    return
  }
}

</mosaic_0001>

<llo_original>
// kernel: retina_clip_forward.5
$region0: #{retina_clip_forward.5}
  #allocation0 [shape = 'u32[]', space=smem, size = 0x4, offset = 0x4, fixed_abs, tag = 'smem constant byte address 0x4 - core index']
  #allocation1 [shape = 'u32[144,128]{1,0:T(1,128)}', space=vmem, size = 0x12000, scoped, tag = 'internal scratch']
  #allocation2 [shape = 'f32[1]{0:T(128)S(6)}', space=smem, size = 0x200, scoped, tag = 'scoped memory for retina_clip_forward.5']
  %s0 = inlined_call_operand.<no memory space> [shape: f32[1], index: 0, kind: input, shape index: {}]
  %s1 = inlined_call_operand.vmem [shape: f32[2,32], index: 1, kind: input, shape index: {}]
  %s2 = inlined_call_operand.vmem [shape: f32[2,32], index: 2, kind: input, shape index: {}]
  %s3 = inlined_call_operand.hbm [shape: f32[1,1], index: 3, kind: output, shape index: {}]
  %s4 = sld [smem:[#allocation0]]
  $region22: #{retina_clip_forward.5} parent=0
    _
  %s6 = ssub.s32 1, %s4
  %s7 = scalar_select 0, %s6, %s4
  %8 = sst [smem:[#allocation2]] %s0
  $region1: #{retina_clip_forward.5} parent=0
    #allocation3 [shape = 'u8[512]{0}', space=vmem, size = 0x400, scoped, tag = 'output window, operand 0, single buffered']
    #allocation4 [shape = 's32[1]{0}', space=sflag, size = 0x4, scoped, tag = 'scoped memory for retina_clip_forward.5']
    %9 = vsyncpa [#allocation4], 0
    // Predicated region
    $region2: #{retina_clip_forward.5} parent=1 // pred_check
      _
    $region3: #{retina_clip_forward.5} parent=1 // pred_check_branch
      %11 = sbr.rel (0) target = $region5
    $region4: #{retina_clip_forward.5} parent=1 // pred_region
      _
    $region5: #{retina_clip_forward.5} parent=1 // pred_fallthru
      _
    // Predicated region
    $region6: #{retina_clip_forward.5} parent=1 // pred_check
      _
    $region7: #{retina_clip_forward.5} parent=1 // pred_check_branch
      %13 = sbr.rel (0) target = $region9
    $region8: #{retina_clip_forward.5} parent=1 // pred_region
      _
    $region9: #{retina_clip_forward.5} parent=1 // pred_fallthru
      _
    // Predicated region
    $region10: #{retina_clip_forward.5} parent=1 // pred_check
      _
    $region11: #{retina_clip_forward.5} parent=1 // pred_check_branch
      %15 = sbr.rel (0) target = $region13
    $region12: #{retina_clip_forward.5} parent=1 // pred_region
      _
    $region13: #{retina_clip_forward.5} parent=1 // pred_fallthru
      _
    %v16 = vld [vmem:[%s1] sm:$0x3]
    %v17 = vld [vmem:[%s2] sm:$0x3]
    %v18 = vmul.f32 %v16, %v16
    %vm19 = vcmask 254976
    %v20 = vsel %vm19, %v18, 0.0
    %21 = vadd.xlane.f32.xlu0 %v20
    %v22 = vpop.xlane.xlu0 %21
    %v23 = vadd.f32 %v22, 1e-12
    %v24 = vrsqrt.pop %v23
    %v25 = vmul.f32 %v16, %v24
    %v26 = vmul.f32 %v17, %v17
    %v27 = vsel %vm19, %v26, 0.0
    %28 = vadd.xlane.f32.xlu0 %v27
    %v29 = vpop.xlane.xlu0 %28
    %v30 = vadd.f32 %v29, 1e-12
    %v31 = vrsqrt.pop %v30
    %v32 = vmul.f32 %v17, %v31
    %s33 = sld [smem:[#allocation2]]
    %vm34 = vcmask 261120
    %v36 = vsel %vm34, %v25, 0
    %v39 = vsel %vm34, %v32, 0
    %41 = vmatprep.subr.mxu0 0.0
    %42 = vmatpush1.xpose.msra.mxu0 %v39
    %43 = vmatprep.subr.mxu0 0.0
    %44 = vmatpush1.xpose.msra.mxu0 0.0
    %45 = vmatprep.subr.mxu0 0.0
    %46 = vmatpush1.xpose.msra.mxu0 0.0
    %47 = vmatprep.subr.mxu0 0.0
    %48 = vmatpush1.xpose.msra.mxu0 0.0
    %49 = vmatprep.subr.mxu0 0.0
    %50 = vmatpush1.xpose.msra.mxu0 0.0
    %51 = vmatprep.subr.mxu0 0.0
    %52 = vmatpush1.xpose.msra.mxu0 0.0
    %53 = vmatprep.subr.mxu0 0.0
    %54 = vmatpush1.xpose.msra.mxu0 0.0
    %55 = vmatprep.subr.mxu0 0.0
    %56 = vmatpush1.xpose.msra.mxu0 0.0
    %57 = vmatprep.subr.mxu0 0.0
    %58 = vmatpush1.xpose.msra.mxu0 0.0
    %59 = vmatprep.subr.mxu0 0.0
    %60 = vmatpush1.xpose.msra.mxu0 0.0
    %61 = vmatprep.subr.mxu0 0.0
    %62 = vmatpush1.xpose.msra.mxu0 0.0
    %63 = vmatprep.subr.mxu0 0.0
    %64 = vmatpush1.xpose.msra.mxu0 0.0
    %65 = vmatprep.subr.mxu0 0.0
    %66 = vmatpush1.xpose.msra.mxu0 0.0
    %67 = vmatprep.subr.mxu0 0.0
    %68 = vmatpush1.xpose.msra.mxu0 0.0
    %69 = vmatprep.subr.mxu0 0.0
    %70 = vmatpush1.xpose.msra.mxu0 0.0
    %71 = vmatprep.subr.mxu0 0.0
    %72 = vmatpush1.xpose.msra.mxu0 0.0
    %73 = vmatprep.subr.mxu0 0.0
    %74 = vmatpush1.xpose.msra.mxu0 0.0
    %75 = vmatprep.subr.mxu0 0.0
    %76 = vmatpush1.xpose.msra.mxu0 0.0
    %77 = vmatprep.subr.mxu0 0.0
    %78 = vmatpush1.xpose.msra.mxu0 0.0
    %79 = vmatprep.subr.mxu0 0.0
    %80 = vmatpush1.xpose.msra.mxu0 0.0
    %81 = vmatprep.subr.mxu0 0.0
    %82 = vmatpush1.xpose.msra.mxu0 0.0
    %83 = vmatprep.subr.mxu0 0.0
    %84 = vmatpush1.xpose.msra.mxu0 0.0
    %85 = vmatprep.subr.mxu0 0.0
    %86 = vmatpush1.xpose.msra.mxu0 0.0
    %87 = vmatprep.subr.mxu0 0.0
    %88 = vmatpush1.xpose.msra.mxu0 0.0
    %89 = vmatprep.subr.mxu0 0.0
    %90 = vmatpush1.xpose.msra.mxu0 0.0
    %91 = vmatprep.subr.mxu0 0.0
    %92 = vmatpush1.xpose.msra.mxu0 0.0
    %93 = vmatprep.subr.mxu0 0.0
    %94 = vmatpush1.xpose.msra.mxu0 0.0
    %95 = vmatprep.subr.mxu0 0.0
    %96 = vmatpush1.xpose.msra.mxu0 0.0
    %97 = vmatprep.subr.mxu0 0.0
    %98 = vmatpush1.xpose.msra.mxu0 0.0
    %99 = vmatprep.subr.mxu0 0.0
    %100 = vmatpush1.xpose.msra.mxu0 0.0
    %101 = vmatprep.subr.mxu0 0.0
    %102 = vmatpush1.xpose.msra.mxu0 0.0
    %103 = vmatprep.subr.mxu0 0.0
    %104 = vmatpush1.xpose.msra.mxu0 0.0
    %105 = vmatprep.mubr.f32.mxu0 0.0
    %106 = vmatmul.mubr.f32.gmra.mrb[0].mxu0 %v36
    %v107 = vpop.f32.mrb[0].mxu0
    %v108 = vadd.f32 0.0, %v107
    %v109 = vpop.f32.mrb[0].mxu0
    %110 = vdwg.mxu0
    %v111 = vstv %s33
    %v112 = vmul.f32 %v111, %v108
    %113 = vmatprep.subr.mxu0 0.0
    %114 = vmatpush1.xpose.msra.mxu0 %v36
    %115 = vmatprep.subr.mxu0 0.0
    %116 = vmatpush1.xpose.msra.mxu0 0.0
    %117 = vmatprep.subr.mxu0 0.0
    %118 = vmatpush1.xpose.msra.mxu0 0.0
    %119 = vmatprep.subr.mxu0 0.0
    %120 = vmatpush1.xpose.msra.mxu0 0.0
    %121 = vmatprep.subr.mxu0 0.0
    %122 = vmatpush1.xpose.msra.mxu0 0.0
    %123 = vmatprep.subr.mxu0 0.0
    %124 = vmatpush1.xpose.msra.mxu0 0.0
    %125 = vmatprep.subr.mxu0 0.0
    %126 = vmatpush1.xpose.msra.mxu0 0.0
    %127 = vmatprep.subr.mxu0 0.0
    %128 = vmatpush1.xpose.msra.mxu0 0.0
    %129 = vmatprep.subr.mxu0 0.0
    %130 = vmatpush1.xpose.msra.mxu0 0.0
    %131 = vmatprep.subr.mxu0 0.0
    %132 = vmatpush1.xpose.msra.mxu0 0.0
    %133 = vmatprep.subr.mxu0 0.0
    %134 = vmatpush1.xpose.msra.mxu0 0.0
    %135 = vmatprep.subr.mxu0 0.0
    %136 = vmatpush1.xpose.msra.mxu0 0.0
    %137 = vmatprep.subr.mxu0 0.0
    %138 = vmatpush1.xpose.msra.mxu0 0.0
    %139 = vmatprep.subr.mxu0 0.0
    %140 = vmatpush1.xpose.msra.mxu0 0.0
    %141 = vmatprep.subr.mxu0 0.0
    %142 = vmatpush1.xpose.msra.mxu0 0.0
    %143 = vmatprep.subr.mxu0 0.0
    %144 = vmatpush1.xpose.msra.mxu0 0.0
    %145 = vmatprep.subr.mxu0 0.0
    %146 = vmatpush1.xpose.msra.mxu0 0.0
    %147 = vmatprep.subr.mxu0 0.0
    %148 = vmatpush1.xpose.msra.mxu0 0.0
    %149 = vmatprep.subr.mxu0 0.0
    %150 = vmatpush1.xpose.msra.mxu0 0.0
    %151 = vmatprep.subr.mxu0 0.0
    %152 = vmatpush1.xpose.msra.mxu0 0.0
    %153 = vmatprep.subr.mxu0 0.0
    %154 = vmatpush1.xpose.msra.mxu0 0.0
    %155 = vmatprep.subr.mxu0 0.0
    %156 = vmatpush1.xpose.msra.mxu0 0.0
    %157 = vmatprep.subr.mxu0 0.0
    %158 = vmatpush1.xpose.msra.mxu0 0.0
    %159 = vmatprep.subr.mxu0 0.0
    %160 = vmatpush1.xpose.msra.mxu0 0.0
    %161 = vmatprep.subr.mxu0 0.0
    %162 = vmatpush1.xpose.msra.mxu0 0.0
    %163 = vmatprep.subr.mxu0 0.0
    %164 = vmatpush1.xpose.msra.mxu0 0.0
    %165 = vmatprep.subr.mxu0 0.0
    %166 = vmatpush1.xpose.msra.mxu0 0.0
    %167 = vmatprep.subr.mxu0 0.0
    %168 = vmatpush1.xpose.msra.mxu0 0.0
    %169 = vmatprep.subr.mxu0 0.0
    %170 = vmatpush1.xpose.msra.mxu0 0.0
    %171 = vmatprep.subr.mxu0 0.0
    %172 = vmatpush1.xpose.msra.mxu0 0.0
    %173 = vmatprep.subr.mxu0 0.0
    %174 = vmatpush1.xpose.msra.mxu0 0.0
    %175 = vmatprep.subr.mxu0 0.0
    %176 = vmatpush1.xpose.msra.mxu0 0.0
    %177 = vmatprep.mubr.f32.mxu0 0.0
    %178 = vmatmul.mubr.f32.gmra.mrb[0].mxu0 %v39
    %v179 = vpop.f32.mrb[0].mxu0
    %v180 = vadd.f32 0.0, %v179
    %v181 = vpop.f32.mrb[0].mxu0
    %182 = vdwg.mxu0
    %v183 = vmul.f32 %v111, %v180
    %v184 = vlaneseq
    %v185 = vshrl.u32 %v184, 7
    %v186 = vlaneseq
    %v187 = vand.u32 %v186, 127
    %vm188 = vcmp.eq.s32.totalorder %v185, %v187
    %v189 = vsel %vm188, 1, 0
    %v190 = vcvt.s32.f32 %v189
    %vm191 = vcmask 9216
    %v192 = vsel %vm191, %v112, -inf
    %193 = vmax.xlane.f32.xlu0 %v192
    %v194 = vpop.xlane.xlu0 %193
    %v195 = vsub.f32 %v112, %v194
    %v196 = vmul.f32 %v195, 1.442695
    %v197 = vpow.pop %v196
    %v198 = vsel %vm191, %v197, 0.0
    %199 = vadd.xlane.f32.xlu0 %v198
    %v200 = vpop.xlane.xlu0 %199
    %v201 = vlog2.pop %v200
    %v202 = vmul.f32 %v201, 0.6931472
    %v203 = vsub.f32 %v195, %v202
    %v204 = vmul.f32 %v190, %v203
    %v205 = vsel %vm191, %v204, 0.0
    %206 = vadd.xlane.f32.xlu0 %v205
    %v207 = vpop.xlane.xlu0 %206
    %v208 = vsub.f32 0.0, %v207
    %v209 = vsel %vm191, %v183, -inf
    %210 = vmax.xlane.f32.xlu0 %v209
    %v211 = vpop.xlane.xlu0 %210
    %v212 = vsub.f32 %v183, %v211
    %v213 = vmul.f32 %v212, 1.442695
    %v214 = vpow.pop %v213
    %v215 = vsel %vm191, %v214, 0.0
    %216 = vadd.xlane.f32.xlu0 %v215
    %v217 = vpop.xlane.xlu0 %216
    %v218 = vlog2.pop %v217
    %v219 = vmul.f32 %v218, 0.6931472
    %v220 = vsub.f32 %v212, %v219
    %v221 = vmul.f32 %v190, %v220
    %v222 = vsel %vm191, %v221, 0.0
    %223 = vadd.xlane.f32.xlu0 %v222
    %v224 = vpop.xlane.xlu0 %223
    %v225 = vsub.f32 0.0, %v224
    %v226 = vadd.f32 %v208, %v225
    %v227 = vmul.f32 %v226, 0.5
    %vm228 = vcmask 1041408
    %v229 = vsel %vm228, %v227, 0.0
    %v230 = vrot.slane %v229, 4
    %v231 = vadd.f32 %v229, %v230
    %v232 = vrot.slane %v231, 2
    %v233 = vadd.f32 %v231, %v232
    %v234 = vrot.slane %v233, 1
    %v235 = vadd.f32 %v233, %v234
    %v236 = vmul.f32 %v235, 0.5
    %vm237 = vcmask 0
    %238 = vst.msk [vmem:[#allocation3] sm:$0x1] %vm237, %v236
    // Predicated region
    $region14: #{retina_clip_forward.5} parent=1 // pred_check
      _
    $region15: #{retina_clip_forward.5} parent=1 // pred_check_branch
      %240 = sbr.rel (0) target = $region17
    $region16: #{retina_clip_forward.5} parent=1 // pred_region
      %s242 = ssub.s32 16, 16
      %243 = vsyncadd [#allocation4], %s242
      %s245 = sshll.u32 [#allocation3], 4
      %s246 = int_to_ptr.vmem [resolvable:$true] %s245
      %248 = dma.vmem_to_hbm [thread:$0]  %s246, 16, %s3, [#allocation4]
    $region17: #{retina_clip_forward.5} parent=1 // pred_fallthru
      _
    // Predicated region
    $region18: #{retina_clip_forward.5} parent=1 // pred_check
      _
    $region19: #{retina_clip_forward.5} parent=1 // pred_check_branch
      %250 = sbr.rel (0) target = $region21
    $region20: #{retina_clip_forward.5} parent=1 // pred_region
      %251 = dma.done [#allocation4], 16
    $region21: #{retina_clip_forward.5} parent=1 // pred_fallthru
      _
    %252 = vsyncpa [#allocation4], 1

// kernel: retina_clip_forward.3
$region0: #{retina_clip_forward.3}
  #allocation0 [shape = 'u32[]', space=smem, size = 0x4, offset = 0x4, fixed_abs, tag = 'smem constant byte address 0x4 - core index']
  #allocation1 [shape = 'u32[144,128]{1,0:T(1,128)}', space=vmem, size = 0x12000, scoped, tag = 'internal scratch']
  %s0 = inlined_call_operand.vmem [shape: f32[16,192], index: 0, kind: input, shape index: {}]
  %s1 = inlined_call_operand.vmem [shape: f32[192,32], index: 1, kind: input, shape index: {}]
  %s2 = inlined_call_operand.vmem [shape: f32[16,32], index: 2, kind: input, shape index: {}]
  %s3 = inlined_call_operand.vmem [shape: f32[32,96], index: 3, kind: input, shape index: {}]
  %s4 = inlined_call_operand.vmem [shape: f32[1,96], index: 4, kind: input, shape index: {}]
  %s5 = inlined_call_operand.vmem [shape: f32[32,32], index: 5, kind: input, shape index: {}]
  %s6 = inlined_call_operand.vmem [shape: f32[1,32], index: 6, kind: input, shape index: {}]
  %s7 = inlined_call_operand.vmem [shape: f32[1,32], index: 7, kind: input, shape index: {}]
  %s8 = inlined_call_operand.vmem [shape: f32[1,32], index: 8, kind: input, shape index: {}]
  %s9 = inlined_call_operand.vmem [shape: f32[32,64], index: 9, kind: input, shape index: {}]
  %s10 = inlined_call_operand.vmem [shape: f32[1,64], index: 10, kind: input, shape index: {}]
  %s11 = inlined_call_operand.vmem [shape: f32[64,32], index: 11, kind: input, shape index: {}]
  %s12 = inlined_call_operand.vmem [shape: f32[1,32], index: 12, kind: input, shape index: {}]
  %s13 = inlined_call_operand.vmem [shape: f32[1,32], index: 13, kind: input, shape index: {}]
  %s14 = inlined_call_operand.vmem [shape: f32[1,32], index: 14, kind: input, shape index: {}]
  %s15 = inlined_call_operand.vmem [shape: f32[1,32], index: 15, kind: input, shape index: {}]
  %s16 = inlined_call_operand.vmem [shape: f32[1,32], index: 16, kind: input, shape index: {}]
  %s17 = inlined_call_operand.vmem [shape: f32[32,32], index: 17, kind: input, shape index: {}]
  %s18 = inlined_call_operand.vmem [shape: f32[1,32], index: 18, kind: input, shape index: {}]
  %s19 = inlined_call_operand.vmem [shape: f32[2,32], index: 19, kind: output, shape index: {}]
  %s20 = sld [smem:[#allocation0]]
  $region86: #{retina_clip_forward.3} parent=0
    _
  %s22 = ssub.s32 1, %s20
  %s23 = scalar_select 0, %s22, %s20
  // Predicated region
  $region2: #{retina_clip_forward.3} parent=0 // pred_check
    _
  $region3: #{retina_clip_forward.3} parent=0 // pred_check_branch
    %25 = sbr.rel (0) target = $region5
  $region4: #{retina_clip_forward.3} parent=0 // pred_region
    _
  $region5: #{retina_clip_forward.3} parent=0 // pred_fallthru
    _
  // Predicated region
  $region6: #{retina_clip_forward.3} parent=0 // pred_check
    _
  $region7: #{retina_clip_forward.3} parent=0 // pred_check_branch
    %27 = sbr.rel (0) target = $region9
  $region8: #{retina_clip_forward.3} parent=0 // pred_region
    _
  $region9: #{retina_clip_forward.3} parent=0 // pred_fallthru
    _
  // Predicated region
  $region10: #{retina_clip_forward.3} parent=0 // pred_check
    _
  $region11: #{retina_clip_forward.3} parent=0 // pred_check_branch
    %29 = sbr.rel (0) target = $region13
  $region12: #{retina_clip_forward.3} parent=0 // pred_region
    _
  $region13: #{retina_clip_forward.3} parent=0 // pred_fallthru
    _
  // Predicated region
  $region14: #{retina_clip_forward.3} parent=0 // pred_check
    _
  $region15: #{retina_clip_forward.3} parent=0 // pred_check_branch
    %31 = sbr.rel (0) target = $region17
  $region16: #{retina_clip_forward.3} parent=0 // pred_region
    _
  $region17: #{retina_clip_forward.3} parent=0 // pred_fallthru
    _
  // Predicated region
  $region18: #{retina_clip_forward.3} parent=0 // pred_check
    _
  $region19: #{retina_clip_forward.3} parent=0 // pred_check_branch
    %33 = sbr.rel (0) target = $region21
  $region20: #{retina_clip_forward.3} parent=0 // pred_region
    _
  $region21: #{retina_clip_forward.3} parent=0 // pred_fallthru
    _
  // Predicated region
  $region22: #{retina_clip_forward.3} parent=0 // pred_check
    _
  $region23: #{retina_clip_forward.3} parent=0 // pred_check_branch
    %35 = sbr.rel (0) target = $region25
  $region24: #{retina_clip_forward.3} parent=0 // pred_region
    _
  $region25: #{retina_clip_forward.3} parent=0 // pred_fallthru
    _
  // Predicated region
  $region26: #{retina_clip_forward.3} parent=0 // pred_check
    _
  $region27: #{retina_clip_forward.3} parent=0 // pred_check_branch
    %37 = sbr.rel (0) target = $region29
  $region28: #{retina_clip_forward.3} parent=0 // pred_region
    _
  $region29: #{retina_clip_forward.3} parent=0 // pred_fallthru
    _
  // Predicated region
  $region30: #{retina_clip_forward.3} parent=0 // pred_check
    _
  $region31: #{retina_clip_forward.3} parent=0 // pred_check_branch
    %39 = sbr.rel (0) target = $region33
  $region32: #{retina_clip_forward.3} parent=0 // pred_region
    _
  $region33: #{retina_clip_forward.3} parent=0 // pred_fallthru
    _
  // Predicated region
  $region34: #{retina_clip_forward.3} parent=0 // pred_check
    _
  $region35: #{retina_clip_forward.3} parent=0 // pred_check_branch
    %41 = sbr.rel (0) target = $region37
  $region36: #{retina_clip_forward.3} parent=0 // pred_region
    _
  $region37: #{retina_clip_forward.3} parent=0 // pred_fallthru
    _
  // Predicated region
  $region38: #{retina_clip_forward.3} parent=0 // pred_check
    _
  $region39: #{retina_clip_forward.3} parent=0 // pred_check_branch
    %43 = sbr.rel (0) target = $region41
  $region40: #{retina_clip_forward.3} parent=0 // pred_region
    _
  $region41: #{retina_clip_forward.3} parent=0 // pred_fallthru
    _
  // Predicated region
  $region42: #{retina_clip_forward.3} parent=0 // pred_check
    _
  $region43: #{retina_clip_forward.3} parent=0 // pred_check_branch
    %45 = sbr.rel (0) target = $region45
  $region44: #{retina_clip_forward.3} parent=0 // pred_region
    _
  $region45: #{retina_clip_forward.3} parent=0 // pred_fallthru
    _
  // Predicated region
  $region46: #{retina_clip_forward.3} parent=0 // pred_check
    _
  $region47: #{retina_clip_forward.3} parent=0 // pred_check_branch
    %47 = sbr.rel (0) target = $region49
  $region48: #{retina_clip_forward.3} parent=0 // pred_region
    _
  $region49: #{retina_clip_forward.3} parent=0 // pred_fallthru
    _
  // Predicated region
  $region50: #{retina_clip_forward.3} parent=0 // pred_check
    _
  $region51: #{retina_clip_forward.3} parent=0 // pred_check_branch
    %49 = sbr.rel (0) target = $region53
  $region52: #{retina_clip_forward.3} parent=0 // pred_region
    _
  $region53: #{retina_clip_forward.3} parent=0 // pred_fallthru
    _
  // Predicated region
  $region54: #{retina_clip_forward.3} parent=0 // pred_check
    _
  $region55: #{retina_clip_forward.3} parent=0 // pred_check_branch
    %51 = sbr.rel (0) target = $region57
  $region56: #{retina_clip_forward.3} parent=0 // pred_region
    _
  $region57: #{retina_clip_forward.3} parent=0 // pred_fallthru
    _
  // Predicated region
  $region58: #{retina_clip_forward.3} parent=0 // pred_check
    _
  $region59: #{retina_clip_forward.3} parent=0 // pred_check_branch
    %53 = sbr.rel (0) target = $region61
  $region60: #{retina_clip_forward.3} parent=0 // pred_region
    _
  $region61: #{retina_clip_forward.3} parent=0 // pred_fallthru
    _
  // Predicated region
  $region62: #{retina_clip_forward.3} parent=0 // pred_check
    _
  $region63: #{retina_clip_forward.3} parent=0 // pred_check_branch
    %55 = sbr.rel (0) target = $region65
  $region64: #{retina_clip_forward.3} parent=0 // pred_region
    _
  $region65: #{retina_clip_forward.3} parent=0 // pred_fallthru
    _
  // Predicated region
  $region66: #{retina_clip_forward.3} parent=0 // pred_check
    _
  $region67: #{retina_clip_forward.3} parent=0 // pred_check_branch
    %57 = sbr.rel (0) target = $region69
  $region68: #{retina_clip_forward.3} parent=0 // pred_region
    _
  $region69: #{retina_clip_forward.3} parent=0 // pred_fallthru
    _
  // Predicated region
  $region70: #{retina_clip_forward.3} parent=0 // pred_check
    _
  $region71: #{retina_clip_forward.3} parent=0 // pred_check_branch
    %59 = sbr.rel (0) target = $region73
  $region72: #{retina_clip_forward.3} parent=0 // pred_region
    _
  $region73: #{retina_clip_forward.3} parent=0 // pred_fallthru
    _
  // Predicated region
  $region74: #{retina_clip_forward.3} parent=0 // pred_check
    _
  $region75: #{retina_clip_forward.3} parent=0 // pred_check_branch
    %61 = sbr.rel (0) target = $region77
  $region76: #{retina_clip_forward.3} parent=0 // pred_region
    _
  $region77: #{retina_clip_forward.3} parent=0 // pred_fallthru
    _
  %v62 = vld [vmem:[%s0] sm:$0xff]
  %v63 = vld [vmem:[%s0 + $0x8] sm:$0xff]
  %v64 = vld [vmem:[%s0 + $0x10] sm:$0xff]
  %v65 = vld [vmem:[%s0 + $0x18] sm:$0xff]
  %v66 = vld [vmem:[%s1] sm:$0xff]
  %v67 = vld [vmem:[%s1 + $0x8] sm:$0xff]
  %v68 = vld [vmem:[%s1 + $0x10] sm:$0xff]
  %v69 = vld [vmem:[%s1 + $0x18] sm:$0xff]
  %v70 = vld [vmem:[%s1 + $0x20] sm:$0xff]
  %v71 = vld [vmem:[%s1 + $0x28] sm:$0xff]
  %v72 = vld [vmem:[%s1 + $0x30] sm:$0xff]
  %v73 = vld [vmem:[%s1 + $0x38] sm:$0xff]
  %v74 = vld [vmem:[%s1 + $0x40] sm:$0xff]
  %v75 = vld [vmem:[%s1 + $0x48] sm:$0xff]
  %v76 = vld [vmem:[%s1 + $0x50] sm:$0xff]
  %v77 = vld [vmem:[%s1 + $0x58] sm:$0xff]
  %v78 = vld [vmem:[%s1 + $0x60] sm:$0xff]
  %v79 = vld [vmem:[%s1 + $0x68] sm:$0xff]
  %v80 = vld [vmem:[%s1 + $0x70] sm:$0xff]
  %v81 = vld [vmem:[%s1 + $0x78] sm:$0xff]
  %v82 = vld [vmem:[%s1 + $0x80] sm:$0xff]
  %v83 = vld [vmem:[%s1 + $0x88] sm:$0xff]
  %v84 = vld [vmem:[%s1 + $0x90] sm:$0xff]
  %v85 = vld [vmem:[%s1 + $0x98] sm:$0xff]
  %v86 = vld [vmem:[%s1 + $0xa0] sm:$0xff]
  %v87 = vld [vmem:[%s1 + $0xa8] sm:$0xff]
  %v88 = vld [vmem:[%s1 + $0xb0] sm:$0xff]
  %v89 = vld [vmem:[%s1 + $0xb8] sm:$0xff]
  %v90 = vld [vmem:[%s2] sm:$0xff]
  %v91 = vld [vmem:[%s2 + $0x8] sm:$0xff]
  %vm92 = vcmask 523264
  %v94 = vsel %vm92, %v63, 0
  %v97 = vsel %vm92, %v65, 0
  %99 = vmatprep.subr.mxu0 0.0
  %100 = vmatpush1.msra.mxu0 %v66
  %101 = vmatprep.subr.mxu0 0.0
  %102 = vmatpush1.msra.mxu0 %v67
  %103 = vmatprep.subr.mxu0 0.0
  %104 = vmatpush1.msra.mxu0 %v68
  %105 = vmatprep.subr.mxu0 0.0
  %106 = vmatpush1.msra.mxu0 %v69
  %107 = vmatprep.subr.mxu0 0.0
  %108 = vmatpush1.msra.mxu0 %v70
  %109 = vmatprep.subr.mxu0 0.0
  %110 = vmatpush1.msra.mxu0 %v71
  %111 = vmatprep.subr.mxu0 0.0
  %112 = vmatpush1.msra.mxu0 %v72
  %113 = vmatprep.subr.mxu0 0.0
  %114 = vmatpush1.msra.mxu0 %v73
  %115 = vmatprep.subr.mxu0 0.0
  %116 = vmatpush1.msra.mxu0 %v74
  %117 = vmatprep.subr.mxu0 0.0
  %118 = vmatpush1.msra.mxu0 %v75
  %119 = vmatprep.subr.mxu0 0.0
  %120 = vmatpush1.msra.mxu0 %v76
  %121 = vmatprep.subr.mxu0 0.0
  %122 = vmatpush1.msra.mxu0 %v77
  %123 = vmatprep.subr.mxu0 0.0
  %124 = vmatpush1.msra.mxu0 %v78
  %125 = vmatprep.subr.mxu0 0.0
  %126 = vmatpush1.msra.mxu0 %v79
  %127 = vmatprep.subr.mxu0 0.0
  %128 = vmatpush1.msra.mxu0 %v80
  %129 = vmatprep.subr.mxu0 0.0
  %130 = vmatpush1.msra.mxu0 %v81
  %131 = vmatprep.subr.mxu0 0.0
  %132 = vmatpush1.msra.mxu0 %v82
  %133 = vmatprep.subr.mxu0 0.0
  %134 = vmatpush1.msra.mxu0 %v83
  %135 = vmatprep.subr.mxu0 0.0
  %136 = vmatpush1.msra.mxu0 %v84
  %137 = vmatprep.subr.mxu0 0.0
  %138 = vmatpush1.msra.mxu0 %v85
  %139 = vmatprep.subr.mxu0 0.0
  %140 = vmatpush1.msra.mxu0 %v86
  %141 = vmatprep.subr.mxu0 0.0
  %142 = vmatpush1.msra.mxu0 %v87
  %143 = vmatprep.subr.mxu0 0.0
  %144 = vmatpush1.msra.mxu0 %v88
  %145 = vmatprep.subr.mxu0 0.0
  %146 = vmatpush1.msra.mxu0 %v89
  %147 = vmatprep.subr.mxu0 0.0
  %148 = vmatpush1.msra.mxu0 0.0
  %149 = vmatprep.subr.mxu0 0.0
  %150 = vmatpush1.msra.mxu0 0.0
  %151 = vmatprep.subr.mxu0 0.0
  %152 = vmatpush1.msra.mxu0 0.0
  %153 = vmatprep.subr.mxu0 0.0
  %154 = vmatpush1.msra.mxu0 0.0
  %155 = vmatprep.subr.mxu0 0.0
  %156 = vmatpush1.msra.mxu0 0.0
  %157 = vmatprep.subr.mxu0 0.0
  %158 = vmatpush1.msra.mxu0 0.0
  %159 = vmatprep.subr.mxu0 0.0
  %160 = vmatpush1.msra.mxu0 0.0
  %161 = vmatprep.subr.mxu0 0.0
  %162 = vmatpush1.msra.mxu0 0.0
  %163 = vmatprep.mubr.f32.mxu0 %v94
  %164 = vmatmul.mubr.f32.gmra.mrb[0].mxu0 %v62
  %v165 = vpop.f32.mrb[0].mxu0
  %v166 = vadd.f32 %v90, %v165
  %v167 = vpop.f32.mrb[0].mxu0
  %168 = vmatprep.mubr.f32.mxu0 %v97
  %169 = vmatmul.mubr.f32.gmra.mrb[0].mxu0 %v64
  %v170 = vpop.f32.mrb[0].mxu0
  %v171 = vadd.f32 %v91, %v170
  %v172 = vpop.f32.mrb[0].mxu0
  %173 = vdwg.mxu0
  %v174 = vlaneseq
  %v175 = vand.u32 %v174, 127
  %vm176 = vcmp.lt.s32.totalorder %v175, 5
  %v177 = vsel %vm176, 0.0, -1e+09
  %v178 = vld [vmem:[%s3] sm:$0xff]
  %v179 = vld [vmem:[%s3 + $0x8] sm:$0xff]
  %v180 = vld [vmem:[%s3 + $0x10] sm:$0xff]
  %v181 = vld [vmem:[%s3 + $0x18] sm:$0xff]
  %v182 = vld [vmem:[%s4] sm:$0x1]
  %v183 = vld [vmem:[%s5] sm:$0xff]
  %v184 = vld [vmem:[%s5 + $0x8] sm:$0xff]
  %v185 = vld [vmem:[%s5 + $0x10] sm:$0xff]
  %v186 = vld [vmem:[%s5 + $0x18] sm:$0xff]
  %v187 = vld [vmem:[%s6] sm:$0x1]
  %v188 = vld [vmem:[%s7] sm:$0x1]
  %v189 = vld [vmem:[%s8] sm:$0x1]
  %v190 = vld [vmem:[%s9] sm:$0xff]
  %v191 = vld [vmem:[%s9 + $0x8] sm:$0xff]
  %v192 = vld [vmem:[%s9 + $0x10] sm:$0xff]
  %v193 = vld [vmem:[%s9 + $0x18] sm:$0xff]
  %v194 = vld [vmem:[%s10] sm:$0x1]
  %v195 = vld [vmem:[%s11] sm:$0xff]
  %v196 = vld [vmem:[%s11 + $0x8] sm:$0xff]
  %v197 = vld [vmem:[%s11 + $0x10] sm:$0xff]
  %v198 = vld [vmem:[%s11 + $0x18] sm:$0xff]
  %v199 = vld [vmem:[%s11 + $0x20] sm:$0xff]
  %v200 = vld [vmem:[%s11 + $0x28] sm:$0xff]
  %v201 = vld [vmem:[%s11 + $0x30] sm:$0xff]
  %v202 = vld [vmem:[%s11 + $0x38] sm:$0xff]
  %v203 = vld [vmem:[%s12] sm:$0x1]
  %v204 = vld [vmem:[%s13] sm:$0x1]
  %v205 = vld [vmem:[%s14] sm:$0x1]
  %v207 = vlaneseq
  %v208 = vshrl.u32 %v207, 7
  %v209 = vsub.s32 0, %v208
  %v210 = vrot.slane %v182, %v209
  %vm212 = vcmask 261120
  %v214 = vsel %vm212, %v166, 0
  %v217 = vsel %vm212, %v171, 0
  %219 = vmatprep.subr.mxu0 0.0
  %220 = vmatpush1.msra.mxu0 %v178
  %221 = vmatprep.subr.mxu0 0.0
  %222 = vmatpush1.msra.mxu0 %v179
  %223 = vmatprep.subr.mxu0 0.0
  %224 = vmatpush1.msra.mxu0 %v180
  %225 = vmatprep.subr.mxu0 0.0
  %226 = vmatpush1.msra.mxu0 %v181
  %227 = vmatprep.subr.mxu0 0.0
  %228 = vmatpush1.msra.mxu0 0.0
  %229 = vmatprep.subr.mxu0 0.0
  %230 = vmatpush1.msra.mxu0 0.0
  %231 = vmatprep.subr.mxu0 0.0
  %232 = vmatpush1.msra.mxu0 0.0
  %233 = vmatprep.subr.mxu0 0.0
  %234 = vmatpush1.msra.mxu0 0.0
  %235 = vmatprep.subr.mxu0 0.0
  %236 = vmatpush1.msra.mxu0 0.0
  %237 = vmatprep.subr.mxu0 0.0
  %238 = vmatpush1.msra.mxu0 0.0
  %239 = vmatprep.subr.mxu0 0.0
  %240 = vmatpush1.msra.mxu0 0.0
  %241 = vmatprep.subr.mxu0 0.0
  %242 = vmatpush1.msra.mxu0 0.0
  %243 = vmatprep.subr.mxu0 0.0
  %244 = vmatpush1.msra.mxu0 0.0
  %245 = vmatprep.subr.mxu0 0.0
  %246 = vmatpush1.msra.mxu0 0.0
  %247 = vmatprep.subr.mxu0 0.0
  %248 = vmatpush1.msra.mxu0 0.0
  %249 = vmatprep.subr.mxu0 0.0
  %250 = vmatpush1.msra.mxu0 0.0
  %251 = vmatprep.subr.mxu0 0.0
  %252 = vmatpush1.msra.mxu0 0.0
  %253 = vmatprep.subr.mxu0 0.0
  %254 = vmatpush1.msra.mxu0 0.0
  %255 = vmatprep.subr.mxu0 0.0
  %256 = vmatpush1.msra.mxu0 0.0
  %257 = vmatprep.subr.mxu0 0.0
  %258 = vmatpush1.msra.mxu0 0.0
  %259 = vmatprep.subr.mxu0 0.0
  %260 = vmatpush1.msra.mxu0 0.0
  %261 = vmatprep.subr.mxu0 0.0
  %262 = vmatpush1.msra.mxu0 0.0
  %263 = vmatprep.subr.mxu0 0.0
  %264 = vmatpush1.msra.mxu0 0.0
  %265 = vmatprep.subr.mxu0 0.0
  %266 = vmatpush1.msra.mxu0 0.0
  %267 = vmatprep.subr.mxu0 0.0
  %268 = vmatpush1.msra.mxu0 0.0
  %269 = vmatprep.subr.mxu0 0.0
  %270 = vmatpush1.msra.mxu0 0.0
  %271 = vmatprep.subr.mxu0 0.0
  %272 = vmatpush1.msra.mxu0 0.0
  %273 = vmatprep.subr.mxu0 0.0
  %274 = vmatpush1.msra.mxu0 0.0
  %275 = vmatprep.subr.mxu0 0.0
  %276 = vmatpush1.msra.mxu0 0.0
  %277 = vmatprep.subr.mxu0 0.0
  %278 = vmatpush1.msra.mxu0 0.0
  %279 = vmatprep.subr.mxu0 0.0
  %280 = vmatpush1.msra.mxu0 0.0
  %281 = vmatprep.subr.mxu0 0.0
  %282 = vmatpush1.msra.mxu0 0.0
  %283 = vmatprep.mubr.f32.mxu0 0.0
  %284 = vmatmul.mubr.f32.gmra.mrb[0].mxu0 %v214
  %v285 = vpop.f32.mrb[0].mxu0
  %v286 = vadd.f32 %v210, %v285
  %v287 = vpop.f32.mrb[0].mxu0
  %288 = vmatprep.mubr.f32.mxu0 0.0
  %289 = vmatmul.mubr.f32.gmra.mrb[0].mxu0 %v217
  %v290 = vpop.f32.mrb[0].mxu0
  %v291 = vadd.f32 %v210, %v290
  %v292 = vpop.f32.mrb[0].mxu0
  %293 = vdwg.mxu0
  %295 = vrot.lane.b32.xlu0 %v286, 96
  %v296 = vpop.permute.xlu0 %295
  %vm297 = vcmask 130048
  %v298 = vsel %vm297, %v286, 0
  %v300 = vsel %vm297, %v296, 0
  %302 = vmatprep.subr.mxu0 0.0
  %303 = vmatpush1.xpose.msra.mxu0 %v300
  %304 = vmatprep.subr.mxu0 0.0
  %305 = vmatpush1.xpose.msra.mxu0 0.0
  %306 = vmatprep.subr.mxu0 0.0
  %307 = vmatpush1.xpose.msra.mxu0 0.0
  %308 = vmatprep.subr.mxu0 0.0
  %309 = vmatpush1.xpose.msra.mxu0 0.0
  %310 = vmatprep.subr.mxu0 0.0
  %311 = vmatpush1.xpose.msra.mxu0 0.0
  %312 = vmatprep.subr.mxu0 0.0
  %313 = vmatpush1.xpose.msra.mxu0 0.0
  %314 = vmatprep.subr.mxu0 0.0
  %315 = vmatpush1.xpose.msra.mxu0 0.0
  %316 = vmatprep.subr.mxu0 0.0
  %317 = vmatpush1.xpose.msra.mxu0 0.0
  %318 = vmatprep.subr.mxu0 0.0
  %319 = vmatpush1.xpose.msra.mxu0 0.0
  %320 = vmatprep.subr.mxu0 0.0
  %321 = vmatpush1.xpose.msra.mxu0 0.0
  %322 = vmatprep.subr.mxu0 0.0
  %323 = vmatpush1.xpose.msra.mxu0 0.0
  %324 = vmatprep.subr.mxu0 0.0
  %325 = vmatpush1.xpose.msra.mxu0 0.0
  %326 = vmatprep.subr.mxu0 0.0
  %327 = vmatpush1.xpose.msra.mxu0 0.0
  %328 = vmatprep.subr.mxu0 0.0
  %329 = vmatpush1.xpose.msra.mxu0 0.0
  %330 = vmatprep.subr.mxu0 0.0
  %331 = vmatpush1.xpose.msra.mxu0 0.0
  %332 = vmatprep.subr.mxu0 0.0
  %333 = vmatpush1.xpose.msra.mxu0 0.0
  %334 = vmatprep.subr.mxu0 0.0
  %335 = vmatpush1.xpose.msra.mxu0 0.0
  %336 = vmatprep.subr.mxu0 0.0
  %337 = vmatpush1.xpose.msra.mxu0 0.0
  %338 = vmatprep.subr.mxu0 0.0
  %339 = vmatpush1.xpose.msra.mxu0 0.0
  %340 = vmatprep.subr.mxu0 0.0
  %341 = vmatpush1.xpose.msra.mxu0 0.0
  %342 = vmatprep.subr.mxu0 0.0
  %343 = vmatpush1.xpose.msra.mxu0 0.0
  %344 = vmatprep.subr.mxu0 0.0
  %345 = vmatpush1.xpose.msra.mxu0 0.0
  %346 = vmatprep.subr.mxu0 0.0
  %347 = vmatpush1.xpose.msra.mxu0 0.0
  %348 = vmatprep.subr.mxu0 0.0
  %349 = vmatpush1.xpose.msra.mxu0 0.0
  %350 = vmatprep.subr.mxu0 0.0
  %351 = vmatpush1.xpose.msra.mxu0 0.0
  %352 = vmatprep.subr.mxu0 0.0
  %353 = vmatpush1.xpose.msra.mxu0 0.0
  %354 = vmatprep.subr.mxu0 0.0
  %355 = vmatpush1.xpose.msra.mxu0 0.0
  %356 = vmatprep.subr.mxu0 0.0
  %357 = vmatpush1.xpose.msra.mxu0 0.0
  %358 = vmatprep.subr.mxu0 0.0
  %359 = vmatpush1.xpose.msra.mxu0 0.0
  %360 = vmatprep.subr.mxu0 0.0
  %361 = vmatpush1.xpose.msra.mxu0 0.0
  %362 = vmatprep.subr.mxu0 0.0
  %363 = vmatpush1.xpose.msra.mxu0 0.0
  %364 = vmatprep.subr.mxu0 0.0
  %365 = vmatpush1.xpose.msra.mxu0 0.0
  %366 = vmatprep.mubr.f32.mxu0 0.0
  %367 = vmatmul.mubr.f32.gmra.mrb[0].mxu0 %v298
  %v368 = vpop.f32.mrb[0].mxu0
  %v369 = vadd.f32 0.0, %v368
  %v370 = vpop.f32.mrb[0].mxu0
  %371 = vdwg.mxu0
  %v372 = vmul.f32 %v369, 0.25
  %v373 = vadd.f32 %v372, %v177
  %vm374 = vcmask 64512
  %v375 = vsel %vm374, %v373, -inf
  %376 = vmax.xlane.f32.xlu0 %v375
  %v377 = vpop.xlane.xlu0 %376
  %v378 = vsub.f32 %v373, %v377
  %v379 = vmul.f32 %v378, 1.442695
  %v380 = vpow.pop %v379
  %v381 = vsel %vm374, %v380, 0.0
  %382 = vadd.xlane.f32.xlu0 %v381
  %v383 = vpop.xlane.xlu0 %382
  %v384 = vrcp.pop %v383
  %v385 = vmul.f32 %v380, %v384
  %386 = vrot.lane.b32.xlu0 %v286, 64
  %v387 = vpop.permute.xlu0 %386
  %v390 = vsel %vm374, %v385, 0
  %392 = vmatprep.subr.mxu0 0.0
  %393 = vmatpush1.msra.mxu0 %v387
  %394 = vmatprep.subr.mxu0 0.0
  %395 = vmatpush1.msra.mxu0 0.0
  %396 = vmatprep.subr.mxu0 0.0
  %397 = vmatpush1.msra.mxu0 0.0
  %398 = vmatprep.subr.mxu0 0.0
  %399 = vmatpush1.msra.mxu0 0.0
  %400 = vmatprep.subr.mxu0 0.0
  %401 = vmatpush1.msra.mxu0 0.0
  %402 = vmatprep.subr.mxu0 0.0
  %403 = vmatpush1.msra.mxu0 0.0
  %404 = vmatprep.subr.mxu0 0.0
  %405 = vmatpush1.msra.mxu0 0.0
  %406 = vmatprep.subr.mxu0 0.0
  %407 = vmatpush1.msra.mxu0 0.0
  %408 = vmatprep.subr.mxu0 0.0
  %409 = vmatpush1.msra.mxu0 0.0
  %410 = vmatprep.subr.mxu0 0.0
  %411 = vmatpush1.msra.mxu0 0.0
  %412 = vmatprep.subr.mxu0 0.0
  %413 = vmatpush1.msra.mxu0 0.0
  %414 = vmatprep.subr.mxu0 0.0
  %415 = vmatpush1.msra.mxu0 0.0
  %416 = vmatprep.subr.mxu0 0.0
  %417 = vmatpush1.msra.mxu0 0.0
  %418 = vmatprep.subr.mxu0 0.0
  %419 = vmatpush1.msra.mxu0 0.0
  %420 = vmatprep.subr.mxu0 0.0
  %421 = vmatpush1.msra.mxu0 0.0
  %422 = vmatprep.subr.mxu0 0.0
  %423 = vmatpush1.msra.mxu0 0.0
  %424 = vmatprep.subr.mxu0 0.0
  %425 = vmatpush1.msra.mxu0 0.0
  %426 = vmatprep.subr.mxu0 0.0
  %427 = vmatpush1.msra.mxu0 0.0
  %428 = vmatprep.subr.mxu0 0.0
  %429 = vmatpush1.msra.mxu0 0.0
  %430 = vmatprep.subr.mxu0 0.0
  %431 = vmatpush1.msra.mxu0 0.0
  %432 = vmatprep.subr.mxu0 0.0
  %433 = vmatpush1.msra.mxu0 0.0
  %434 = vmatprep.subr.mxu0 0.0
  %435 = vmatpush1.msra.mxu0 0.0
  %436 = vmatprep.subr.mxu0 0.0
  %437 = vmatpush1.msra.mxu0 0.0
  %438 = vmatprep.subr.mxu0 0.0
  %439 = vmatpush1.msra.mxu0 0.0
  %440 = vmatprep.subr.mxu0 0.0
  %441 = vmatpush1.msra.mxu0 0.0
  %442 = vmatprep.subr.mxu0 0.0
  %443 = vmatpush1.msra.mxu0 0.0
  %444 = vmatprep.subr.mxu0 0.0
  %445 = vmatpush1.msra.mxu0 0.0
  %446 = vmatprep.subr.mxu0 0.0
  %447 = vmatpush1.msra.mxu0 0.0
  %448 = vmatprep.subr.mxu0 0.0
  %449 = vmatpush1.msra.mxu0 0.0
  %450 = vmatprep.subr.mxu0 0.0
  %451 = vmatpush1.msra.mxu0 0.0
  %452 = vmatprep.subr.mxu0 0.0
  %453 = vmatpush1.msra.mxu0 0.0
  %454 = vmatprep.subr.mxu0 0.0
  %455 = vmatpush1.msra.mxu0 0.0
  %456 = vmatprep.mubr.f32.mxu0 0.0
  %457 = vmatmul.mubr.f32.gmra.mrb[0].mxu0 %v390
  %v458 = vpop.f32.mrb[0].mxu0
  %v459 = vadd.f32 0.0, %v458
  %v460 = vpop.f32.mrb[0].mxu0
  %461 = vdwg.mxu0
  %462 = vrot.lane.b32.xlu0 %v286, 112
  %v463 = vpop.permute.xlu0 %462
  %464 = vrot.lane.b32.xlu0 %v286, 80
  %v465 = vpop.permute.xlu0 %464
  %v466 = vsel %vm297, %v463, 0
  %v468 = vsel %vm297, %v465, 0
  %470 = vmatprep.subr.mxu0 0.0
  %471 = vmatpush1.xpose.msra.mxu0 %v468
  %472 = vmatprep.subr.mxu0 0.0
  %473 = vmatpush1.xpose.msra.mxu0 0.0
  %474 = vmatprep.subr.mxu0 0.0
  %475 = vmatpush1.xpose.msra.mxu0 0.0
  %476 = vmatprep.subr.mxu0 0.0
  %477 = vmatpush1.xpose.msra.mxu0 0.0
  %478 = vmatprep.subr.mxu0 0.0
  %479 = vmatpush1.xpose.msra.mxu0 0.0
  %480 = vmatprep.subr.mxu0 0.0
  %481 = vmatpush1.xpose.msra.mxu0 0.0
  %482 = vmatprep.subr.mxu0 0.0
  %483 = vmatpush1.xpose.msra.mxu0 0.0
  %484 = vmatprep.subr.mxu0 0.0
  %485 = vmatpush1.xpose.msra.mxu0 0.0
  %486 = vmatprep.subr.mxu0 0.0
  %487 = vmatpush1.xpose.msra.mxu0 0.0
  %488 = vmatprep.subr.mxu0 0.0
  %489 = vmatpush1.xpose.msra.mxu0 0.0
  %490 = vmatprep.subr.mxu0 0.0
  %491 = vmatpush1.xpose.msra.mxu0 0.0
  %492 = vmatprep.subr.mxu0 0.0
  %493 = vmatpush1.xpose.msra.mxu0 0.0
  %494 = vmatprep.subr.mxu0 0.0
  %495 = vmatpush1.xpose.msra.mxu0 0.0
  %496 = vmatprep.subr.mxu0 0.0
  %497 = vmatpush1.xpose.msra.mxu0 0.0
  %498 = vmatprep.subr.mxu0 0.0
  %499 = vmatpush1.xpose.msra.mxu0 0.0
  %500 = vmatprep.subr.mxu0 0.0
  %501 = vmatpush1.xpose.msra.mxu0 0.0
  %502 = vmatprep.subr.mxu0 0.0
  %503 = vmatpush1.xpose.msra.mxu0 0.0
  %504 = vmatprep.subr.mxu0 0.0
  %505 = vmatpush1.xpose.msra.mxu0 0.0
  %506 = vmatprep.subr.mxu0 0.0
  %507 = vmatpush1.xpose.msra.mxu0 0.0
  %508 = vmatprep.subr.mxu0 0.0
  %509 = vmatpush1.xpose.msra.mxu0 0.0
  %510 = vmatprep.subr.mxu0 0.0
  %511 = vmatpush1.xpose.msra.mxu0 0.0
  %512 = vmatprep.subr.mxu0 0.0
  %513 = vmatpush1.xpose.msra.mxu0 0.0
  %514 = vmatprep.subr.mxu0 0.0
  %515 = vmatpush1.xpose.msra.mxu0 0.0
  %516 = vmatprep.subr.mxu0 0.0
  %517 = vmatpush1.xpose.msra.mxu0 0.0
  %518 = vmatprep.subr.mxu0 0.0
  %519 = vmatpush1.xpose.msra.mxu0 0.0
  %520 = vmatprep.subr.mxu0 0.0
  %521 = vmatpush1.xpose.msra.mxu0 0.0
  %522 = vmatprep.subr.mxu0 0.0
  %523 = vmatpush1.xpose.msra.mxu0 0.0
  %524 = vmatprep.subr.mxu0 0.0
  %525 = vmatpush1.xpose.msra.mxu0 0.0
  %526 = vmatprep.subr.mxu0 0.0
  %527 = vmatpush1.xpose.msra.mxu0 0.0
  %528 = vmatprep.subr.mxu0 0.0
  %529 = vmatpush1.xpose.msra.mxu0 0.0
  %530 = vmatprep.subr.mxu0 0.0
  %531 = vmatpush1.xpose.msra.mxu0 0.0
  %532 = vmatprep.subr.mxu0 0.0
  %533 = vmatpush1.xpose.msra.mxu0 0.0
  %534 = vmatprep.mubr.f32.mxu0 0.0
  %535 = vmatmul.mubr.f32.gmra.mrb[0].mxu0 %v466
  %v536 = vpop.f32.mrb[0].mxu0
  %v537 = vadd.f32 0.0, %v536
  %v538 = vpop.f32.mrb[0].mxu0
  %539 = vdwg.mxu0
  %v540 = vmul.f32 %v537, 0.25
  %v541 = vadd.f32 %v540, %v177
  %v542 = vsel %vm374, %v541, -inf
  %543 = vmax.xlane.f32.xlu0 %v542
  %v544 = vpop.xlane.xlu0 %543
  %v545 = vsub.f32 %v541, %v544
  %v546 = vmul.f32 %v545, 1.442695
  %v547 = vpow.pop %v546
  %v548 = vsel %vm374, %v547, 0.0
  %549 = vadd.xlane.f32.xlu0 %v548
  %v550 = vpop.xlane.xlu0 %549
  %v551 = vrcp.pop %v550
  %v552 = vmul.f32 %v547, %v551
  %553 = vrot.lane.b32.xlu0 %v286, 48
  %v554 = vpop.permute.xlu0 %553
  %v557 = vsel %vm374, %v552, 0
  %559 = vmatprep.subr.mxu0 0.0
  %560 = vmatpush1.msra.mxu0 %v554
  %561 = vmatprep.subr.mxu0 0.0
  %562 = vmatpush1.msra.mxu0 0.0
  %563 = vmatprep.subr.mxu0 0.0
  %564 = vmatpush1.msra.mxu0 0.0
  %565 = vmatprep.subr.mxu0 0.0
  %566 = vmatpush1.msra.mxu0 0.0
  %567 = vmatprep.subr.mxu0 0.0
  %568 = vmatpush1.msra.mxu0 0.0
  %569 = vmatprep.subr.mxu0 0.0
  %570 = vmatpush1.msra.mxu0 0.0
  %571 = vmatprep.subr.mxu0 0.0
  %572 = vmatpush1.msra.mxu0 0.0
  %573 = vmatprep.subr.mxu0 0.0
  %574 = vmatpush1.msra.mxu0 0.0
  %575 = vmatprep.subr.mxu0 0.0
  %576 = vmatpush1.msra.mxu0 0.0
  %577 = vmatprep.subr.mxu0 0.0
  %578 = vmatpush1.msra.mxu0 0.0
  %579 = vmatprep.subr.mxu0 0.0
  %580 = vmatpush1.msra.mxu0 0.0
  %581 = vmatprep.subr.mxu0 0.0
  %582 = vmatpush1.msra.mxu0 0.0
  %583 = vmatprep.subr.mxu0 0.0
  %584 = vmatpush1.msra.mxu0 0.0
  %585 = vmatprep.subr.mxu0 0.0
  %586 = vmatpush1.msra.mxu0 0.0
  %587 = vmatprep.subr.mxu0 0.0
  %588 = vmatpush1.msra.mxu0 0.0
  %589 = vmatprep.subr.mxu0 0.0
  %590 = vmatpush1.msra.mxu0 0.0
  %591 = vmatprep.subr.mxu0 0.0
  %592 = vmatpush1.msra.mxu0 0.0
  %593 = vmatprep.subr.mxu0 0.0
  %594 = vmatpush1.msra.mxu0 0.0
  %595 = vmatprep.subr.mxu0 0.0
  %596 = vmatpush1.msra.mxu0 0.0
  %597 = vmatprep.subr.mxu0 0.0
  %598 = vmatpush1.msra.mxu0 0.0
  %599 = vmatprep.subr.mxu0 0.0
  %600 = vmatpush1.msra.mxu0 0.0
  %601 = vmatprep.subr.mxu0 0.0
  %602 = vmatpush1.msra.mxu0 0.0
  %603 = vmatprep.subr.mxu0 0.0
  %604 = vmatpush1.msra.mxu0 0.0
  %605 = vmatprep.subr.mxu0 0.0
  %606 = vmatpush1.msra.mxu0 0.0
  %607 = vmatprep.subr.mxu0 0.0
  %608 = vmatpush1.msra.mxu0 0.0
  %609 = vmatprep.subr.mxu0 0.0
  %610 = vmatpush1.msra.mxu0 0.0
  %611 = vmatprep.subr.mxu0 0.0
  %612 = vmatpush1.msra.mxu0 0.0
  %613 = vmatprep.subr.mxu0 0.0
  %614 = vmatpush1.msra.mxu0 0.0
  %615 = vmatprep.subr.mxu0 0.0
  %616 = vmatpush1.msra.mxu0 0.0
  %617 = vmatprep.subr.mxu0 0.0
  %618 = vmatpush1.msra.mxu0 0.0
  %619 = vmatprep.subr.mxu0 0.0
  %620 = vmatpush1.msra.mxu0 0.0
  %621 = vmatprep.subr.mxu0 0.0
  %622 = vmatpush1.msra.mxu0 0.0
  %623 = vmatprep.mubr.f32.mxu0 0.0
  %624 = vmatmul.mubr.f32.gmra.mrb[0].mxu0 %v557
  %v625 = vpop.f32.mrb[0].mxu0
  %v626 = vadd.f32 0.0, %v625
  %v627 = vpop.f32.mrb[0].mxu0
  %628 = vdwg.mxu0
  %630 = vrot.lane.b32.xlu0 %v626, 16
  %v631 = vpop.permute.xlu0 %630
  %v633 = vsel %vm297, %v459, %v631
  %635 = vrot.lane.b32.xlu0 %v291, 96
  %v636 = vpop.permute.xlu0 %635
  %v637 = vsel %vm297, %v291, 0
  %v639 = vsel %vm297, %v636, 0
  %641 = vmatprep.subr.mxu0 0.0
  %642 = vmatpush1.xpose.msra.mxu0 %v639
  %643 = vmatprep.subr.mxu0 0.0
  %644 = vmatpush1.xpose.msra.mxu0 0.0
  %645 = vmatprep.subr.mxu0 0.0
  %646 = vmatpush1.xpose.msra.mxu0 0.0
  %647 = vmatprep.subr.mxu0 0.0
  %648 = vmatpush1.xpose.msra.mxu0 0.0
  %649 = vmatprep.subr.mxu0 0.0
  %650 = vmatpush1.xpose.msra.mxu0 0.0
  %651 = vmatprep.subr.mxu0 0.0
  %652 = vmatpush1.xpose.msra.mxu0 0.0
  %653 = vmatprep.subr.mxu0 0.0
  %654 = vmatpush1.xpose.msra.mxu0 0.0
  %655 = vmatprep.subr.mxu0 0.0
  %656 = vmatpush1.xpose.msra.mxu0 0.0
  %657 = vmatprep.subr.mxu0 0.0
  %658 = vmatpush1.xpose.msra.mxu0 0.0
  %659 = vmatprep.subr.mxu0 0.0
  %660 = vmatpush1.xpose.msra.mxu0 0.0
  %661 = vmatprep.subr.mxu0 0.0
  %662 = vmatpush1.xpose.msra.mxu0 0.0
  %663 = vmatprep.subr.mxu0 0.0
  %664 = vmatpush1.xpose.msra.mxu0 0.0
  %665 = vmatprep.subr.mxu0 0.0
  %666 = vmatpush1.xpose.msra.mxu0 0.0
  %667 = vmatprep.subr.mxu0 0.0
  %668 = vmatpush1.xpose.msra.mxu0 0.0
  %669 = vmatprep.subr.mxu0 0.0
  %670 = vmatpush1.xpose.msra.mxu0 0.0
  %671 = vmatprep.subr.mxu0 0.0
  %672 = vmatpush1.xpose.msra.mxu0 0.0
  %673 = vmatprep.subr.mxu0 0.0
  %674 = vmatpush1.xpose.msra.mxu0 0.0
  %675 = vmatprep.subr.mxu0 0.0
  %676 = vmatpush1.xpose.msra.mxu0 0.0
  %677 = vmatprep.subr.mxu0 0.0
  %678 = vmatpush1.xpose.msra.mxu0 0.0
  %679 = vmatprep.subr.mxu0 0.0
  %680 = vmatpush1.xpose.msra.mxu0 0.0
  %681 = vmatprep.subr.mxu0 0.0
  %682 = vmatpush1.xpose.msra.mxu0 0.0
  %683 = vmatprep.subr.mxu0 0.0
  %684 = vmatpush1.xpose.msra.mxu0 0.0
  %685 = vmatprep.subr.mxu0 0.0
  %686 = vmatpush1.xpose.msra.mxu0 0.0
  %687 = vmatprep.subr.mxu0 0.0
  %688 = vmatpush1.xpose.msra.mxu0 0.0
  %689 = vmatprep.subr.mxu0 0.0
  %690 = vmatpush1.xpose.msra.mxu0 0.0
  %691 = vmatprep.subr.mxu0 0.0
  %692 = vmatpush1.xpose.msra.mxu0 0.0
  %693 = vmatprep.subr.mxu0 0.0
  %694 = vmatpush1.xpose.msra.mxu0 0.0
  %695 = vmatprep.subr.mxu0 0.0
  %696 = vmatpush1.xpose.msra.mxu0 0.0
  %697 = vmatprep.subr.mxu0 0.0
  %698 = vmatpush1.xpose.msra.mxu0 0.0
  %699 = vmatprep.subr.mxu0 0.0
  %700 = vmatpush1.xpose.msra.mxu0 0.0
  %701 = vmatprep.subr.mxu0 0.0
  %702 = vmatpush1.xpose.msra.mxu0 0.0
  %703 = vmatprep.subr.mxu0 0.0
  %704 = vmatpush1.xpose.msra.mxu0 0.0
  %705 = vmatprep.mubr.f32.mxu0 0.0
  %706 = vmatmul.mubr.f32.gmra.mrb[0].mxu0 %v637
  %v707 = vpop.f32.mrb[0].mxu0
  %v708 = vadd.f32 0.0, %v707
  %v709 = vpop.f32.mrb[0].mxu0
  %710 = vdwg.mxu0
  %v711 = vmul.f32 %v708, 0.25
  %v712 = vadd.f32 %v711, %v177
  %v713 = vsel %vm374, %v712, -inf
  %714 = vmax.xlane.f32.xlu0 %v713
  %v715 = vpop.xlane.xlu0 %714
  %v716 = vsub.f32 %v712, %v715
  %v717 = vmul.f32 %v716, 1.442695
  %v718 = vpow.pop %v717
  %v719 = vsel %vm374, %v718, 0.0
  %720 = vadd.xlane.f32.xlu0 %v719
  %v721 = vpop.xlane.xlu0 %720
  %v722 = vrcp.pop %v721
  %v723 = vmul.f32 %v718, %v722
  %724 = vrot.lane.b32.xlu0 %v291, 64
  %v725 = vpop.permute.xlu0 %724
  %v728 = vsel %vm374, %v723, 0
  %730 = vmatprep.subr.mxu0 0.0
  %731 = vmatpush1.msra.mxu0 %v725
  %732 = vmatprep.subr.mxu0 0.0
  %733 = vmatpush1.msra.mxu0 0.0
  %734 = vmatprep.subr.mxu0 0.0
  %735 = vmatpush1.msra.mxu0 0.0
  %736 = vmatprep.subr.mxu0 0.0
  %737 = vmatpush1.msra.mxu0 0.0
  %738 = vmatprep.subr.mxu0 0.0
  %739 = vmatpush1.msra.mxu0 0.0
  %740 = vmatprep.subr.mxu0 0.0
  %741 = vmatpush1.msra.mxu0 0.0
  %742 = vmatprep.subr.mxu0 0.0
  %743 = vmatpush1.msra.mxu0 0.0
  %744 = vmatprep.subr.mxu0 0.0
  %745 = vmatpush1.msra.mxu0 0.0
  %746 = vmatprep.subr.mxu0 0.0
  %747 = vmatpush1.msra.mxu0 0.0
  %748 = vmatprep.subr.mxu0 0.0
  %749 = vmatpush1.msra.mxu0 0.0
  %750 = vmatprep.subr.mxu0 0.0
  %751 = vmatpush1.msra.mxu0 0.0
  %752 = vmatprep.subr.mxu0 0.0
  %753 = vmatpush1.msra.mxu0 0.0
  %754 = vmatprep.subr.mxu0 0.0
  %755 = vmatpush1.msra.mxu0 0.0
  %756 = vmatprep.subr.mxu0 0.0
  %757 = vmatpush1.msra.mxu0 0.0
  %758 = vmatprep.subr.mxu0 0.0
  %759 = vmatpush1.msra.mxu0 0.0
  %760 = vmatprep.subr.mxu0 0.0
  %761 = vmatpush1.msra.mxu0 0.0
  %762 = vmatprep.subr.mxu0 0.0
  %763 = vmatpush1.msra.mxu0 0.0
  %764 = vmatprep.subr.mxu0 0.0
  %765 = vmatpush1.msra.mxu0 0.0
  %766 = vmatprep.subr.mxu0 0.0
  %767 = vmatpush1.msra.mxu0 0.0
  %768 = vmatprep.subr.mxu0 0.0
  %769 = vmatpush1.msra.mxu0 0.0
  %770 = vmatprep.subr.mxu0 0.0
  %771 = vmatpush1.msra.mxu0 0.0
  %772 = vmatprep.subr.mxu0 0.0
  %773 = vmatpush1.msra.mxu0 0.0
  %774 = vmatprep.subr.mxu0 0.0
  %775 = vmatpush1.msra.mxu0 0.0
  %776 = vmatprep.subr.mxu0 0.0
  %777 = vmatpush1.msra.mxu0 0.0
  %778 = vmatprep.subr.mxu0 0.0
  %779 = vmatpush1.msra.mxu0 0.0
  %780 = vmatprep.subr.mxu0 0.0
  %781 = vmatpush1.msra.mxu0 0.0
  %782 = vmatprep.subr.mxu0 0.0
  %783 = vmatpush1.msra.mxu0 0.0
  %784 = vmatprep.subr.mxu0 0.0
  %785 = vmatpush1.msra.mxu0 0.0
  %786 = vmatprep.subr.mxu0 0.0
  %787 = vmatpush1.msra.mxu0 0.0
  %788 = vmatprep.subr.mxu0 0.0
  %789 = vmatpush1.msra.mxu0 0.0
  %790 = vmatprep.subr.mxu0 0.0
  %791 = vmatpush1.msra.mxu0 0.0
  %792 = vmatprep.subr.mxu0 0.0
  %793 = vmatpush1.msra.mxu0 0.0
  %794 = vmatprep.mubr.f32.mxu0 0.0
  %795 = vmatmul.mubr.f32.gmra.mrb[0].mxu0 %v728
  %v796 = vpop.f32.mrb[0].mxu0
  %v797 = vadd.f32 0.0, %v796
  %v798 = vpop.f32.mrb[0].mxu0
  %799 = vdwg.mxu0
  %800 = vrot.lane.b32.xlu0 %v291, 112
  %v801 = vpop.permute.xlu0 %800
  %802 = vrot.lane.b32.xlu0 %v291, 80
  %v803 = vpop.permute.xlu0 %802
  %v804 = vsel %vm297, %v801, 0
  %v806 = vsel %vm297, %v803, 0
  %808 = vmatprep.subr.mxu0 0.0
  %809 = vmatpush1.xpose.msra.mxu0 %v806
  %810 = vmatprep.subr.mxu0 0.0
  %811 = vmatpush1.xpose.msra.mxu0 0.0
  %812 = vmatprep.subr.mxu0 0.0
  %813 = vmatpush1.xpose.msra.mxu0 0.0
  %814 = vmatprep.subr.mxu0 0.0
  %815 = vmatpush1.xpose.msra.mxu0 0.0
  %816 = vmatprep.subr.mxu0 0.0
  %817 = vmatpush1.xpose.msra.mxu0 0.0
  %818 = vmatprep.subr.mxu0 0.0
  %819 = vmatpush1.xpose.msra.mxu0 0.0
  %820 = vmatprep.subr.mxu0 0.0
  %821 = vmatpush1.xpose.msra.mxu0 0.0
  %822 = vmatprep.subr.mxu0 0.0
  %823 = vmatpush1.xpose.msra.mxu0 0.0
  %824 = vmatprep.subr.mxu0 0.0
  %825 = vmatpush1.xpose.msra.mxu0 0.0
  %826 = vmatprep.subr.mxu0 0.0
  %827 = vmatpush1.xpose.msra.mxu0 0.0
  %828 = vmatprep.subr.mxu0 0.0
  %829 = vmatpush1.xpose.msra.mxu0 0.0
  %830 = vmatprep.subr.mxu0 0.0
  %831 = vmatpush1.xpose.msra.mxu0 0.0
  %832 = vmatprep.subr.mxu0 0.0
  %833 = vmatpush1.xpose.msra.mxu0 0.0
  %834 = vmatprep.subr.mxu0 0.0
  %835 = vmatpush1.xpose.msra.mxu0 0.0
  %836 = vmatprep.subr.mxu0 0.0
  %837 = vmatpush1.xpose.msra.mxu0 0.0
  %838 = vmatprep.subr.mxu0 0.0
  %839 = vmatpush1.xpose.msra.mxu0 0.0
  %840 = vmatprep.subr.mxu0 0.0
  %841 = vmatpush1.xpose.msra.mxu0 0.0
  %842 = vmatprep.subr.mxu0 0.0
  %843 = vmatpush1.xpose.msra.mxu0 0.0
  %844 = vmatprep.subr.mxu0 0.0
  %845 = vmatpush1.xpose.msra.mxu0 0.0
  %846 = vmatprep.subr.mxu0 0.0
  %847 = vmatpush1.xpose.msra.mxu0 0.0
  %848 = vmatprep.subr.mxu0 0.0
  %849 = vmatpush1.xpose.msra.mxu0 0.0
  %850 = vmatprep.subr.mxu0 0.0
  %851 = vmatpush1.xpose.msra.mxu0 0.0
  %852 = vmatprep.subr.mxu0 0.0
  %853 = vmatpush1.xpose.msra.mxu0 0.0
  %854 = vmatprep.subr.mxu0 0.0
  %855 = vmatpush1.xpose.msra.mxu0 0.0
  %856 = vmatprep.subr.mxu0 0.0
  %857 = vmatpush1.xpose.msra.mxu0 0.0
  %858 = vmatprep.subr.mxu0 0.0
  %859 = vmatpush1.xpose.msra.mxu0 0.0
  %860 = vmatprep.subr.mxu0 0.0
  %861 = vmatpush1.xpose.msra.mxu0 0.0
  %862 = vmatprep.subr.mxu0 0.0
  %863 = vmatpush1.xpose.msra.mxu0 0.0
  %864 = vmatprep.subr.mxu0 0.0
  %865 = vmatpush1.xpose.msra.mxu0 0.0
  %866 = vmatprep.subr.mxu0 0.0
  %867 = vmatpush1.xpose.msra.mxu0 0.0
  %868 = vmatprep.subr.mxu0 0.0
  %869 = vmatpush1.xpose.msra.mxu0 0.0
  %870 = vmatprep.subr.mxu0 0.0
  %871 = vmatpush1.xpose.msra.mxu0 0.0
  %872 = vmatprep.mubr.f32.mxu0 0.0
  %873 = vmatmul.mubr.f32.gmra.mrb[0].mxu0 %v804
  %v874 = vpop.f32.mrb[0].mxu0
  %v875 = vadd.f32 0.0, %v874
  %v876 = vpop.f32.mrb[0].mxu0
  %877 = vdwg.mxu0
  %v878 = vmul.f32 %v875, 0.25
  %v879 = vadd.f32 %v878, %v177
  %v880 = vsel %vm374, %v879, -inf
  %881 = vmax.xlane.f32.xlu0 %v880
  %v882 = vpop.xlane.xlu0 %881
  %v883 = vsub.f32 %v879, %v882
  %v884 = vmul.f32 %v883, 1.442695
  %v885 = vpow.pop %v884
  %v886 = vsel %vm374, %v885, 0.0
  %887 = vadd.xlane.f32.xlu0 %v886
  %v888 = vpop.xlane.xlu0 %887
  %v889 = vrcp.pop %v888
  %v890 = vmul.f32 %v885, %v889
  %891 = vrot.lane.b32.xlu0 %v291, 48
  %v892 = vpop.permute.xlu0 %891
  %v895 = vsel %vm374, %v890, 0
  %897 = vmatprep.subr.mxu0 0.0
  %898 = vmatpush1.msra.mxu0 %v892
  %899 = vmatprep.subr.mxu0 0.0
  %900 = vmatpush1.msra.mxu0 0.0
  %901 = vmatprep.subr.mxu0 0.0
  %902 = vmatpush1.msra.mxu0 0.0
  %903 = vmatprep.subr.mxu0 0.0
  %904 = vmatpush1.msra.mxu0 0.0
  %905 = vmatprep.subr.mxu0 0.0
  %906 = vmatpush1.msra.mxu0 0.0
  %907 = vmatprep.subr.mxu0 0.0
  %908 = vmatpush1.msra.mxu0 0.0
  %909 = vmatprep.subr.mxu0 0.0
  %910 = vmatpush1.msra.mxu0 0.0
  %911 = vmatprep.subr.mxu0 0.0
  %912 = vmatpush1.msra.mxu0 0.0
  %913 = vmatprep.subr.mxu0 0.0
  %914 = vmatpush1.msra.mxu0 0.0
  %915 = vmatprep.subr.mxu0 0.0
  %916 = vmatpush1.msra.mxu0 0.0
  %917 = vmatprep.subr.mxu0 0.0
  %918 = vmatpush1.msra.mxu0 0.0
  %919 = vmatprep.subr.mxu0 0.0
  %920 = vmatpush1.msra.mxu0 0.0
  %921 = vmatprep.subr.mxu0 0.0
  %922 = vmatpush1.msra.mxu0 0.0
  %923 = vmatprep.subr.mxu0 0.0
  %924 = vmatpush1.msra.mxu0 0.0
  %925 = vmatprep.subr.mxu0 0.0
  %926 = vmatpush1.msra.mxu0 0.0
  %927 = vmatprep.subr.mxu0 0.0
  %928 = vmatpush1.msra.mxu0 0.0
  %929 = vmatprep.subr.mxu0 0.0
  %930 = vmatpush1.msra.mxu0 0.0
  %931 = vmatprep.subr.mxu0 0.0
  %932 = vmatpush1.msra.mxu0 0.0
  %933 = vmatprep.subr.mxu0 0.0
  %934 = vmatpush1.msra.mxu0 0.0
  %935 = vmatprep.subr.mxu0 0.0
  %936 = vmatpush1.msra.mxu0 0.0
  %937 = vmatprep.subr.mxu0 0.0
  %938 = vmatpush1.msra.mxu0 0.0
  %939 = vmatprep.subr.mxu0 0.0
  %940 = vmatpush1.msra.mxu0 0.0
  %941 = vmatprep.subr.mxu0 0.0
  %942 = vmatpush1.msra.mxu0 0.0
  %943 = vmatprep.subr.mxu0 0.0
  %944 = vmatpush1.msra.mxu0 0.0
  %945 = vmatprep.subr.mxu0 0.0
  %946 = vmatpush1.msra.mxu0 0.0
  %947 = vmatprep.subr.mxu0 0.0
  %948 = vmatpush1.msra.mxu0 0.0
  %949 = vmatprep.subr.mxu0 0.0
  %950 = vmatpush1.msra.mxu0 0.0
  %951 = vmatprep.subr.mxu0 0.0
  %952 = vmatpush1.msra.mxu0 0.0
  %953 = vmatprep.subr.mxu0 0.0
  %954 = vmatpush1.msra.mxu0 0.0
  %955 = vmatprep.subr.mxu0 0.0
  %956 = vmatpush1.msra.mxu0 0.0
  %957 = vmatprep.subr.mxu0 0.0
  %958 = vmatpush1.msra.mxu0 0.0
  %959 = vmatprep.subr.mxu0 0.0
  %960 = vmatpush1.msra.mxu0 0.0
  %961 = vmatprep.mubr.f32.mxu0 0.0
  %962 = vmatmul.mubr.f32.gmra.mrb[0].mxu0 %v895
  %v963 = vpop.f32.mrb[0].mxu0
  %v964 = vadd.f32 0.0, %v963
  %v965 = vpop.f32.mrb[0].mxu0
  %966 = vdwg.mxu0
  %968 = vrot.lane.b32.xlu0 %v964, 16
  %v969 = vpop.permute.xlu0 %968
  %v971 = vsel %vm297, %v797, %v969
  %v973 = vlaneseq
  %v974 = vshrl.u32 %v973, 7
  %v975 = vsub.s32 0, %v974
  %v976 = vrot.slane %v187, %v975
  %v979 = vsel %vm212, %v633, 0
  %v982 = vsel %vm212, %v971, 0
  %984 = vmatprep.subr.mxu0 0.0
  %985 = vmatpush1.msra.mxu0 %v183
  %986 = vmatprep.subr.mxu0 0.0
  %987 = vmatpush1.msra.mxu0 %v184
  %988 = vmatprep.subr.mxu0 0.0
  %989 = vmatpush1.msra.mxu0 %v185
  %990 = vmatprep.subr.mxu0 0.0
  %991 = vmatpush1.msra.mxu0 %v186
  %992 = vmatprep.subr.mxu0 0.0
  %993 = vmatpush1.msra.mxu0 0.0
  %994 = vmatprep.subr.mxu0 0.0
  %995 = vmatpush1.msra.mxu0 0.0
  %996 = vmatprep.subr.mxu0 0.0
  %997 = vmatpush1.msra.mxu0 0.0
  %998 = vmatprep.subr.mxu0 0.0
  %999 = vmatpush1.msra.mxu0 0.0
  %1000 = vmatprep.subr.mxu0 0.0
  %1001 = vmatpush1.msra.mxu0 0.0
  %1002 = vmatprep.subr.mxu0 0.0
  %1003 = vmatpush1.msra.mxu0 0.0
  %1004 = vmatprep.subr.mxu0 0.0
  %1005 = vmatpush1.msra.mxu0 0.0
  %1006 = vmatprep.subr.mxu0 0.0
  %1007 = vmatpush1.msra.mxu0 0.0
  %1008 = vmatprep.subr.mxu0 0.0
  %1009 = vmatpush1.msra.mxu0 0.0
  %1010 = vmatprep.subr.mxu0 0.0
  %1011 = vmatpush1.msra.mxu0 0.0
  %1012 = vmatprep.subr.mxu0 0.0
  %1013 = vmatpush1.msra.mxu0 0.0
  %1014 = vmatprep.subr.mxu0 0.0
  %1015 = vmatpush1.msra.mxu0 0.0
  %1016 = vmatprep.subr.mxu0 0.0
  %1017 = vmatpush1.msra.mxu0 0.0
  %1018 = vmatprep.subr.mxu0 0.0
  %1019 = vmatpush1.msra.mxu0 0.0
  %1020 = vmatprep.subr.mxu0 0.0
  %1021 = vmatpush1.msra.mxu0 0.0
  %1022 = vmatprep.subr.mxu0 0.0
  %1023 = vmatpush1.msra.mxu0 0.0
  %1024 = vmatprep.subr.mxu0 0.0
  %1025 = vmatpush1.msra.mxu0 0.0
  %1026 = vmatprep.subr.mxu0 0.0
  %1027 = vmatpush1.msra.mxu0 0.0
  %1028 = vmatprep.subr.mxu0 0.0
  %1029 = vmatpush1.msra.mxu0 0.0
  %1030 = vmatprep.subr.mxu0 0.0
  %1031 = vmatpush1.msra.mxu0 0.0
  %1032 = vmatprep.subr.mxu0 0.0
  %1033 = vmatpush1.msra.mxu0 0.0
  %1034 = vmatprep.subr.mxu0 0.0
  %1035 = vmatpush1.msra.mxu0 0.0
  %1036 = vmatprep.subr.mxu0 0.0
  %1037 = vmatpush1.msra.mxu0 0.0
  %1038 = vmatprep.subr.mxu0 0.0
  %1039 = vmatpush1.msra.mxu0 0.0
  %1040 = vmatprep.subr.mxu0 0.0
  %1041 = vmatpush1.msra.mxu0 0.0
  %1042 = vmatprep.subr.mxu0 0.0
  %1043 = vmatpush1.msra.mxu0 0.0
  %1044 = vmatprep.subr.mxu0 0.0
  %1045 = vmatpush1.msra.mxu0 0.0
  %1046 = vmatprep.subr.mxu0 0.0
  %1047 = vmatpush1.msra.mxu0 0.0
  %1048 = vmatprep.mubr.f32.mxu0 0.0
  %1049 = vmatmul.mubr.f32.gmra.mrb[0].mxu0 %v979
  %v1050 = vpop.f32.mrb[0].mxu0
  %v1051 = vadd.f32 %v976, %v1050
  %v1052 = vpop.f32.mrb[0].mxu0
  %1053 = vmatprep.mubr.f32.mxu0 0.0
  %1054 = vmatmul.mubr.f32.gmra.mrb[0].mxu0 %v982
  %v1055 = vpop.f32.mrb[0].mxu0
  %v1056 = vadd.f32 %v976, %v1055
  %v1057 = vpop.f32.mrb[0].mxu0
  %1058 = vdwg.mxu0
  %v1059 = vadd.f32 %v166, %v1051
  %v1060 = vadd.f32 %v171, %v1056
  %v1061 = vsel %vm212, %v1059, 0.0
  %1062 = vadd.xlane.f32.xlu0 %v1061
  %v1063 = vpop.xlane.xlu0 %1062
  %v1064 = vsel %vm212, %v1060, 0.0
  %1065 = vadd.xlane.f32.xlu0 %v1064
  %v1066 = vpop.xlane.xlu0 %1065
  %v1067 = vrcp.pop 32.0
  %v1068 = vmul.f32 %v1063, %v1067
  %v1069 = vmul.f32 %v1066, %v1067
  %v1070 = vsub.f32 %v1059, %v1068
  %v1071 = vsub.f32 %v1060, %v1069
  %v1072 = vmul.f32 %v1070, %v1070
  %v1073 = vmul.f32 %v1071, %v1071
  %v1074 = vsel %vm212, %v1072, 0.0
  %1075 = vadd.xlane.f32.xlu0 %v1074
  %v1076 = vpop.xlane.xlu0 %1075
  %v1077 = vsel %vm212, %v1073, 0.0
  %1078 = vadd.xlane.f32.xlu0 %v1077
  %v1079 = vpop.xlane.xlu0 %1078
  %v1080 = vmul.f32 %v1076, %v1067
  %v1081 = vmul.f32 %v1079, %v1067
  %v1082 = vadd.f32 %v1080, 1e-05
  %v1083 = vadd.f32 %v1081, 1e-05
  %v1084 = vrsqrt.pop %v1082
  %v1085 = vrsqrt.pop %v1083
  %v1086 = vmul.f32 %v1070, %v1084
  %v1087 = vmul.f32 %v1071, %v1085
  %v1089 = vlaneseq
  %v1090 = vshrl.u32 %v1089, 7
  %v1091 = vsub.s32 0, %v1090
  %v1092 = vrot.slane %v188, %v1091
  %v1094 = vmul.f32 %v1086, %v1092
  %v1095 = vmul.f32 %v1087, %v1092
  %v1097 = vlaneseq
  %v1098 = vshrl.u32 %v1097, 7
  %v1099 = vsub.s32 0, %v1098
  %v1100 = vrot.slane %v189, %v1099
  %v1102 = vadd.f32 %v1094, %v1100
  %v1103 = vadd.f32 %v1095, %v1100
  %v1105 = vlaneseq
  %v1106 = vshrl.u32 %v1105, 7
  %v1107 = vsub.s32 0, %v1106
  %v1108 = vrot.slane %v194, %v1107
  %v1111 = vsel %vm212, %v1102, 0
  %v1114 = vsel %vm212, %v1103, 0
  %1116 = vmatprep.subr.mxu0 0.0
  %1117 = vmatpush1.msra.mxu0 %v190
  %1118 = vmatprep.subr.mxu0 0.0
  %1119 = vmatpush1.msra.mxu0 %v191
  %1120 = vmatprep.subr.mxu0 0.0
  %1121 = vmatpush1.msra.mxu0 %v192
  %1122 = vmatprep.subr.mxu0 0.0
  %1123 = vmatpush1.msra.mxu0 %v193
  %1124 = vmatprep.subr.mxu0 0.0
  %1125 = vmatpush1.msra.mxu0 0.0
  %1126 = vmatprep.subr.mxu0 0.0
  %1127 = vmatpush1.msra.mxu0 0.0
  %1128 = vmatprep.subr.mxu0 0.0
  %1129 = vmatpush1.msra.mxu0 0.0
  %1130 = vmatprep.subr.mxu0 0.0
  %1131 = vmatpush1.msra.mxu0 0.0
  %1132 = vmatprep.subr.mxu0 0.0
  %1133 = vmatpush1.msra.mxu0 0.0
  %1134 = vmatprep.subr.mxu0 0.0
  %1135 = vmatpush1.msra.mxu0 0.0
  %1136 = vmatprep.subr.mxu0 0.0
  %1137 = vmatpush1.msra.mxu0 0.0
  %1138 = vmatprep.subr.mxu0 0.0
  %1139 = vmatpush1.msra.mxu0 0.0
  %1140 = vmatprep.subr.mxu0 0.0
  %1141 = vmatpush1.msra.mxu0 0.0
  %1142 = vmatprep.subr.mxu0 0.0
  %1143 = vmatpush1.msra.mxu0 0.0
  %1144 = vmatprep.subr.mxu0 0.0
  %1145 = vmatpush1.msra.mxu0 0.0
  %1146 = vmatprep.subr.mxu0 0.0
  %1147 = vmatpush1.msra.mxu0 0.0
  %1148 = vmatprep.subr.mxu0 0.0
  %1149 = vmatpush1.msra.mxu0 0.0
  %1150 = vmatprep.subr.mxu0 0.0
  %1151 = vmatpush1.msra.mxu0 0.0
  %1152 = vmatprep.subr.mxu0 0.0
  %1153 = vmatpush1.msra.mxu0 0.0
  %1154 = vmatprep.subr.mxu0 0.0
  %1155 = vmatpush1.msra.mxu0 0.0
  %1156 = vmatprep.subr.mxu0 0.0
  %1157 = vmatpush1.msra.mxu0 0.0
  %1158 = vmatprep.subr.mxu0 0.0
  %1159 = vmatpush1.msra.mxu0 0.0
  %1160 = vmatprep.subr.mxu0 0.0
  %1161 = vmatpush1.msra.mxu0 0.0
  %1162 = vmatprep.subr.mxu0 0.0
  %1163 = vmatpush1.msra.mxu0 0.0
  %1164 = vmatprep.subr.mxu0 0.0
  %1165 = vmatpush1.msra.mxu0 0.0
  %1166 = vmatprep.subr.mxu0 0.0
  %1167 = vmatpush1.msra.mxu0 0.0
  %1168 = vmatprep.subr.mxu0 0.0
  %1169 = vmatpush1.msra.mxu0 0.0
  %1170 = vmatprep.subr.mxu0 0.0
  %1171 = vmatpush1.msra.mxu0 0.0
  %1172 = vmatprep.subr.mxu0 0.0
  %1173 = vmatpush1.msra.mxu0 0.0
  %1174 = vmatprep.subr.mxu0 0.0
  %1175 = vmatpush1.msra.mxu0 0.0
  %1176 = vmatprep.subr.mxu0 0.0
  %1177 = vmatpush1.msra.mxu0 0.0
  %1178 = vmatprep.subr.mxu0 0.0
  %1179 = vmatpush1.msra.mxu0 0.0
  %1180 = vmatprep.mubr.f32.mxu0 0.0
  %1181 = vmatmul.mubr.f32.gmra.mrb[0].mxu0 %v1111
  %v1182 = vpop.f32.mrb[0].mxu0
  %v1183 = vadd.f32 %v1108, %v1182
  %v1184 = vpop.f32.mrb[0].mxu0
  %1185 = vmatprep.mubr.f32.mxu0 0.0
  %1186 = vmatmul.mubr.f32.gmra.mrb[0].mxu0 %v1114
  %v1187 = vpop.f32.mrb[0].mxu0
  %v1188 = vadd.f32 %v1108, %v1187
  %v1189 = vpop.f32.mrb[0].mxu0
  %1190 = vdwg.mxu0
  %v1191 = vmul.f32 %v1183, %v1183
  %v1192 = vmul.f32 %v1188, %v1188
  %v1193 = vmul.f32 %v1183, %v1191
  %v1194 = vmul.f32 %v1188, %v1192
  %v1195 = vmul.f32 %v1193, 0.044715
  %v1196 = vmul.f32 %v1194, 0.044715
  %v1197 = vadd.f32 %v1183, %v1195
  %v1198 = vadd.f32 %v1188, %v1196
  %v1199 = vmul.f32 %v1197, 0.7978846
  %v1200 = vmul.f32 %v1198, 0.7978846
  %v1201 = vtanh.pop %v1199
  %v1202 = vtanh.pop %v1200
  %v1203 = vadd.f32 %v1201, 1.0
  %v1204 = vadd.f32 %v1202, 1.0
  %v1205 = vmul.f32 %v1203, 0.5
  %v1206 = vmul.f32 %v1204, 0.5
  %v1207 = vmul.f32 %v1183, %v1205
  %v1208 = vmul.f32 %v1188, %v1206
  %v1210 = vlaneseq
  %v1211 = vshrl.u32 %v1210, 7
  %v1212 = vsub.s32 0, %v1211
  %v1213 = vrot.slane %v203, %v1212
  %v1216 = vsel %vm92, %v1207, 0
  %v1219 = vsel %vm92, %v1208, 0
  %1221 = vmatprep.subr.mxu0 0.0
  %1222 = vmatpush1.msra.mxu0 %v195
  %1223 = vmatprep.subr.mxu0 0.0
  %1224 = vmatpush1.msra.mxu0 %v196
  %1225 = vmatprep.subr.mxu0 0.0
  %1226 = vmatpush1.msra.mxu0 %v197
  %1227 = vmatprep.subr.mxu0 0.0
  %1228 = vmatpush1.msra.mxu0 %v198
  %1229 = vmatprep.subr.mxu0 0.0
  %1230 = vmatpush1.msra.mxu0 %v199
  %1231 = vmatprep.subr.mxu0 0.0
  %1232 = vmatpush1.msra.mxu0 %v200
  %1233 = vmatprep.subr.mxu0 0.0
  %1234 = vmatpush1.msra.mxu0 %v201
  %1235 = vmatprep.subr.mxu0 0.0
  %1236 = vmatpush1.msra.mxu0 %v202
  %1237 = vmatprep.subr.mxu0 0.0
  %1238 = vmatpush1.msra.mxu0 0.0
  %1239 = vmatprep.subr.mxu0 0.0
  %1240 = vmatpush1.msra.mxu0 0.0
  %1241 = vmatprep.subr.mxu0 0.0
  %1242 = vmatpush1.msra.mxu0 0.0
  %1243 = vmatprep.subr.mxu0 0.0
  %1244 = vmatpush1.msra.mxu0 0.0
  %1245 = vmatprep.subr.mxu0 0.0
  %1246 = vmatpush1.msra.mxu0 0.0
  %1247 = vmatprep.subr.mxu0 0.0
  %1248 = vmatpush1.msra.mxu0 0.0
  %1249 = vmatprep.subr.mxu0 0.0
  %1250 = vmatpush1.msra.mxu0 0.0
  %1251 = vmatprep.subr.mxu0 0.0
  %1252 = vmatpush1.msra.mxu0 0.0
  %1253 = vmatprep.subr.mxu0 0.0
  %1254 = vmatpush1.msra.mxu0 0.0
  %1255 = vmatprep.subr.mxu0 0.0
  %1256 = vmatpush1.msra.mxu0 0.0
  %1257 = vmatprep.subr.mxu0 0.0
  %1258 = vmatpush1.msra.mxu0 0.0
  %1259 = vmatprep.subr.mxu0 0.0
  %1260 = vmatpush1.msra.mxu0 0.0
  %1261 = vmatprep.subr.mxu0 0.0
  %1262 = vmatpush1.msra.mxu0 0.0
  %1263 = vmatprep.subr.mxu0 0.0
  %1264 = vmatpush1.msra.mxu0 0.0
  %1265 = vmatprep.subr.mxu0 0.0
  %1266 = vmatpush1.msra.mxu0 0.0
  %1267 = vmatprep.subr.mxu0 0.0
  %1268 = vmatpush1.msra.mxu0 0.0
  %1269 = vmatprep.subr.mxu0 0.0
  %1270 = vmatpush1.msra.mxu0 0.0
  %1271 = vmatprep.subr.mxu0 0.0
  %1272 = vmatpush1.msra.mxu0 0.0
  %1273 = vmatprep.subr.mxu0 0.0
  %1274 = vmatpush1.msra.mxu0 0.0
  %1275 = vmatprep.subr.mxu0 0.0
  %1276 = vmatpush1.msra.mxu0 0.0
  %1277 = vmatprep.subr.mxu0 0.0
  %1278 = vmatpush1.msra.mxu0 0.0
  %1279 = vmatprep.subr.mxu0 0.0
  %1280 = vmatpush1.msra.mxu0 0.0
  %1281 = vmatprep.subr.mxu0 0.0
  %1282 = vmatpush1.msra.mxu0 0.0
  %1283 = vmatprep.subr.mxu0 0.0
  %1284 = vmatpush1.msra.mxu0 0.0
  %1285 = vmatprep.mubr.f32.mxu0 0.0
  %1286 = vmatmul.mubr.f32.gmra.mrb[0].mxu0 %v1216
  %v1287 = vpop.f32.mrb[0].mxu0
  %v1288 = vadd.f32 %v1213, %v1287
  %v1289 = vpop.f32.mrb[0].mxu0
  %1290 = vmatprep.mubr.f32.mxu0 0.0
  %1291 = vmatmul.mubr.f32.gmra.mrb[0].mxu0 %v1219
  %v1292 = vpop.f32.mrb[0].mxu0
  %v1293 = vadd.f32 %v1213, %v1292
  %v1294 = vpop.f32.mrb[0].mxu0
  %1295 = vdwg.mxu0
  %v1296 = vadd.f32 %v1102, %v1288
  %v1297 = vadd.f32 %v1103, %v1293
  %v1298 = vsel %vm212, %v1296, 0.0
  %1299 = vadd.xlane.f32.xlu0 %v1298
  %v1300 = vpop.xlane.xlu0 %1299
  %v1301 = vsel %vm212, %v1297, 0.0
  %1302 = vadd.xlane.f32.xlu0 %v1301
  %v1303 = vpop.xlane.xlu0 %1302
  %v1304 = vmul.f32 %v1300, %v1067
  %v1305 = vmul.f32 %v1303, %v1067
  %v1306 = vsub.f32 %v1296, %v1304
  %v1307 = vsub.f32 %v1297, %v1305
  %v1308 = vmul.f32 %v1306, %v1306
  %v1309 = vmul.f32 %v1307, %v1307
  %v1310 = vsel %vm212, %v1308, 0.0
  %1311 = vadd.xlane.f32.xlu0 %v1310
  %v1312 = vpop.xlane.xlu0 %1311
  %v1313 = vsel %vm212, %v1309, 0.0
  %1314 = vadd.xlane.f32.xlu0 %v1313
  %v1315 = vpop.xlane.xlu0 %1314
  %v1316 = vmul.f32 %v1312, %v1067
  %v1317 = vmul.f32 %v1315, %v1067
  %v1318 = vadd.f32 %v1316, 1e-05
  %v1319 = vadd.f32 %v1317, 1e-05
  %v1320 = vrsqrt.pop %v1318
  %v1321 = vrsqrt.pop %v1319
  %v1322 = vmul.f32 %v1306, %v1320
  %v1323 = vmul.f32 %v1307, %v1321
  %v1325 = vlaneseq
  %v1326 = vshrl.u32 %v1325, 7
  %v1327 = vsub.s32 0, %v1326
  %v1328 = vrot.slane %v204, %v1327
  %v1330 = vmul.f32 %v1322, %v1328
  %v1331 = vmul.f32 %v1323, %v1328
  %v1333 = vlaneseq
  %v1334 = vshrl.u32 %v1333, 7
  %v1335 = vsub.s32 0, %v1334
  %v1336 = vrot.slane %v205, %v1335
  %v1338 = vadd.f32 %v1330, %v1336
  %v1339 = vadd.f32 %v1331, %v1336
  %v1340 = vlaneseq
  %v1341 = vshrl.u32 %v1340, 7
  %v1342 = vmul.u32 %v1341, 8
  %vm1343 = vcmp.eq.s32.totalorder %v175, %v1342
  %v1344 = vsel %vm1343, 1, 0
  %v1345 = vcvt.s32.f32 %v1344
  %v1347 = vsel %vm297, %v1345, 0
  %1349 = vmatprep.subr.mxu0 0.0
  %1350 = vmatpush1.msra.mxu0 %v1338
  %1351 = vmatprep.subr.mxu0 0.0
  %1352 = vmatpush1.msra.mxu0 %v1339
  %1353 = vmatprep.subr.mxu0 0.0
  %1354 = vmatpush1.msra.mxu0 0.0
  %1355 = vmatprep.subr.mxu0 0.0
  %1356 = vmatpush1.msra.mxu0 0.0
  %1357 = vmatprep.subr.mxu0 0.0
  %1358 = vmatpush1.msra.mxu0 0.0
  %1359 = vmatprep.subr.mxu0 0.0
  %1360 = vmatpush1.msra.mxu0 0.0
  %1361 = vmatprep.subr.mxu0 0.0
  %1362 = vmatpush1.msra.mxu0 0.0
  %1363 = vmatprep.subr.mxu0 0.0
  %1364 = vmatpush1.msra.mxu0 0.0
  %1365 = vmatprep.subr.mxu0 0.0
  %1366 = vmatpush1.msra.mxu0 0.0
  %1367 = vmatprep.subr.mxu0 0.0
  %1368 = vmatpush1.msra.mxu0 0.0
  %1369 = vmatprep.subr.mxu0 0.0
  %1370 = vmatpush1.msra.mxu0 0.0
  %1371 = vmatprep.subr.mxu0 0.0
  %1372 = vmatpush1.msra.mxu0 0.0
  %1373 = vmatprep.subr.mxu0 0.0
  %1374 = vmatpush1.msra.mxu0 0.0
  %1375 = vmatprep.subr.mxu0 0.0
  %1376 = vmatpush1.msra.mxu0 0.0
  %1377 = vmatprep.subr.mxu0 0.0
  %1378 = vmatpush1.msra.mxu0 0.0
  %1379 = vmatprep.subr.mxu0 0.0
  %1380 = vmatpush1.msra.mxu0 0.0
  %1381 = vmatprep.subr.mxu0 0.0
  %1382 = vmatpush1.msra.mxu0 0.0
  %1383 = vmatprep.subr.mxu0 0.0
  %1384 = vmatpush1.msra.mxu0 0.0
  %1385 = vmatprep.subr.mxu0 0.0
  %1386 = vmatpush1.msra.mxu0 0.0
  %1387 = vmatprep.subr.mxu0 0.0
  %1388 = vmatpush1.msra.mxu0 0.0
  %1389 = vmatprep.subr.mxu0 0.0
  %1390 = vmatpush1.msra.mxu0 0.0
  %1391 = vmatprep.subr.mxu0 0.0
  %1392 = vmatpush1.msra.mxu0 0.0
  %1393 = vmatprep.subr.mxu0 0.0
  %1394 = vmatpush1.msra.mxu0 0.0
  %1395 = vmatprep.subr.mxu0 0.0
  %1396 = vmatpush1.msra.mxu0 0.0
  %1397 = vmatprep.subr.mxu0 0.0
  %1398 = vmatpush1.msra.mxu0 0.0
  %1399 = vmatprep.subr.mxu0 0.0
  %1400 = vmatpush1.msra.mxu0 0.0
  %1401 = vmatprep.subr.mxu0 0.0
  %1402 = vmatpush1.msra.mxu0 0.0
  %1403 = vmatprep.subr.mxu0 0.0
  %1404 = vmatpush1.msra.mxu0 0.0
  %1405 = vmatprep.subr.mxu0 0.0
  %1406 = vmatpush1.msra.mxu0 0.0
  %1407 = vmatprep.subr.mxu0 0.0
  %1408 = vmatpush1.msra.mxu0 0.0
  %1409 = vmatprep.subr.mxu0 0.0
  %1410 = vmatpush1.msra.mxu0 0.0
  %1411 = vmatprep.subr.mxu0 0.0
  %1412 = vmatpush1.msra.mxu0 0.0
  %1413 = vmatprep.mubr.f32.mxu0 0.0
  %1414 = vmatmul.mubr.f32.gmra.mrb[0].mxu0 %v1347
  %v1415 = vpop.f32.mrb[0].mxu0
  %v1416 = vadd.f32 0.0, %v1415
  %v1417 = vpop.f32.mrb[0].mxu0
  %1418 = vdwg.mxu0
  %v1419 = vld [vmem:[%s15] sm:$0x1]
  %v1420 = vld [vmem:[%s16] sm:$0x1]
  %vm1421 = vcmask 254976
  %v1422 = vsel %vm1421, %v1416, 0.0
  %1423 = vadd.xlane.f32.xlu0 %v1422
  %v1424 = vpop.xlane.xlu0 %1423
  %v1425 = vmul.f32 %v1424, %v1067
  %v1426 = vsub.f32 %v1416, %v1425
  %v1427 = vmul.f32 %v1426, %v1426
  %v1428 = vsel %vm1421, %v1427, 0.0
  %1429 = vadd.xlane.f32.xlu0 %v1428
  %v1430 = vpop.xlane.xlu0 %1429
  %v1431 = vmul.f32 %v1430, %v1067
  %v1432 = vadd.f32 %v1431, 1e-05
  %v1433 = vrsqrt.pop %v1432
  %v1434 = vmul.f32 %v1426, %v1433
  %v1436 = vlaneseq
  %v1437 = vshrl.u32 %v1436, 7
  %v1438 = vsub.s32 0, %v1437
  %v1439 = vrot.slane %v1419, %v1438
  %v1441 = vmul.f32 %v1434, %v1439
  %v1443 = vlaneseq
  %v1444 = vshrl.u32 %v1443, 7
  %v1445 = vsub.s32 0, %v1444
  %v1446 = vrot.slane %v1420, %v1445
  %v1448 = vadd.f32 %v1441, %v1446
  %v1449 = vld [vmem:[%s17] sm:$0xff]
  %v1450 = vld [vmem:[%s17 + $0x8] sm:$0xff]
  %v1451 = vld [vmem:[%s17 + $0x10] sm:$0xff]
  %v1452 = vld [vmem:[%s17 + $0x18] sm:$0xff]
  %v1453 = vld [vmem:[%s18] sm:$0x1]
  %v1455 = vlaneseq
  %v1456 = vshrl.u32 %v1455, 7
  %v1457 = vsub.s32 0, %v1456
  %v1458 = vrot.slane %v1453, %v1457
  %v1461 = vsel %vm212, %v1448, 0
  %1463 = vmatprep.subr.mxu0 0.0
  %1464 = vmatpush1.msra.mxu0 %v1449
  %1465 = vmatprep.subr.mxu0 0.0
  %1466 = vmatpush1.msra.mxu0 %v1450
  %1467 = vmatprep.subr.mxu0 0.0
  %1468 = vmatpush1.msra.mxu0 %v1451
  %1469 = vmatprep.subr.mxu0 0.0
  %1470 = vmatpush1.msra.mxu0 %v1452
  %1471 = vmatprep.subr.mxu0 0.0
  %1472 = vmatpush1.msra.mxu0 0.0
  %1473 = vmatprep.subr.mxu0 0.0
  %1474 = vmatpush1.msra.mxu0 0.0
  %1475 = vmatprep.subr.mxu0 0.0
  %1476 = vmatpush1.msra.mxu0 0.0
  %1477 = vmatprep.subr.mxu0 0.0
  %1478 = vmatpush1.msra.mxu0 0.0
  %1479 = vmatprep.subr.mxu0 0.0
  %1480 = vmatpush1.msra.mxu0 0.0
  %1481 = vmatprep.subr.mxu0 0.0
  %1482 = vmatpush1.msra.mxu0 0.0
  %1483 = vmatprep.subr.mxu0 0.0
  %1484 = vmatpush1.msra.mxu0 0.0
  %1485 = vmatprep.subr.mxu0 0.0
  %1486 = vmatpush1.msra.mxu0 0.0
  %1487 = vmatprep.subr.mxu0 0.0
  %1488 = vmatpush1.msra.mxu0 0.0
  %1489 = vmatprep.subr.mxu0 0.0
  %1490 = vmatpush1.msra.mxu0 0.0
  %1491 = vmatprep.subr.mxu0 0.0
  %1492 = vmatpush1.msra.mxu0 0.0
  %1493 = vmatprep.subr.mxu0 0.0
  %1494 = vmatpush1.msra.mxu0 0.0
  %1495 = vmatprep.subr.mxu0 0.0
  %1496 = vmatpush1.msra.mxu0 0.0
  %1497 = vmatprep.subr.mxu0 0.0
  %1498 = vmatpush1.msra.mxu0 0.0
  %1499 = vmatprep.subr.mxu0 0.0
  %1500 = vmatpush1.msra.mxu0 0.0
  %1501 = vmatprep.subr.mxu0 0.0
  %1502 = vmatpush1.msra.mxu0 0.0
  %1503 = vmatprep.subr.mxu0 0.0
  %1504 = vmatpush1.msra.mxu0 0.0
  %1505 = vmatprep.subr.mxu0 0.0
  %1506 = vmatpush1.msra.mxu0 0.0
  %1507 = vmatprep.subr.mxu0 0.0
  %1508 = vmatpush1.msra.mxu0 0.0
  %1509 = vmatprep.subr.mxu0 0.0
  %1510 = vmatpush1.msra.mxu0 0.0
  %1511 = vmatprep.subr.mxu0 0.0
  %1512 = vmatpush1.msra.mxu0 0.0
  %1513 = vmatprep.subr.mxu0 0.0
  %1514 = vmatpush1.msra.mxu0 0.0
  %1515 = vmatprep.subr.mxu0 0.0
  %1516 = vmatpush1.msra.mxu0 0.0
  %1517 = vmatprep.subr.mxu0 0.0
  %1518 = vmatpush1.msra.mxu0 0.0
  %1519 = vmatprep.subr.mxu0 0.0
  %1520 = vmatpush1.msra.mxu0 0.0
  %1521 = vmatprep.subr.mxu0 0.0
  %1522 = vmatpush1.msra.mxu0 0.0
  %1523 = vmatprep.subr.mxu0 0.0
  %1524 = vmatpush1.msra.mxu0 0.0
  %1525 = vmatprep.subr.mxu0 0.0
  %1526 = vmatpush1.msra.mxu0 0.0
  %1527 = vmatprep.mubr.f32.mxu0 0.0
  %1528 = vmatmul.mubr.f32.gmra.mrb[0].mxu0 %v1461
  %v1529 = vpop.f32.mrb[0].mxu0
  %v1530 = vadd.f32 %v1458, %v1529
  %v1531 = vpop.f32.mrb[0].mxu0
  %1532 = vdwg.mxu0
  %1533 = vst.msk [vmem:[%s19] sm:$0x3] %vm1421, %v1530
  // Predicated region
  $region78: #{retina_clip_forward.3} parent=0 // pred_check
    _
  $region79: #{retina_clip_forward.3} parent=0 // pred_check_branch
    %1535 = sbr.rel (0) target = $region81
  $region80: #{retina_clip_forward.3} parent=0 // pred_region
    _
  $region81: #{retina_clip_forward.3} parent=0 // pred_fallthru
    _
  // Predicated region
  $region82: #{retina_clip_forward.3} parent=0 // pred_check
    _
  $region83: #{retina_clip_forward.3} parent=0 // pred_check_branch
    %1537 = sbr.rel (0) target = $region85
  $region84: #{retina_clip_forward.3} parent=0 // pred_region
    _
  $region85: #{retina_clip_forward.3} parent=0 // pred_fallthru
    _

// kernel: retina_clip_forward.4
$region0: #{retina_clip_forward.4}
  #allocation0 [shape = 'u32[]', space=smem, size = 0x4, offset = 0x4, fixed_abs, tag = 'smem constant byte address 0x4 - core index']
  #allocation1 [shape = 'u32[144,128]{1,0:T(1,128)}', space=vmem, size = 0x12000, scoped, tag = 'internal scratch']
  %s0 = inlined_call_operand.vmem [shape: s32[16,1], index: 0, kind: input, shape index: {}]
  %s1 = inlined_call_operand.vmem [shape: s32[16,1], index: 1, kind: input, shape index: {}]
  %s2 = inlined_call_operand.vmem [shape: f32[2,8], index: 2, kind: input, shape index: {}]
  %s3 = inlined_call_operand.vmem [shape: f32[64,32], index: 3, kind: input, shape index: {}]
  %s4 = inlined_call_operand.vmem [shape: f32[2,32], index: 4, kind: input, shape index: {}]
  %s5 = inlined_call_operand.vmem [shape: f32[16,32], index: 5, kind: input, shape index: {}]
  %s6 = inlined_call_operand.vmem [shape: f32[1,32], index: 6, kind: input, shape index: {}]
  %s7 = inlined_call_operand.vmem [shape: f32[1,32], index: 7, kind: input, shape index: {}]
  %s8 = inlined_call_operand.vmem [shape: f32[32,96], index: 8, kind: input, shape index: {}]
  %s9 = inlined_call_operand.vmem [shape: f32[1,96], index: 9, kind: input, shape index: {}]
  %s10 = inlined_call_operand.vmem [shape: f32[32,32], index: 10, kind: input, shape index: {}]
  %s11 = inlined_call_operand.vmem [shape: f32[1,32], index: 11, kind: input, shape index: {}]
  %s12 = inlined_call_operand.vmem [shape: f32[1,32], index: 12, kind: input, shape index: {}]
  %s13 = inlined_call_operand.vmem [shape: f32[1,32], index: 13, kind: input, shape index: {}]
  %s14 = inlined_call_operand.vmem [shape: f32[32,64], index: 14, kind: input, shape index: {}]
  %s15 = inlined_call_operand.vmem [shape: f32[1,64], index: 15, kind: input, shape index: {}]
  %s16 = inlined_call_operand.vmem [shape: f32[64,32], index: 16, kind: input, shape index: {}]
  %s17 = inlined_call_operand.vmem [shape: f32[1,32], index: 17, kind: input, shape index: {}]
  %s18 = inlined_call_operand.vmem [shape: f32[1,32], index: 18, kind: input, shape index: {}]
  %s19 = inlined_call_operand.vmem [shape: f32[1,32], index: 19, kind: input, shape index: {}]
  %s20 = inlined_call_operand.vmem [shape: f32[32,32], index: 20, kind: input, shape index: {}]
  %s21 = inlined_call_operand.vmem [shape: f32[1,32], index: 21, kind: input, shape index: {}]
  %s22 = inlined_call_operand.vmem [shape: f32[2,32], index: 22, kind: output, shape index: {}]
  %s23 = sld [smem:[#allocation0]]
  $region98: #{retina_clip_forward.4} parent=0
    _
  %s25 = ssub.s32 1, %s23
  %s26 = scalar_select 0, %s25, %s23
  // Predicated region
  $region2: #{retina_clip_forward.4} parent=0 // pred_check
    _
  $region3: #{retina_clip_forward.4} parent=0 // pred_check_branch
    %28 = sbr.rel (0) target = $region5
  $region4: #{retina_clip_forward.4} parent=0 // pred_region
    _
  $region5: #{retina_clip_forward.4} parent=0 // pred_fallthru
    _
  // Predicated region
  $region6: #{retina_clip_forward.4} parent=0 // pred_check
    _
  $region7: #{retina_clip_forward.4} parent=0 // pred_check_branch
    %30 = sbr.rel (0) target = $region9
  $region8: #{retina_clip_forward.4} parent=0 // pred_region
    _
  $region9: #{retina_clip_forward.4} parent=0 // pred_fallthru
    _
  // Predicated region
  $region10: #{retina_clip_forward.4} parent=0 // pred_check
    _
  $region11: #{retina_clip_forward.4} parent=0 // pred_check_branch
    %32 = sbr.rel (0) target = $region13
  $region12: #{retina_clip_forward.4} parent=0 // pred_region
    _
  $region13: #{retina_clip_forward.4} parent=0 // pred_fallthru
    _
  // Predicated region
  $region14: #{retina_clip_forward.4} parent=0 // pred_check
    _
  $region15: #{retina_clip_forward.4} parent=0 // pred_check_branch
    %34 = sbr.rel (0) target = $region17
  $region16: #{retina_clip_forward.4} parent=0 // pred_region
    _
  $region17: #{retina_clip_forward.4} parent=0 // pred_fallthru
    _
  // Predicated region
  $region18: #{retina_clip_forward.4} parent=0 // pred_check
    _
  $region19: #{retina_clip_forward.4} parent=0 // pred_check_branch
    %36 = sbr.rel (0) target = $region21
  $region20: #{retina_clip_forward.4} parent=0 // pred_region
    _
  $region21: #{retina_clip_forward.4} parent=0 // pred_fallthru
    _
  // Predicated region
  $region22: #{retina_clip_forward.4} parent=0 // pred_check
    _
  $region23: #{retina_clip_forward.4} parent=0 // pred_check_branch
    %38 = sbr.rel (0) target = $region25
  $region24: #{retina_clip_forward.4} parent=0 // pred_region
    _
  $region25: #{retina_clip_forward.4} parent=0 // pred_fallthru
    _
  // Predicated region
  $region26: #{retina_clip_forward.4} parent=0 // pred_check
    _
  $region27: #{retina_clip_forward.4} parent=0 // pred_check_branch
    %40 = sbr.rel (0) target = $region29
  $region28: #{retina_clip_forward.4} parent=0 // pred_region
    _
  $region29: #{retina_clip_forward.4} parent=0 // pred_fallthru
    _
  // Predicated region
  $region30: #{retina_clip_forward.4} parent=0 // pred_check
    _
  $region31: #{retina_clip_forward.4} parent=0 // pred_check_branch
    %42 = sbr.rel (0) target = $region33
  $region32: #{retina_clip_forward.4} parent=0 // pred_region
    _
  $region33: #{retina_clip_forward.4} parent=0 // pred_fallthru
    _
  // Predicated region
  $region34: #{retina_clip_forward.4} parent=0 // pred_check
    _
  $region35: #{retina_clip_forward.4} parent=0 // pred_check_branch
    %44 = sbr.rel (0) target = $region37
  $region36: #{retina_clip_forward.4} parent=0 // pred_region
    _
  $region37: #{retina_clip_forward.4} parent=0 // pred_fallthru
    _
  // Predicated region
  $region38: #{retina_clip_forward.4} parent=0 // pred_check
    _
  $region39: #{retina_clip_forward.4} parent=0 // pred_check_branch
    %46 = sbr.rel (0) target = $region41
  $region40: #{retina_clip_forward.4} parent=0 // pred_region
    _
  $region41: #{retina_clip_forward.4} parent=0 // pred_fallthru
    _
  // Predicated region
  $region42: #{retina_clip_forward.4} parent=0 // pred_check
    _
  $region43: #{retina_clip_forward.4} parent=0 // pred_check_branch
    %48 = sbr.rel (0) target = $region45
  $region44: #{retina_clip_forward.4} parent=0 // pred_region
    _
  $region45: #{retina_clip_forward.4} parent=0 // pred_fallthru
    _
  // Predicated region
  $region46: #{retina_clip_forward.4} parent=0 // pred_check
    _
  $region47: #{retina_clip_forward.4} parent=0 // pred_check_branch
    %50 = sbr.rel (0) target = $region49
  $region48: #{retina_clip_forward.4} parent=0 // pred_region
    _
  $region49: #{retina_clip_forward.4} parent=0 // pred_fallthru
    _
  // Predicated region
  $region50: #{retina_clip_forward.4} parent=0 // pred_check
    _
  $region51: #{retina_clip_forward.4} parent=0 // pred_check_branch
    %52 = sbr.rel (0) target = $region53
  $region52: #{retina_clip_forward.4} parent=0 // pred_region
    _
  $region53: #{retina_clip_forward.4} parent=0 // pred_fallthru
    _
  // Predicated region
  $region54: #{retina_clip_forward.4} parent=0 // pred_check
    _
  $region55: #{retina_clip_forward.4} parent=0 // pred_check_branch
    %54 = sbr.rel (0) target = $region57
  $region56: #{retina_clip_forward.4} parent=0 // pred_region
    _
  $region57: #{retina_clip_forward.4} parent=0 // pred_fallthru
    _
  // Predicated region
  $region58: #{retina_clip_forward.4} parent=0 // pred_check
    _
  $region59: #{retina_clip_forward.4} parent=0 // pred_check_branch
    %56 = sbr.rel (0) target = $region61
  $region60: #{retina_clip_forward.4} parent=0 // pred_region
    _
  $region61: #{retina_clip_forward.4} parent=0 // pred_fallthru
    _
  // Predicated region
  $region62: #{retina_clip_forward.4} parent=0 // pred_check
    _
  $region63: #{retina_clip_forward.4} parent=0 // pred_check_branch
    %58 = sbr.rel (0) target = $region65
  $region64: #{retina_clip_forward.4} parent=0 // pred_region
    _
  $region65: #{retina_clip_forward.4} parent=0 // pred_fallthru
    _
  // Predicated region
  $region66: #{retina_clip_forward.4} parent=0 // pred_check
    _
  $region67: #{retina_clip_forward.4} parent=0 // pred_check_branch
    %60 = sbr.rel (0) target = $region69
  $region68: #{retina_clip_forward.4} parent=0 // pred_region
    _
  $region69: #{retina_clip_forward.4} parent=0 // pred_fallthru
    _
  // Predicated region
  $region70: #{retina_clip_forward.4} parent=0 // pred_check
    _
  $region71: #{retina_clip_forward.4} parent=0 // pred_check_branch
    %62 = sbr.rel (0) target = $region73
  $region72: #{retina_clip_forward.4} parent=0 // pred_region
    _
  $region73: #{retina_clip_forward.4} parent=0 // pred_fallthru
    _
  // Predicated region
  $region74: #{retina_clip_forward.4} parent=0 // pred_check
    _
  $region75: #{retina_clip_forward.4} parent=0 // pred_check_branch
    %64 = sbr.rel (0) target = $region77
  $region76: #{retina_clip_forward.4} parent=0 // pred_region
    _
  $region77: #{retina_clip_forward.4} parent=0 // pred_fallthru
    _
  // Predicated region
  $region78: #{retina_clip_forward.4} parent=0 // pred_check
    _
  $region79: #{retina_clip_forward.4} parent=0 // pred_check_branch
    %66 = sbr.rel (0) target = $region81
  $region80: #{retina_clip_forward.4} parent=0 // pred_region
    _
  $region81: #{retina_clip_forward.4} parent=0 // pred_fallthru
    _
  // Predicated region
  $region82: #{retina_clip_forward.4} parent=0 // pred_check
    _
  $region83: #{retina_clip_forward.4} parent=0 // pred_check_branch
    %68 = sbr.rel (0) target = $region85
  $region84: #{retina_clip_forward.4} parent=0 // pred_region
    _
  $region85: #{retina_clip_forward.4} parent=0 // pred_fallthru
    _
  // Predicated region
  $region86: #{retina_clip_forward.4} parent=0 // pred_check
    _
  $region87: #{retina_clip_forward.4} parent=0 // pred_check_branch
    %70 = sbr.rel (0) target = $region89
  $region88: #{retina_clip_forward.4} parent=0 // pred_region
    _
  $region89: #{retina_clip_forward.4} parent=0 // pred_fallthru
    _
  %v71 = vld [vmem:[%s0] sm:$0xff]
  %v72 = vld [vmem:[%s0 + $0x8] sm:$0xff]
  %v73 = vlaneseq
  %v74 = vand.u32 %v73, 127
  %75 = vset.pattern.permute.xlu0 0
  %76 = vperm.xlu0 %75, %v71
  %v77 = vpop.permute.xlu0 %76
  %78 = vset.pattern.permute.xlu0 0
  %79 = vperm.xlu0 %78, %v72
  %v80 = vpop.permute.xlu0 %79
  %vm81 = vcmp.eq.s32.totalorder %v74, %v77
  %vm82 = vcmp.eq.s32.totalorder %v74, %v80
  %v83 = vsel %vm81, 1, 0
  %v84 = vsel %vm82, 1, 0
  %v85 = vcvt.s32.f32 %v83
  %v86 = vcvt.s32.f32 %v84
  %v87 = vld [vmem:[%s3] sm:$0xff]
  %v88 = vld [vmem:[%s3 + $0x8] sm:$0xff]
  %v89 = vld [vmem:[%s3 + $0x10] sm:$0xff]
  %v90 = vld [vmem:[%s3 + $0x18] sm:$0xff]
  %v91 = vld [vmem:[%s3 + $0x20] sm:$0xff]
  %v92 = vld [vmem:[%s3 + $0x28] sm:$0xff]
  %v93 = vld [vmem:[%s3 + $0x30] sm:$0xff]
  %v94 = vld [vmem:[%s3 + $0x38] sm:$0xff]
  %v95 = vld [vmem:[%s4] sm:$0x3]
  %v96 = vld [vmem:[%s1] sm:$0xff]
  %v97 = vld [vmem:[%s1 + $0x8] sm:$0xff]
  %vm98 = vcmp.eq.s32.totalorder %v96, 0
  %vm99 = vcmp.eq.s32.totalorder %v97, 0
  %v100 = vsel %vm98, 1, 0
  %v101 = vsel %vm99, 1, 0
  %102 = vset.pattern.permute.xlu0 0
  %103 = vperm.xlu0 %102, %v100
  %v104 = vpop.permute.xlu0 %103
  %105 = vset.pattern.permute.xlu0 0
  %106 = vperm.xlu0 %105, %v101
  %v107 = vpop.permute.xlu0 %106
  %vm108 = vcmp.eq.s32.totalorder %v104, 1
  %vm109 = vcmp.eq.s32.totalorder %v107, 1
  %v110 = vlaneseq
  %v111 = vshrl.u32 %v110, 7
  %v112 = vsub.s32 0, %v111
  %v113 = vrot.slane %v95, %v112
  %v114 = vlaneseq
  %v115 = vshrl.u32 %v114, 7
  %v116 = vsub.s32 1, %v115
  %v117 = vrot.slane %v95, %v116
  %v118 = vsel %vm108, %v113, %v117
  %v119 = vsel %vm109, %v113, %v117
  %vm120 = vcmask 523264
  %v122 = vsel %vm120, %v85, 0
  %v125 = vsel %vm120, %v86, 0
  %127 = vmatprep.subr.mxu0 0.0
  %128 = vmatpush1.msra.mxu0 %v87
  %129 = vmatprep.subr.mxu0 0.0
  %130 = vmatpush1.msra.mxu0 %v88
  %131 = vmatprep.subr.mxu0 0.0
  %132 = vmatpush1.msra.mxu0 %v89
  %133 = vmatprep.subr.mxu0 0.0
  %134 = vmatpush1.msra.mxu0 %v90
  %135 = vmatprep.subr.mxu0 0.0
  %136 = vmatpush1.msra.mxu0 %v91
  %137 = vmatprep.subr.mxu0 0.0
  %138 = vmatpush1.msra.mxu0 %v92
  %139 = vmatprep.subr.mxu0 0.0
  %140 = vmatpush1.msra.mxu0 %v93
  %141 = vmatprep.subr.mxu0 0.0
  %142 = vmatpush1.msra.mxu0 %v94
  %143 = vmatprep.subr.mxu0 0.0
  %144 = vmatpush1.msra.mxu0 0.0
  %145 = vmatprep.subr.mxu0 0.0
  %146 = vmatpush1.msra.mxu0 0.0
  %147 = vmatprep.subr.mxu0 0.0
  %148 = vmatpush1.msra.mxu0 0.0
  %149 = vmatprep.subr.mxu0 0.0
  %150 = vmatpush1.msra.mxu0 0.0
  %151 = vmatprep.subr.mxu0 0.0
  %152 = vmatpush1.msra.mxu0 0.0
  %153 = vmatprep.subr.mxu0 0.0
  %154 = vmatpush1.msra.mxu0 0.0
  %155 = vmatprep.subr.mxu0 0.0
  %156 = vmatpush1.msra.mxu0 0.0
  %157 = vmatprep.subr.mxu0 0.0
  %158 = vmatpush1.msra.mxu0 0.0
  %159 = vmatprep.subr.mxu0 0.0
  %160 = vmatpush1.msra.mxu0 0.0
  %161 = vmatprep.subr.mxu0 0.0
  %162 = vmatpush1.msra.mxu0 0.0
  %163 = vmatprep.subr.mxu0 0.0
  %164 = vmatpush1.msra.mxu0 0.0
  %165 = vmatprep.subr.mxu0 0.0
  %166 = vmatpush1.msra.mxu0 0.0
  %167 = vmatprep.subr.mxu0 0.0
  %168 = vmatpush1.msra.mxu0 0.0
  %169 = vmatprep.subr.mxu0 0.0
  %170 = vmatpush1.msra.mxu0 0.0
  %171 = vmatprep.subr.mxu0 0.0
  %172 = vmatpush1.msra.mxu0 0.0
  %173 = vmatprep.subr.mxu0 0.0
  %174 = vmatpush1.msra.mxu0 0.0
  %175 = vmatprep.subr.mxu0 0.0
  %176 = vmatpush1.msra.mxu0 0.0
  %177 = vmatprep.subr.mxu0 0.0
  %178 = vmatpush1.msra.mxu0 0.0
  %179 = vmatprep.subr.mxu0 0.0
  %180 = vmatpush1.msra.mxu0 0.0
  %181 = vmatprep.subr.mxu0 0.0
  %182 = vmatpush1.msra.mxu0 0.0
  %183 = vmatprep.subr.mxu0 0.0
  %184 = vmatpush1.msra.mxu0 0.0
  %185 = vmatprep.subr.mxu0 0.0
  %186 = vmatpush1.msra.mxu0 0.0
  %187 = vmatprep.subr.mxu0 0.0
  %188 = vmatpush1.msra.mxu0 0.0
  %189 = vmatprep.subr.mxu0 0.0
  %190 = vmatpush1.msra.mxu0 0.0
  %191 = vmatprep.mubr.f32.mxu0 0.0
  %192 = vmatmul.mubr.f32.gmra.mrb[0].mxu0 %v122
  %v193 = vpop.f32.mrb[0].mxu0
  %v194 = vadd.f32 %v118, %v193
  %v195 = vpop.f32.mrb[0].mxu0
  %196 = vmatprep.mubr.f32.mxu0 0.0
  %197 = vmatmul.mubr.f32.gmra.mrb[0].mxu0 %v125
  %v198 = vpop.f32.mrb[0].mxu0
  %v199 = vadd.f32 %v119, %v198
  %v200 = vpop.f32.mrb[0].mxu0
  %201 = vdwg.mxu0
  %v202 = vld [vmem:[%s5] sm:$0xff]
  %v203 = vld [vmem:[%s5 + $0x8] sm:$0xff]
  %v204 = vadd.f32 %v194, %v202
  %v205 = vadd.f32 %v199, %v203
  %v206 = vld [vmem:[%s6] sm:$0x1]
  %v207 = vld [vmem:[%s7] sm:$0x1]
  %vm208 = vcmask 261120
  %v209 = vsel %vm208, %v204, 0.0
  %210 = vadd.xlane.f32.xlu0 %v209
  %v211 = vpop.xlane.xlu0 %210
  %v212 = vsel %vm208, %v205, 0.0
  %213 = vadd.xlane.f32.xlu0 %v212
  %v214 = vpop.xlane.xlu0 %213
  %v215 = vrcp.pop 32.0
  %v216 = vmul.f32 %v211, %v215
  %v217 = vmul.f32 %v214, %v215
  %v218 = vsub.f32 %v204, %v216
  %v219 = vsub.f32 %v205, %v217
  %v220 = vmul.f32 %v218, %v218
  %v221 = vmul.f32 %v219, %v219
  %v222 = vsel %vm208, %v220, 0.0
  %223 = vadd.xlane.f32.xlu0 %v222
  %v224 = vpop.xlane.xlu0 %223
  %v225 = vsel %vm208, %v221, 0.0
  %226 = vadd.xlane.f32.xlu0 %v225
  %v227 = vpop.xlane.xlu0 %226
  %v228 = vmul.f32 %v224, %v215
  %v229 = vmul.f32 %v227, %v215
  %v230 = vadd.f32 %v228, 1e-05
  %v231 = vadd.f32 %v229, 1e-05
  %v232 = vrsqrt.pop %v230
  %v233 = vrsqrt.pop %v231
  %v234 = vmul.f32 %v218, %v232
  %v235 = vmul.f32 %v219, %v233
  %v237 = vlaneseq
  %v238 = vshrl.u32 %v237, 7
  %v239 = vsub.s32 0, %v238
  %v240 = vrot.slane %v206, %v239
  %v242 = vmul.f32 %v234, %v240
  %v243 = vmul.f32 %v235, %v240
  %v245 = vlaneseq
  %v246 = vshrl.u32 %v245, 7
  %v247 = vsub.s32 0, %v246
  %v248 = vrot.slane %v207, %v247
  %v250 = vadd.f32 %v242, %v248
  %v251 = vadd.f32 %v243, %v248
  %v252 = vld [vmem:[%s2] sm:$0x3]
  %v253 = vsub.f32 1.0, %v252
  %v254 = vmul.f32 %v253, -1e+09
  %v255 = vld [vmem:[%s8] sm:$0xff]
  %v256 = vld [vmem:[%s8 + $0x8] sm:$0xff]
  %v257 = vld [vmem:[%s8 + $0x10] sm:$0xff]
  %v258 = vld [vmem:[%s8 + $0x18] sm:$0xff]
  %v259 = vld [vmem:[%s9] sm:$0x1]
  %v260 = vld [vmem:[%s10] sm:$0xff]
  %v261 = vld [vmem:[%s10 + $0x8] sm:$0xff]
  %v262 = vld [vmem:[%s10 + $0x10] sm:$0xff]
  %v263 = vld [vmem:[%s10 + $0x18] sm:$0xff]
  %v264 = vld [vmem:[%s11] sm:$0x1]
  %v265 = vld [vmem:[%s12] sm:$0x1]
  %v266 = vld [vmem:[%s13] sm:$0x1]
  %v267 = vld [vmem:[%s14] sm:$0xff]
  %v268 = vld [vmem:[%s14 + $0x8] sm:$0xff]
  %v269 = vld [vmem:[%s14 + $0x10] sm:$0xff]
  %v270 = vld [vmem:[%s14 + $0x18] sm:$0xff]
  %v271 = vld [vmem:[%s15] sm:$0x1]
  %v272 = vld [vmem:[%s16] sm:$0xff]
  %v273 = vld [vmem:[%s16 + $0x8] sm:$0xff]
  %v274 = vld [vmem:[%s16 + $0x10] sm:$0xff]
  %v275 = vld [vmem:[%s16 + $0x18] sm:$0xff]
  %v276 = vld [vmem:[%s16 + $0x20] sm:$0xff]
  %v277 = vld [vmem:[%s16 + $0x28] sm:$0xff]
  %v278 = vld [vmem:[%s16 + $0x30] sm:$0xff]
  %v279 = vld [vmem:[%s16 + $0x38] sm:$0xff]
  %v280 = vld [vmem:[%s17] sm:$0x1]
  %v281 = vld [vmem:[%s18] sm:$0x1]
  %v282 = vld [vmem:[%s19] sm:$0x1]
  %v284 = vlaneseq
  %v285 = vshrl.u32 %v284, 7
  %v286 = vsub.s32 0, %v285
  %v287 = vrot.slane %v259, %v286
  %v290 = vsel %vm208, %v250, 0
  %v293 = vsel %vm208, %v251, 0
  %295 = vmatprep.subr.mxu0 0.0
  %296 = vmatpush1.msra.mxu0 %v255
  %297 = vmatprep.subr.mxu0 0.0
  %298 = vmatpush1.msra.mxu0 %v256
  %299 = vmatprep.subr.mxu0 0.0
  %300 = vmatpush1.msra.mxu0 %v257
  %301 = vmatprep.subr.mxu0 0.0
  %302 = vmatpush1.msra.mxu0 %v258
  %303 = vmatprep.subr.mxu0 0.0
  %304 = vmatpush1.msra.mxu0 0.0
  %305 = vmatprep.subr.mxu0 0.0
  %306 = vmatpush1.msra.mxu0 0.0
  %307 = vmatprep.subr.mxu0 0.0
  %308 = vmatpush1.msra.mxu0 0.0
  %309 = vmatprep.subr.mxu0 0.0
  %310 = vmatpush1.msra.mxu0 0.0
  %311 = vmatprep.subr.mxu0 0.0
  %312 = vmatpush1.msra.mxu0 0.0
  %313 = vmatprep.subr.mxu0 0.0
  %314 = vmatpush1.msra.mxu0 0.0
  %315 = vmatprep.subr.mxu0 0.0
  %316 = vmatpush1.msra.mxu0 0.0
  %317 = vmatprep.subr.mxu0 0.0
  %318 = vmatpush1.msra.mxu0 0.0
  %319 = vmatprep.subr.mxu0 0.0
  %320 = vmatpush1.msra.mxu0 0.0
  %321 = vmatprep.subr.mxu0 0.0
  %322 = vmatpush1.msra.mxu0 0.0
  %323 = vmatprep.subr.mxu0 0.0
  %324 = vmatpush1.msra.mxu0 0.0
  %325 = vmatprep.subr.mxu0 0.0
  %326 = vmatpush1.msra.mxu0 0.0
  %327 = vmatprep.subr.mxu0 0.0
  %328 = vmatpush1.msra.mxu0 0.0
  %329 = vmatprep.subr.mxu0 0.0
  %330 = vmatpush1.msra.mxu0 0.0
  %331 = vmatprep.subr.mxu0 0.0
  %332 = vmatpush1.msra.mxu0 0.0
  %333 = vmatprep.subr.mxu0 0.0
  %334 = vmatpush1.msra.mxu0 0.0
  %335 = vmatprep.subr.mxu0 0.0
  %336 = vmatpush1.msra.mxu0 0.0
  %337 = vmatprep.subr.mxu0 0.0
  %338 = vmatpush1.msra.mxu0 0.0
  %339 = vmatprep.subr.mxu0 0.0
  %340 = vmatpush1.msra.mxu0 0.0
  %341 = vmatprep.subr.mxu0 0.0
  %342 = vmatpush1.msra.mxu0 0.0
  %343 = vmatprep.subr.mxu0 0.0
  %344 = vmatpush1.msra.mxu0 0.0
  %345 = vmatprep.subr.mxu0 0.0
  %346 = vmatpush1.msra.mxu0 0.0
  %347 = vmatprep.subr.mxu0 0.0
  %348 = vmatpush1.msra.mxu0 0.0
  %349 = vmatprep.subr.mxu0 0.0
  %350 = vmatpush1.msra.mxu0 0.0
  %351 = vmatprep.subr.mxu0 0.0
  %352 = vmatpush1.msra.mxu0 0.0
  %353 = vmatprep.subr.mxu0 0.0
  %354 = vmatpush1.msra.mxu0 0.0
  %355 = vmatprep.subr.mxu0 0.0
  %356 = vmatpush1.msra.mxu0 0.0
  %357 = vmatprep.subr.mxu0 0.0
  %358 = vmatpush1.msra.mxu0 0.0
  %359 = vmatprep.mubr.f32.mxu0 0.0
  %360 = vmatmul.mubr.f32.gmra.mrb[0].mxu0 %v290
  %v361 = vpop.f32.mrb[0].mxu0
  %v362 = vadd.f32 %v287, %v361
  %v363 = vpop.f32.mrb[0].mxu0
  %364 = vmatprep.mubr.f32.mxu0 0.0
  %365 = vmatmul.mubr.f32.gmra.mrb[0].mxu0 %v293
  %v366 = vpop.f32.mrb[0].mxu0
  %v367 = vadd.f32 %v287, %v366
  %v368 = vpop.f32.mrb[0].mxu0
  %369 = vdwg.mxu0
  %371 = vrot.lane.b32.xlu0 %v362, 96
  %v372 = vpop.permute.xlu0 %371
  %vm373 = vcmask 130048
  %v374 = vsel %vm373, %v362, 0
  %v376 = vsel %vm373, %v372, 0
  %378 = vmatprep.subr.mxu0 0.0
  %379 = vmatpush1.xpose.msra.mxu0 %v376
  %380 = vmatprep.subr.mxu0 0.0
  %381 = vmatpush1.xpose.msra.mxu0 0.0
  %382 = vmatprep.subr.mxu0 0.0
  %383 = vmatpush1.xpose.msra.mxu0 0.0
  %384 = vmatprep.subr.mxu0 0.0
  %385 = vmatpush1.xpose.msra.mxu0 0.0
  %386 = vmatprep.subr.mxu0 0.0
  %387 = vmatpush1.xpose.msra.mxu0 0.0
  %388 = vmatprep.subr.mxu0 0.0
  %389 = vmatpush1.xpose.msra.mxu0 0.0
  %390 = vmatprep.subr.mxu0 0.0
  %391 = vmatpush1.xpose.msra.mxu0 0.0
  %392 = vmatprep.subr.mxu0 0.0
  %393 = vmatpush1.xpose.msra.mxu0 0.0
  %394 = vmatprep.subr.mxu0 0.0
  %395 = vmatpush1.xpose.msra.mxu0 0.0
  %396 = vmatprep.subr.mxu0 0.0
  %397 = vmatpush1.xpose.msra.mxu0 0.0
  %398 = vmatprep.subr.mxu0 0.0
  %399 = vmatpush1.xpose.msra.mxu0 0.0
  %400 = vmatprep.subr.mxu0 0.0
  %401 = vmatpush1.xpose.msra.mxu0 0.0
  %402 = vmatprep.subr.mxu0 0.0
  %403 = vmatpush1.xpose.msra.mxu0 0.0
  %404 = vmatprep.subr.mxu0 0.0
  %405 = vmatpush1.xpose.msra.mxu0 0.0
  %406 = vmatprep.subr.mxu0 0.0
  %407 = vmatpush1.xpose.msra.mxu0 0.0
  %408 = vmatprep.subr.mxu0 0.0
  %409 = vmatpush1.xpose.msra.mxu0 0.0
  %410 = vmatprep.subr.mxu0 0.0
  %411 = vmatpush1.xpose.msra.mxu0 0.0
  %412 = vmatprep.subr.mxu0 0.0
  %413 = vmatpush1.xpose.msra.mxu0 0.0
  %414 = vmatprep.subr.mxu0 0.0
  %415 = vmatpush1.xpose.msra.mxu0 0.0
  %416 = vmatprep.subr.mxu0 0.0
  %417 = vmatpush1.xpose.msra.mxu0 0.0
  %418 = vmatprep.subr.mxu0 0.0
  %419 = vmatpush1.xpose.msra.mxu0 0.0
  %420 = vmatprep.subr.mxu0 0.0
  %421 = vmatpush1.xpose.msra.mxu0 0.0
  %422 = vmatprep.subr.mxu0 0.0
  %423 = vmatpush1.xpose.msra.mxu0 0.0
  %424 = vmatprep.subr.mxu0 0.0
  %425 = vmatpush1.xpose.msra.mxu0 0.0
  %426 = vmatprep.subr.mxu0 0.0
  %427 = vmatpush1.xpose.msra.mxu0 0.0
  %428 = vmatprep.subr.mxu0 0.0
  %429 = vmatpush1.xpose.msra.mxu0 0.0
  %430 = vmatprep.subr.mxu0 0.0
  %431 = vmatpush1.xpose.msra.mxu0 0.0
  %432 = vmatprep.subr.mxu0 0.0
  %433 = vmatpush1.xpose.msra.mxu0 0.0
  %434 = vmatprep.subr.mxu0 0.0
  %435 = vmatpush1.xpose.msra.mxu0 0.0
  %436 = vmatprep.subr.mxu0 0.0
  %437 = vmatpush1.xpose.msra.mxu0 0.0
  %438 = vmatprep.subr.mxu0 0.0
  %439 = vmatpush1.xpose.msra.mxu0 0.0
  %440 = vmatprep.subr.mxu0 0.0
  %441 = vmatpush1.xpose.msra.mxu0 0.0
  %442 = vmatprep.mubr.f32.mxu0 0.0
  %443 = vmatmul.mubr.f32.gmra.mrb[0].mxu0 %v374
  %v444 = vpop.f32.mrb[0].mxu0
  %v445 = vadd.f32 0.0, %v444
  %v446 = vpop.f32.mrb[0].mxu0
  %447 = vdwg.mxu0
  %v448 = vmul.f32 %v445, 0.25
  %v449 = vlaneseq
  %v450 = vshrl.u32 %v449, 7
  %v451 = vsub.s32 0, %v450
  %v452 = vrot.slane %v254, %v451
  %v453 = vadd.f32 %v448, %v452
  %vm454 = vcmask 64512
  %v455 = vsel %vm454, %v453, -inf
  %456 = vmax.xlane.f32.xlu0 %v455
  %v457 = vpop.xlane.xlu0 %456
  %v458 = vsub.f32 %v453, %v457
  %v459 = vmul.f32 %v458, 1.442695
  %v460 = vpow.pop %v459
  %v461 = vsel %vm454, %v460, 0.0
  %462 = vadd.xlane.f32.xlu0 %v461
  %v463 = vpop.xlane.xlu0 %462
  %v464 = vrcp.pop %v463
  %v465 = vmul.f32 %v460, %v464
  %466 = vrot.lane.b32.xlu0 %v362, 64
  %v467 = vpop.permute.xlu0 %466
  %v470 = vsel %vm454, %v465, 0
  %472 = vmatprep.subr.mxu0 0.0
  %473 = vmatpush1.msra.mxu0 %v467
  %474 = vmatprep.subr.mxu0 0.0
  %475 = vmatpush1.msra.mxu0 0.0
  %476 = vmatprep.subr.mxu0 0.0
  %477 = vmatpush1.msra.mxu0 0.0
  %478 = vmatprep.subr.mxu0 0.0
  %479 = vmatpush1.msra.mxu0 0.0
  %480 = vmatprep.subr.mxu0 0.0
  %481 = vmatpush1.msra.mxu0 0.0
  %482 = vmatprep.subr.mxu0 0.0
  %483 = vmatpush1.msra.mxu0 0.0
  %484 = vmatprep.subr.mxu0 0.0
  %485 = vmatpush1.msra.mxu0 0.0
  %486 = vmatprep.subr.mxu0 0.0
  %487 = vmatpush1.msra.mxu0 0.0
  %488 = vmatprep.subr.mxu0 0.0
  %489 = vmatpush1.msra.mxu0 0.0
  %490 = vmatprep.subr.mxu0 0.0
  %491 = vmatpush1.msra.mxu0 0.0
  %492 = vmatprep.subr.mxu0 0.0
  %493 = vmatpush1.msra.mxu0 0.0
  %494 = vmatprep.subr.mxu0 0.0
  %495 = vmatpush1.msra.mxu0 0.0
  %496 = vmatprep.subr.mxu0 0.0
  %497 = vmatpush1.msra.mxu0 0.0
  %498 = vmatprep.subr.mxu0 0.0
  %499 = vmatpush1.msra.mxu0 0.0
  %500 = vmatprep.subr.mxu0 0.0
  %501 = vmatpush1.msra.mxu0 0.0
  %502 = vmatprep.subr.mxu0 0.0
  %503 = vmatpush1.msra.mxu0 0.0
  %504 = vmatprep.subr.mxu0 0.0
  %505 = vmatpush1.msra.mxu0 0.0
  %506 = vmatprep.subr.mxu0 0.0
  %507 = vmatpush1.msra.mxu0 0.0
  %508 = vmatprep.subr.mxu0 0.0
  %509 = vmatpush1.msra.mxu0 0.0
  %510 = vmatprep.subr.mxu0 0.0
  %511 = vmatpush1.msra.mxu0 0.0
  %512 = vmatprep.subr.mxu0 0.0
  %513 = vmatpush1.msra.mxu0 0.0
  %514 = vmatprep.subr.mxu0 0.0
  %515 = vmatpush1.msra.mxu0 0.0
  %516 = vmatprep.subr.mxu0 0.0
  %517 = vmatpush1.msra.mxu0 0.0
  %518 = vmatprep.subr.mxu0 0.0
  %519 = vmatpush1.msra.mxu0 0.0
  %520 = vmatprep.subr.mxu0 0.0
  %521 = vmatpush1.msra.mxu0 0.0
  %522 = vmatprep.subr.mxu0 0.0
  %523 = vmatpush1.msra.mxu0 0.0
  %524 = vmatprep.subr.mxu0 0.0
  %525 = vmatpush1.msra.mxu0 0.0
  %526 = vmatprep.subr.mxu0 0.0
  %527 = vmatpush1.msra.mxu0 0.0
  %528 = vmatprep.subr.mxu0 0.0
  %529 = vmatpush1.msra.mxu0 0.0
  %530 = vmatprep.subr.mxu0 0.0
  %531 = vmatpush1.msra.mxu0 0.0
  %532 = vmatprep.subr.mxu0 0.0
  %533 = vmatpush1.msra.mxu0 0.0
  %534 = vmatprep.subr.mxu0 0.0
  %535 = vmatpush1.msra.mxu0 0.0
  %536 = vmatprep.mubr.f32.mxu0 0.0
  %537 = vmatmul.mubr.f32.gmra.mrb[0].mxu0 %v470
  %v538 = vpop.f32.mrb[0].mxu0
  %v539 = vadd.f32 0.0, %v538
  %v540 = vpop.f32.mrb[0].mxu0
  %541 = vdwg.mxu0
  %542 = vrot.lane.b32.xlu0 %v362, 112
  %v543 = vpop.permute.xlu0 %542
  %544 = vrot.lane.b32.xlu0 %v362, 80
  %v545 = vpop.permute.xlu0 %544
  %v546 = vsel %vm373, %v543, 0
  %v548 = vsel %vm373, %v545, 0
  %550 = vmatprep.subr.mxu0 0.0
  %551 = vmatpush1.xpose.msra.mxu0 %v548
  %552 = vmatprep.subr.mxu0 0.0
  %553 = vmatpush1.xpose.msra.mxu0 0.0
  %554 = vmatprep.subr.mxu0 0.0
  %555 = vmatpush1.xpose.msra.mxu0 0.0
  %556 = vmatprep.subr.mxu0 0.0
  %557 = vmatpush1.xpose.msra.mxu0 0.0
  %558 = vmatprep.subr.mxu0 0.0
  %559 = vmatpush1.xpose.msra.mxu0 0.0
  %560 = vmatprep.subr.mxu0 0.0
  %561 = vmatpush1.xpose.msra.mxu0 0.0
  %562 = vmatprep.subr.mxu0 0.0
  %563 = vmatpush1.xpose.msra.mxu0 0.0
  %564 = vmatprep.subr.mxu0 0.0
  %565 = vmatpush1.xpose.msra.mxu0 0.0
  %566 = vmatprep.subr.mxu0 0.0
  %567 = vmatpush1.xpose.msra.mxu0 0.0
  %568 = vmatprep.subr.mxu0 0.0
  %569 = vmatpush1.xpose.msra.mxu0 0.0
  %570 = vmatprep.subr.mxu0 0.0
  %571 = vmatpush1.xpose.msra.mxu0 0.0
  %572 = vmatprep.subr.mxu0 0.0
  %573 = vmatpush1.xpose.msra.mxu0 0.0
  %574 = vmatprep.subr.mxu0 0.0
  %575 = vmatpush1.xpose.msra.mxu0 0.0
  %576 = vmatprep.subr.mxu0 0.0
  %577 = vmatpush1.xpose.msra.mxu0 0.0
  %578 = vmatprep.subr.mxu0 0.0
  %579 = vmatpush1.xpose.msra.mxu0 0.0
  %580 = vmatprep.subr.mxu0 0.0
  %581 = vmatpush1.xpose.msra.mxu0 0.0
  %582 = vmatprep.subr.mxu0 0.0
  %583 = vmatpush1.xpose.msra.mxu0 0.0
  %584 = vmatprep.subr.mxu0 0.0
  %585 = vmatpush1.xpose.msra.mxu0 0.0
  %586 = vmatprep.subr.mxu0 0.0
  %587 = vmatpush1.xpose.msra.mxu0 0.0
  %588 = vmatprep.subr.mxu0 0.0
  %589 = vmatpush1.xpose.msra.mxu0 0.0
  %590 = vmatprep.subr.mxu0 0.0
  %591 = vmatpush1.xpose.msra.mxu0 0.0
  %592 = vmatprep.subr.mxu0 0.0
  %593 = vmatpush1.xpose.msra.mxu0 0.0
  %594 = vmatprep.subr.mxu0 0.0
  %595 = vmatpush1.xpose.msra.mxu0 0.0
  %596 = vmatprep.subr.mxu0 0.0
  %597 = vmatpush1.xpose.msra.mxu0 0.0
  %598 = vmatprep.subr.mxu0 0.0
  %599 = vmatpush1.xpose.msra.mxu0 0.0
  %600 = vmatprep.subr.mxu0 0.0
  %601 = vmatpush1.xpose.msra.mxu0 0.0
  %602 = vmatprep.subr.mxu0 0.0
  %603 = vmatpush1.xpose.msra.mxu0 0.0
  %604 = vmatprep.subr.mxu0 0.0
  %605 = vmatpush1.xpose.msra.mxu0 0.0
  %606 = vmatprep.subr.mxu0 0.0
  %607 = vmatpush1.xpose.msra.mxu0 0.0
  %608 = vmatprep.subr.mxu0 0.0
  %609 = vmatpush1.xpose.msra.mxu0 0.0
  %610 = vmatprep.subr.mxu0 0.0
  %611 = vmatpush1.xpose.msra.mxu0 0.0
  %612 = vmatprep.subr.mxu0 0.0
  %613 = vmatpush1.xpose.msra.mxu0 0.0
  %614 = vmatprep.mubr.f32.mxu0 0.0
  %615 = vmatmul.mubr.f32.gmra.mrb[0].mxu0 %v546
  %v616 = vpop.f32.mrb[0].mxu0
  %v617 = vadd.f32 0.0, %v616
  %v618 = vpop.f32.mrb[0].mxu0
  %619 = vdwg.mxu0
  %v620 = vmul.f32 %v617, 0.25
  %v621 = vadd.f32 %v620, %v452
  %v622 = vsel %vm454, %v621, -inf
  %623 = vmax.xlane.f32.xlu0 %v622
  %v624 = vpop.xlane.xlu0 %623
  %v625 = vsub.f32 %v621, %v624
  %v626 = vmul.f32 %v625, 1.442695
  %v627 = vpow.pop %v626
  %v628 = vsel %vm454, %v627, 0.0
  %629 = vadd.xlane.f32.xlu0 %v628
  %v630 = vpop.xlane.xlu0 %629
  %v631 = vrcp.pop %v630
  %v632 = vmul.f32 %v627, %v631
  %633 = vrot.lane.b32.xlu0 %v362, 48
  %v634 = vpop.permute.xlu0 %633
  %v637 = vsel %vm454, %v632, 0
  %639 = vmatprep.subr.mxu0 0.0
  %640 = vmatpush1.msra.mxu0 %v634
  %641 = vmatprep.subr.mxu0 0.0
  %642 = vmatpush1.msra.mxu0 0.0
  %643 = vmatprep.subr.mxu0 0.0
  %644 = vmatpush1.msra.mxu0 0.0
  %645 = vmatprep.subr.mxu0 0.0
  %646 = vmatpush1.msra.mxu0 0.0
  %647 = vmatprep.subr.mxu0 0.0
  %648 = vmatpush1.msra.mxu0 0.0
  %649 = vmatprep.subr.mxu0 0.0
  %650 = vmatpush1.msra.mxu0 0.0
  %651 = vmatprep.subr.mxu0 0.0
  %652 = vmatpush1.msra.mxu0 0.0
  %653 = vmatprep.subr.mxu0 0.0
  %654 = vmatpush1.msra.mxu0 0.0
  %655 = vmatprep.subr.mxu0 0.0
  %656 = vmatpush1.msra.mxu0 0.0
  %657 = vmatprep.subr.mxu0 0.0
  %658 = vmatpush1.msra.mxu0 0.0
  %659 = vmatprep.subr.mxu0 0.0
  %660 = vmatpush1.msra.mxu0 0.0
  %661 = vmatprep.subr.mxu0 0.0
  %662 = vmatpush1.msra.mxu0 0.0
  %663 = vmatprep.subr.mxu0 0.0
  %664 = vmatpush1.msra.mxu0 0.0
  %665 = vmatprep.subr.mxu0 0.0
  %666 = vmatpush1.msra.mxu0 0.0
  %667 = vmatprep.subr.mxu0 0.0
  %668 = vmatpush1.msra.mxu0 0.0
  %669 = vmatprep.subr.mxu0 0.0
  %670 = vmatpush1.msra.mxu0 0.0
  %671 = vmatprep.subr.mxu0 0.0
  %672 = vmatpush1.msra.mxu0 0.0
  %673 = vmatprep.subr.mxu0 0.0
  %674 = vmatpush1.msra.mxu0 0.0
  %675 = vmatprep.subr.mxu0 0.0
  %676 = vmatpush1.msra.mxu0 0.0
  %677 = vmatprep.subr.mxu0 0.0
  %678 = vmatpush1.msra.mxu0 0.0
  %679 = vmatprep.subr.mxu0 0.0
  %680 = vmatpush1.msra.mxu0 0.0
  %681 = vmatprep.subr.mxu0 0.0
  %682 = vmatpush1.msra.mxu0 0.0
  %683 = vmatprep.subr.mxu0 0.0
  %684 = vmatpush1.msra.mxu0 0.0
  %685 = vmatprep.subr.mxu0 0.0
  %686 = vmatpush1.msra.mxu0 0.0
  %687 = vmatprep.subr.mxu0 0.0
  %688 = vmatpush1.msra.mxu0 0.0
  %689 = vmatprep.subr.mxu0 0.0
  %690 = vmatpush1.msra.mxu0 0.0
  %691 = vmatprep.subr.mxu0 0.0
  %692 = vmatpush1.msra.mxu0 0.0
  %693 = vmatprep.subr.mxu0 0.0
  %694 = vmatpush1.msra.mxu0 0.0
  %695 = vmatprep.subr.mxu0 0.0
  %696 = vmatpush1.msra.mxu0 0.0
  %697 = vmatprep.subr.mxu0 0.0
  %698 = vmatpush1.msra.mxu0 0.0
  %699 = vmatprep.subr.mxu0 0.0
  %700 = vmatpush1.msra.mxu0 0.0
  %701 = vmatprep.subr.mxu0 0.0
  %702 = vmatpush1.msra.mxu0 0.0
  %703 = vmatprep.mubr.f32.mxu0 0.0
  %704 = vmatmul.mubr.f32.gmra.mrb[0].mxu0 %v637
  %v705 = vpop.f32.mrb[0].mxu0
  %v706 = vadd.f32 0.0, %v705
  %v707 = vpop.f32.mrb[0].mxu0
  %708 = vdwg.mxu0
  %710 = vrot.lane.b32.xlu0 %v706, 16
  %v711 = vpop.permute.xlu0 %710
  %v713 = vsel %vm373, %v539, %v711
  %715 = vrot.lane.b32.xlu0 %v367, 96
  %v716 = vpop.permute.xlu0 %715
  %v717 = vsel %vm373, %v367, 0
  %v719 = vsel %vm373, %v716, 0
  %721 = vmatprep.subr.mxu0 0.0
  %722 = vmatpush1.xpose.msra.mxu0 %v719
  %723 = vmatprep.subr.mxu0 0.0
  %724 = vmatpush1.xpose.msra.mxu0 0.0
  %725 = vmatprep.subr.mxu0 0.0
  %726 = vmatpush1.xpose.msra.mxu0 0.0
  %727 = vmatprep.subr.mxu0 0.0
  %728 = vmatpush1.xpose.msra.mxu0 0.0
  %729 = vmatprep.subr.mxu0 0.0
  %730 = vmatpush1.xpose.msra.mxu0 0.0
  %731 = vmatprep.subr.mxu0 0.0
  %732 = vmatpush1.xpose.msra.mxu0 0.0
  %733 = vmatprep.subr.mxu0 0.0
  %734 = vmatpush1.xpose.msra.mxu0 0.0
  %735 = vmatprep.subr.mxu0 0.0
  %736 = vmatpush1.xpose.msra.mxu0 0.0
  %737 = vmatprep.subr.mxu0 0.0
  %738 = vmatpush1.xpose.msra.mxu0 0.0
  %739 = vmatprep.subr.mxu0 0.0
  %740 = vmatpush1.xpose.msra.mxu0 0.0
  %741 = vmatprep.subr.mxu0 0.0
  %742 = vmatpush1.xpose.msra.mxu0 0.0
  %743 = vmatprep.subr.mxu0 0.0
  %744 = vmatpush1.xpose.msra.mxu0 0.0
  %745 = vmatprep.subr.mxu0 0.0
  %746 = vmatpush1.xpose.msra.mxu0 0.0
  %747 = vmatprep.subr.mxu0 0.0
  %748 = vmatpush1.xpose.msra.mxu0 0.0
  %749 = vmatprep.subr.mxu0 0.0
  %750 = vmatpush1.xpose.msra.mxu0 0.0
  %751 = vmatprep.subr.mxu0 0.0
  %752 = vmatpush1.xpose.msra.mxu0 0.0
  %753 = vmatprep.subr.mxu0 0.0
  %754 = vmatpush1.xpose.msra.mxu0 0.0
  %755 = vmatprep.subr.mxu0 0.0
  %756 = vmatpush1.xpose.msra.mxu0 0.0
  %757 = vmatprep.subr.mxu0 0.0
  %758 = vmatpush1.xpose.msra.mxu0 0.0
  %759 = vmatprep.subr.mxu0 0.0
  %760 = vmatpush1.xpose.msra.mxu0 0.0
  %761 = vmatprep.subr.mxu0 0.0
  %762 = vmatpush1.xpose.msra.mxu0 0.0
  %763 = vmatprep.subr.mxu0 0.0
  %764 = vmatpush1.xpose.msra.mxu0 0.0
  %765 = vmatprep.subr.mxu0 0.0
  %766 = vmatpush1.xpose.msra.mxu0 0.0
  %767 = vmatprep.subr.mxu0 0.0
  %768 = vmatpush1.xpose.msra.mxu0 0.0
  %769 = vmatprep.subr.mxu0 0.0
  %770 = vmatpush1.xpose.msra.mxu0 0.0
  %771 = vmatprep.subr.mxu0 0.0
  %772 = vmatpush1.xpose.msra.mxu0 0.0
  %773 = vmatprep.subr.mxu0 0.0
  %774 = vmatpush1.xpose.msra.mxu0 0.0
  %775 = vmatprep.subr.mxu0 0.0
  %776 = vmatpush1.xpose.msra.mxu0 0.0
  %777 = vmatprep.subr.mxu0 0.0
  %778 = vmatpush1.xpose.msra.mxu0 0.0
  %779 = vmatprep.subr.mxu0 0.0
  %780 = vmatpush1.xpose.msra.mxu0 0.0
  %781 = vmatprep.subr.mxu0 0.0
  %782 = vmatpush1.xpose.msra.mxu0 0.0
  %783 = vmatprep.subr.mxu0 0.0
  %784 = vmatpush1.xpose.msra.mxu0 0.0
  %785 = vmatprep.mubr.f32.mxu0 0.0
  %786 = vmatmul.mubr.f32.gmra.mrb[0].mxu0 %v717
  %v787 = vpop.f32.mrb[0].mxu0
  %v788 = vadd.f32 0.0, %v787
  %v789 = vpop.f32.mrb[0].mxu0
  %790 = vdwg.mxu0
  %v791 = vmul.f32 %v788, 0.25
  %v792 = vlaneseq
  %v793 = vshrl.u32 %v792, 7
  %v794 = vsub.s32 1, %v793
  %v795 = vrot.slane %v254, %v794
  %v796 = vadd.f32 %v791, %v795
  %v797 = vsel %vm454, %v796, -inf
  %798 = vmax.xlane.f32.xlu0 %v797
  %v799 = vpop.xlane.xlu0 %798
  %v800 = vsub.f32 %v796, %v799
  %v801 = vmul.f32 %v800, 1.442695
  %v802 = vpow.pop %v801
  %v803 = vsel %vm454, %v802, 0.0
  %804 = vadd.xlane.f32.xlu0 %v803
  %v805 = vpop.xlane.xlu0 %804
  %v806 = vrcp.pop %v805
  %v807 = vmul.f32 %v802, %v806
  %808 = vrot.lane.b32.xlu0 %v367, 64
  %v809 = vpop.permute.xlu0 %808
  %v812 = vsel %vm454, %v807, 0
  %814 = vmatprep.subr.mxu0 0.0
  %815 = vmatpush1.msra.mxu0 %v809
  %816 = vmatprep.subr.mxu0 0.0
  %817 = vmatpush1.msra.mxu0 0.0
  %818 = vmatprep.subr.mxu0 0.0
  %819 = vmatpush1.msra.mxu0 0.0
  %820 = vmatprep.subr.mxu0 0.0
  %821 = vmatpush1.msra.mxu0 0.0
  %822 = vmatprep.subr.mxu0 0.0
  %823 = vmatpush1.msra.mxu0 0.0
  %824 = vmatprep.subr.mxu0 0.0
  %825 = vmatpush1.msra.mxu0 0.0
  %826 = vmatprep.subr.mxu0 0.0
  %827 = vmatpush1.msra.mxu0 0.0
  %828 = vmatprep.subr.mxu0 0.0
  %829 = vmatpush1.msra.mxu0 0.0
  %830 = vmatprep.subr.mxu0 0.0
  %831 = vmatpush1.msra.mxu0 0.0
  %832 = vmatprep.subr.mxu0 0.0
  %833 = vmatpush1.msra.mxu0 0.0
  %834 = vmatprep.subr.mxu0 0.0
  %835 = vmatpush1.msra.mxu0 0.0
  %836 = vmatprep.subr.mxu0 0.0
  %837 = vmatpush1.msra.mxu0 0.0
  %838 = vmatprep.subr.mxu0 0.0
  %839 = vmatpush1.msra.mxu0 0.0
  %840 = vmatprep.subr.mxu0 0.0
  %841 = vmatpush1.msra.mxu0 0.0
  %842 = vmatprep.subr.mxu0 0.0
  %843 = vmatpush1.msra.mxu0 0.0
  %844 = vmatprep.subr.mxu0 0.0
  %845 = vmatpush1.msra.mxu0 0.0
  %846 = vmatprep.subr.mxu0 0.0
  %847 = vmatpush1.msra.mxu0 0.0
  %848 = vmatprep.subr.mxu0 0.0
  %849 = vmatpush1.msra.mxu0 0.0
  %850 = vmatprep.subr.mxu0 0.0
  %851 = vmatpush1.msra.mxu0 0.0
  %852 = vmatprep.subr.mxu0 0.0
  %853 = vmatpush1.msra.mxu0 0.0
  %854 = vmatprep.subr.mxu0 0.0
  %855 = vmatpush1.msra.mxu0 0.0
  %856 = vmatprep.subr.mxu0 0.0
  %857 = vmatpush1.msra.mxu0 0.0
  %858 = vmatprep.subr.mxu0 0.0
  %859 = vmatpush1.msra.mxu0 0.0
  %860 = vmatprep.subr.mxu0 0.0
  %861 = vmatpush1.msra.mxu0 0.0
  %862 = vmatprep.subr.mxu0 0.0
  %863 = vmatpush1.msra.mxu0 0.0
  %864 = vmatprep.subr.mxu0 0.0
  %865 = vmatpush1.msra.mxu0 0.0
  %866 = vmatprep.subr.mxu0 0.0
  %867 = vmatpush1.msra.mxu0 0.0
  %868 = vmatprep.subr.mxu0 0.0
  %869 = vmatpush1.msra.mxu0 0.0
  %870 = vmatprep.subr.mxu0 0.0
  %871 = vmatpush1.msra.mxu0 0.0
  %872 = vmatprep.subr.mxu0 0.0
  %873 = vmatpush1.msra.mxu0 0.0
  %874 = vmatprep.subr.mxu0 0.0
  %875 = vmatpush1.msra.mxu0 0.0
  %876 = vmatprep.subr.mxu0 0.0
  %877 = vmatpush1.msra.mxu0 0.0
  %878 = vmatprep.mubr.f32.mxu0 0.0
  %879 = vmatmul.mubr.f32.gmra.mrb[0].mxu0 %v812
  %v880 = vpop.f32.mrb[0].mxu0
  %v881 = vadd.f32 0.0, %v880
  %v882 = vpop.f32.mrb[0].mxu0
  %883 = vdwg.mxu0
  %884 = vrot.lane.b32.xlu0 %v367, 112
  %v885 = vpop.permute.xlu0 %884
  %886 = vrot.lane.b32.xlu0 %v367, 80
  %v887 = vpop.permute.xlu0 %886
  %v888 = vsel %vm373, %v885, 0
  %v890 = vsel %vm373, %v887, 0
  %892 = vmatprep.subr.mxu0 0.0
  %893 = vmatpush1.xpose.msra.mxu0 %v890
  %894 = vmatprep.subr.mxu0 0.0
  %895 = vmatpush1.xpose.msra.mxu0 0.0
  %896 = vmatprep.subr.mxu0 0.0
  %897 = vmatpush1.xpose.msra.mxu0 0.0
  %898 = vmatprep.subr.mxu0 0.0
  %899 = vmatpush1.xpose.msra.mxu0 0.0
  %900 = vmatprep.subr.mxu0 0.0
  %901 = vmatpush1.xpose.msra.mxu0 0.0
  %902 = vmatprep.subr.mxu0 0.0
  %903 = vmatpush1.xpose.msra.mxu0 0.0
  %904 = vmatprep.subr.mxu0 0.0
  %905 = vmatpush1.xpose.msra.mxu0 0.0
  %906 = vmatprep.subr.mxu0 0.0
  %907 = vmatpush1.xpose.msra.mxu0 0.0
  %908 = vmatprep.subr.mxu0 0.0
  %909 = vmatpush1.xpose.msra.mxu0 0.0
  %910 = vmatprep.subr.mxu0 0.0
  %911 = vmatpush1.xpose.msra.mxu0 0.0
  %912 = vmatprep.subr.mxu0 0.0
  %913 = vmatpush1.xpose.msra.mxu0 0.0
  %914 = vmatprep.subr.mxu0 0.0
  %915 = vmatpush1.xpose.msra.mxu0 0.0
  %916 = vmatprep.subr.mxu0 0.0
  %917 = vmatpush1.xpose.msra.mxu0 0.0
  %918 = vmatprep.subr.mxu0 0.0
  %919 = vmatpush1.xpose.msra.mxu0 0.0
  %920 = vmatprep.subr.mxu0 0.0
  %921 = vmatpush1.xpose.msra.mxu0 0.0
  %922 = vmatprep.subr.mxu0 0.0
  %923 = vmatpush1.xpose.msra.mxu0 0.0
  %924 = vmatprep.subr.mxu0 0.0
  %925 = vmatpush1.xpose.msra.mxu0 0.0
  %926 = vmatprep.subr.mxu0 0.0
  %927 = vmatpush1.xpose.msra.mxu0 0.0
  %928 = vmatprep.subr.mxu0 0.0
  %929 = vmatpush1.xpose.msra.mxu0 0.0
  %930 = vmatprep.subr.mxu0 0.0
  %931 = vmatpush1.xpose.msra.mxu0 0.0
  %932 = vmatprep.subr.mxu0 0.0
  %933 = vmatpush1.xpose.msra.mxu0 0.0
  %934 = vmatprep.subr.mxu0 0.0
  %935 = vmatpush1.xpose.msra.mxu0 0.0
  %936 = vmatprep.subr.mxu0 0.0
  %937 = vmatpush1.xpose.msra.mxu0 0.0
  %938 = vmatprep.subr.mxu0 0.0
  %939 = vmatpush1.xpose.msra.mxu0 0.0
  %940 = vmatprep.subr.mxu0 0.0
  %941 = vmatpush1.xpose.msra.mxu0 0.0
  %942 = vmatprep.subr.mxu0 0.0
  %943 = vmatpush1.xpose.msra.mxu0 0.0
  %944 = vmatprep.subr.mxu0 0.0
  %945 = vmatpush1.xpose.msra.mxu0 0.0
  %946 = vmatprep.subr.mxu0 0.0
  %947 = vmatpush1.xpose.msra.mxu0 0.0
  %948 = vmatprep.subr.mxu0 0.0
  %949 = vmatpush1.xpose.msra.mxu0 0.0
  %950 = vmatprep.subr.mxu0 0.0
  %951 = vmatpush1.xpose.msra.mxu0 0.0
  %952 = vmatprep.subr.mxu0 0.0
  %953 = vmatpush1.xpose.msra.mxu0 0.0
  %954 = vmatprep.subr.mxu0 0.0
  %955 = vmatpush1.xpose.msra.mxu0 0.0
  %956 = vmatprep.mubr.f32.mxu0 0.0
  %957 = vmatmul.mubr.f32.gmra.mrb[0].mxu0 %v888
  %v958 = vpop.f32.mrb[0].mxu0
  %v959 = vadd.f32 0.0, %v958
  %v960 = vpop.f32.mrb[0].mxu0
  %961 = vdwg.mxu0
  %v962 = vmul.f32 %v959, 0.25
  %v963 = vadd.f32 %v962, %v795
  %v964 = vsel %vm454, %v963, -inf
  %965 = vmax.xlane.f32.xlu0 %v964
  %v966 = vpop.xlane.xlu0 %965
  %v967 = vsub.f32 %v963, %v966
  %v968 = vmul.f32 %v967, 1.442695
  %v969 = vpow.pop %v968
  %v970 = vsel %vm454, %v969, 0.0
  %971 = vadd.xlane.f32.xlu0 %v970
  %v972 = vpop.xlane.xlu0 %971
  %v973 = vrcp.pop %v972
  %v974 = vmul.f32 %v969, %v973
  %975 = vrot.lane.b32.xlu0 %v367, 48
  %v976 = vpop.permute.xlu0 %975
  %v979 = vsel %vm454, %v974, 0
  %981 = vmatprep.subr.mxu0 0.0
  %982 = vmatpush1.msra.mxu0 %v976
  %983 = vmatprep.subr.mxu0 0.0
  %984 = vmatpush1.msra.mxu0 0.0
  %985 = vmatprep.subr.mxu0 0.0
  %986 = vmatpush1.msra.mxu0 0.0
  %987 = vmatprep.subr.mxu0 0.0
  %988 = vmatpush1.msra.mxu0 0.0
  %989 = vmatprep.subr.mxu0 0.0
  %990 = vmatpush1.msra.mxu0 0.0
  %991 = vmatprep.subr.mxu0 0.0
  %992 = vmatpush1.msra.mxu0 0.0
  %993 = vmatprep.subr.mxu0 0.0
  %994 = vmatpush1.msra.mxu0 0.0
  %995 = vmatprep.subr.mxu0 0.0
  %996 = vmatpush1.msra.mxu0 0.0
  %997 = vmatprep.subr.mxu0 0.0
  %998 = vmatpush1.msra.mxu0 0.0
  %999 = vmatprep.subr.mxu0 0.0
  %1000 = vmatpush1.msra.mxu0 0.0
  %1001 = vmatprep.subr.mxu0 0.0
  %1002 = vmatpush1.msra.mxu0 0.0
  %1003 = vmatprep.subr.mxu0 0.0
  %1004 = vmatpush1.msra.mxu0 0.0
  %1005 = vmatprep.subr.mxu0 0.0
  %1006 = vmatpush1.msra.mxu0 0.0
  %1007 = vmatprep.subr.mxu0 0.0
  %1008 = vmatpush1.msra.mxu0 0.0
  %1009 = vmatprep.subr.mxu0 0.0
  %1010 = vmatpush1.msra.mxu0 0.0
  %1011 = vmatprep.subr.mxu0 0.0
  %1012 = vmatpush1.msra.mxu0 0.0
  %1013 = vmatprep.subr.mxu0 0.0
  %1014 = vmatpush1.msra.mxu0 0.0
  %1015 = vmatprep.subr.mxu0 0.0
  %1016 = vmatpush1.msra.mxu0 0.0
  %1017 = vmatprep.subr.mxu0 0.0
  %1018 = vmatpush1.msra.mxu0 0.0
  %1019 = vmatprep.subr.mxu0 0.0
  %1020 = vmatpush1.msra.mxu0 0.0
  %1021 = vmatprep.subr.mxu0 0.0
  %1022 = vmatpush1.msra.mxu0 0.0
  %1023 = vmatprep.subr.mxu0 0.0
  %1024 = vmatpush1.msra.mxu0 0.0
  %1025 = vmatprep.subr.mxu0 0.0
  %1026 = vmatpush1.msra.mxu0 0.0
  %1027 = vmatprep.subr.mxu0 0.0
  %1028 = vmatpush1.msra.mxu0 0.0
  %1029 = vmatprep.subr.mxu0 0.0
  %1030 = vmatpush1.msra.mxu0 0.0
  %1031 = vmatprep.subr.mxu0 0.0
  %1032 = vmatpush1.msra.mxu0 0.0
  %1033 = vmatprep.subr.mxu0 0.0
  %1034 = vmatpush1.msra.mxu0 0.0
  %1035 = vmatprep.subr.mxu0 0.0
  %1036 = vmatpush1.msra.mxu0 0.0
  %1037 = vmatprep.subr.mxu0 0.0
  %1038 = vmatpush1.msra.mxu0 0.0
  %1039 = vmatprep.subr.mxu0 0.0
  %1040 = vmatpush1.msra.mxu0 0.0
  %1041 = vmatprep.subr.mxu0 0.0
  %1042 = vmatpush1.msra.mxu0 0.0
  %1043 = vmatprep.subr.mxu0 0.0
  %1044 = vmatpush1.msra.mxu0 0.0
  %1045 = vmatprep.mubr.f32.mxu0 0.0
  %1046 = vmatmul.mubr.f32.gmra.mrb[0].mxu0 %v979
  %v1047 = vpop.f32.mrb[0].mxu0
  %v1048 = vadd.f32 0.0, %v1047
  %v1049 = vpop.f32.mrb[0].mxu0
  %1050 = vdwg.mxu0
  %1052 = vrot.lane.b32.xlu0 %v1048, 16
  %v1053 = vpop.permute.xlu0 %1052
  %v1055 = vsel %vm373, %v881, %v1053
  %v1057 = vlaneseq
  %v1058 = vshrl.u32 %v1057, 7
  %v1059 = vsub.s32 0, %v1058
  %v1060 = vrot.slane %v264, %v1059
  %v1063 = vsel %vm208, %v713, 0
  %v1066 = vsel %vm208, %v1055, 0
  %1068 = vmatprep.subr.mxu0 0.0
  %1069 = vmatpush1.msra.mxu0 %v260
  %1070 = vmatprep.subr.mxu0 0.0
  %1071 = vmatpush1.msra.mxu0 %v261
  %1072 = vmatprep.subr.mxu0 0.0
  %1073 = vmatpush1.msra.mxu0 %v262
  %1074 = vmatprep.subr.mxu0 0.0
  %1075 = vmatpush1.msra.mxu0 %v263
  %1076 = vmatprep.subr.mxu0 0.0
  %1077 = vmatpush1.msra.mxu0 0.0
  %1078 = vmatprep.subr.mxu0 0.0
  %1079 = vmatpush1.msra.mxu0 0.0
  %1080 = vmatprep.subr.mxu0 0.0
  %1081 = vmatpush1.msra.mxu0 0.0
  %1082 = vmatprep.subr.mxu0 0.0
  %1083 = vmatpush1.msra.mxu0 0.0
  %1084 = vmatprep.subr.mxu0 0.0
  %1085 = vmatpush1.msra.mxu0 0.0
  %1086 = vmatprep.subr.mxu0 0.0
  %1087 = vmatpush1.msra.mxu0 0.0
  %1088 = vmatprep.subr.mxu0 0.0
  %1089 = vmatpush1.msra.mxu0 0.0
  %1090 = vmatprep.subr.mxu0 0.0
  %1091 = vmatpush1.msra.mxu0 0.0
  %1092 = vmatprep.subr.mxu0 0.0
  %1093 = vmatpush1.msra.mxu0 0.0
  %1094 = vmatprep.subr.mxu0 0.0
  %1095 = vmatpush1.msra.mxu0 0.0
  %1096 = vmatprep.subr.mxu0 0.0
  %1097 = vmatpush1.msra.mxu0 0.0
  %1098 = vmatprep.subr.mxu0 0.0
  %1099 = vmatpush1.msra.mxu0 0.0
  %1100 = vmatprep.subr.mxu0 0.0
  %1101 = vmatpush1.msra.mxu0 0.0
  %1102 = vmatprep.subr.mxu0 0.0
  %1103 = vmatpush1.msra.mxu0 0.0
  %1104 = vmatprep.subr.mxu0 0.0
  %1105 = vmatpush1.msra.mxu0 0.0
  %1106 = vmatprep.subr.mxu0 0.0
  %1107 = vmatpush1.msra.mxu0 0.0
  %1108 = vmatprep.subr.mxu0 0.0
  %1109 = vmatpush1.msra.mxu0 0.0
  %1110 = vmatprep.subr.mxu0 0.0
  %1111 = vmatpush1.msra.mxu0 0.0
  %1112 = vmatprep.subr.mxu0 0.0
  %1113 = vmatpush1.msra.mxu0 0.0
  %1114 = vmatprep.subr.mxu0 0.0
  %1115 = vmatpush1.msra.mxu0 0.0
  %1116 = vmatprep.subr.mxu0 0.0
  %1117 = vmatpush1.msra.mxu0 0.0
  %1118 = vmatprep.subr.mxu0 0.0
  %1119 = vmatpush1.msra.mxu0 0.0
  %1120 = vmatprep.subr.mxu0 0.0
  %1121 = vmatpush1.msra.mxu0 0.0
  %1122 = vmatprep.subr.mxu0 0.0
  %1123 = vmatpush1.msra.mxu0 0.0
  %1124 = vmatprep.subr.mxu0 0.0
  %1125 = vmatpush1.msra.mxu0 0.0
  %1126 = vmatprep.subr.mxu0 0.0
  %1127 = vmatpush1.msra.mxu0 0.0
  %1128 = vmatprep.subr.mxu0 0.0
  %1129 = vmatpush1.msra.mxu0 0.0
  %1130 = vmatprep.subr.mxu0 0.0
  %1131 = vmatpush1.msra.mxu0 0.0
  %1132 = vmatprep.mubr.f32.mxu0 0.0
  %1133 = vmatmul.mubr.f32.gmra.mrb[0].mxu0 %v1063
  %v1134 = vpop.f32.mrb[0].mxu0
  %v1135 = vadd.f32 %v1060, %v1134
  %v1136 = vpop.f32.mrb[0].mxu0
  %1137 = vmatprep.mubr.f32.mxu0 0.0
  %1138 = vmatmul.mubr.f32.gmra.mrb[0].mxu0 %v1066
  %v1139 = vpop.f32.mrb[0].mxu0
  %v1140 = vadd.f32 %v1060, %v1139
  %v1141 = vpop.f32.mrb[0].mxu0
  %1142 = vdwg.mxu0
  %v1143 = vadd.f32 %v250, %v1135
  %v1144 = vadd.f32 %v251, %v1140
  %v1145 = vsel %vm208, %v1143, 0.0
  %1146 = vadd.xlane.f32.xlu0 %v1145
  %v1147 = vpop.xlane.xlu0 %1146
  %v1148 = vsel %vm208, %v1144, 0.0
  %1149 = vadd.xlane.f32.xlu0 %v1148
  %v1150 = vpop.xlane.xlu0 %1149
  %v1151 = vmul.f32 %v1147, %v215
  %v1152 = vmul.f32 %v1150, %v215
  %v1153 = vsub.f32 %v1143, %v1151
  %v1154 = vsub.f32 %v1144, %v1152
  %v1155 = vmul.f32 %v1153, %v1153
  %v1156 = vmul.f32 %v1154, %v1154
  %v1157 = vsel %vm208, %v1155, 0.0
  %1158 = vadd.xlane.f32.xlu0 %v1157
  %v1159 = vpop.xlane.xlu0 %1158
  %v1160 = vsel %vm208, %v1156, 0.0
  %1161 = vadd.xlane.f32.xlu0 %v1160
  %v1162 = vpop.xlane.xlu0 %1161
  %v1163 = vmul.f32 %v1159, %v215
  %v1164 = vmul.f32 %v1162, %v215
  %v1165 = vadd.f32 %v1163, 1e-05
  %v1166 = vadd.f32 %v1164, 1e-05
  %v1167 = vrsqrt.pop %v1165
  %v1168 = vrsqrt.pop %v1166
  %v1169 = vmul.f32 %v1153, %v1167
  %v1170 = vmul.f32 %v1154, %v1168
  %v1172 = vlaneseq
  %v1173 = vshrl.u32 %v1172, 7
  %v1174 = vsub.s32 0, %v1173
  %v1175 = vrot.slane %v265, %v1174
  %v1177 = vmul.f32 %v1169, %v1175
  %v1178 = vmul.f32 %v1170, %v1175
  %v1180 = vlaneseq
  %v1181 = vshrl.u32 %v1180, 7
  %v1182 = vsub.s32 0, %v1181
  %v1183 = vrot.slane %v266, %v1182
  %v1185 = vadd.f32 %v1177, %v1183
  %v1186 = vadd.f32 %v1178, %v1183
  %v1188 = vlaneseq
  %v1189 = vshrl.u32 %v1188, 7
  %v1190 = vsub.s32 0, %v1189
  %v1191 = vrot.slane %v271, %v1190
  %v1194 = vsel %vm208, %v1185, 0
  %v1197 = vsel %vm208, %v1186, 0
  %1199 = vmatprep.subr.mxu0 0.0
  %1200 = vmatpush1.msra.mxu0 %v267
  %1201 = vmatprep.subr.mxu0 0.0
  %1202 = vmatpush1.msra.mxu0 %v268
  %1203 = vmatprep.subr.mxu0 0.0
  %1204 = vmatpush1.msra.mxu0 %v269
  %1205 = vmatprep.subr.mxu0 0.0
  %1206 = vmatpush1.msra.mxu0 %v270
  %1207 = vmatprep.subr.mxu0 0.0
  %1208 = vmatpush1.msra.mxu0 0.0
  %1209 = vmatprep.subr.mxu0 0.0
  %1210 = vmatpush1.msra.mxu0 0.0
  %1211 = vmatprep.subr.mxu0 0.0
  %1212 = vmatpush1.msra.mxu0 0.0
  %1213 = vmatprep.subr.mxu0 0.0
  %1214 = vmatpush1.msra.mxu0 0.0
  %1215 = vmatprep.subr.mxu0 0.0
  %1216 = vmatpush1.msra.mxu0 0.0
  %1217 = vmatprep.subr.mxu0 0.0
  %1218 = vmatpush1.msra.mxu0 0.0
  %1219 = vmatprep.subr.mxu0 0.0
  %1220 = vmatpush1.msra.mxu0 0.0
  %1221 = vmatprep.subr.mxu0 0.0
  %1222 = vmatpush1.msra.mxu0 0.0
  %1223 = vmatprep.subr.mxu0 0.0
  %1224 = vmatpush1.msra.mxu0 0.0
  %1225 = vmatprep.subr.mxu0 0.0
  %1226 = vmatpush1.msra.mxu0 0.0
  %1227 = vmatprep.subr.mxu0 0.0
  %1228 = vmatpush1.msra.mxu0 0.0
  %1229 = vmatprep.subr.mxu0 0.0
  %1230 = vmatpush1.msra.mxu0 0.0
  %1231 = vmatprep.subr.mxu0 0.0
  %1232 = vmatpush1.msra.mxu0 0.0
  %1233 = vmatprep.subr.mxu0 0.0
  %1234 = vmatpush1.msra.mxu0 0.0
  %1235 = vmatprep.subr.mxu0 0.0
  %1236 = vmatpush1.msra.mxu0 0.0
  %1237 = vmatprep.subr.mxu0 0.0
  %1238 = vmatpush1.msra.mxu0 0.0
  %1239 = vmatprep.subr.mxu0 0.0
  %1240 = vmatpush1.msra.mxu0 0.0
  %1241 = vmatprep.subr.mxu0 0.0
  %1242 = vmatpush1.msra.mxu0 0.0
  %1243 = vmatprep.subr.mxu0 0.0
  %1244 = vmatpush1.msra.mxu0 0.0
  %1245 = vmatprep.subr.mxu0 0.0
  %1246 = vmatpush1.msra.mxu0 0.0
  %1247 = vmatprep.subr.mxu0 0.0
  %1248 = vmatpush1.msra.mxu0 0.0
  %1249 = vmatprep.subr.mxu0 0.0
  %1250 = vmatpush1.msra.mxu0 0.0
  %1251 = vmatprep.subr.mxu0 0.0
  %1252 = vmatpush1.msra.mxu0 0.0
  %1253 = vmatprep.subr.mxu0 0.0
  %1254 = vmatpush1.msra.mxu0 0.0
  %1255 = vmatprep.subr.mxu0 0.0
  %1256 = vmatpush1.msra.mxu0 0.0
  %1257 = vmatprep.subr.mxu0 0.0
  %1258 = vmatpush1.msra.mxu0 0.0
  %1259 = vmatprep.subr.mxu0 0.0
  %1260 = vmatpush1.msra.mxu0 0.0
  %1261 = vmatprep.subr.mxu0 0.0
  %1262 = vmatpush1.msra.mxu0 0.0
  %1263 = vmatprep.mubr.f32.mxu0 0.0
  %1264 = vmatmul.mubr.f32.gmra.mrb[0].mxu0 %v1194
  %v1265 = vpop.f32.mrb[0].mxu0
  %v1266 = vadd.f32 %v1191, %v1265
  %v1267 = vpop.f32.mrb[0].mxu0
  %1268 = vmatprep.mubr.f32.mxu0 0.0
  %1269 = vmatmul.mubr.f32.gmra.mrb[0].mxu0 %v1197
  %v1270 = vpop.f32.mrb[0].mxu0
  %v1271 = vadd.f32 %v1191, %v1270
  %v1272 = vpop.f32.mrb[0].mxu0
  %1273 = vdwg.mxu0
  %v1274 = vmul.f32 %v1266, %v1266
  %v1275 = vmul.f32 %v1271, %v1271
  %v1276 = vmul.f32 %v1266, %v1274
  %v1277 = vmul.f32 %v1271, %v1275
  %v1278 = vmul.f32 %v1276, 0.044715
  %v1279 = vmul.f32 %v1277, 0.044715
  %v1280 = vadd.f32 %v1266, %v1278
  %v1281 = vadd.f32 %v1271, %v1279
  %v1282 = vmul.f32 %v1280, 0.7978846
  %v1283 = vmul.f32 %v1281, 0.7978846
  %v1284 = vtanh.pop %v1282
  %v1285 = vtanh.pop %v1283
  %v1286 = vadd.f32 %v1284, 1.0
  %v1287 = vadd.f32 %v1285, 1.0
  %v1288 = vmul.f32 %v1286, 0.5
  %v1289 = vmul.f32 %v1287, 0.5
  %v1290 = vmul.f32 %v1266, %v1288
  %v1291 = vmul.f32 %v1271, %v1289
  %v1293 = vlaneseq
  %v1294 = vshrl.u32 %v1293, 7
  %v1295 = vsub.s32 0, %v1294
  %v1296 = vrot.slane %v280, %v1295
  %v1299 = vsel %vm120, %v1290, 0
  %v1302 = vsel %vm120, %v1291, 0
  %1304 = vmatprep.subr.mxu0 0.0
  %1305 = vmatpush1.msra.mxu0 %v272
  %1306 = vmatprep.subr.mxu0 0.0
  %1307 = vmatpush1.msra.mxu0 %v273
  %1308 = vmatprep.subr.mxu0 0.0
  %1309 = vmatpush1.msra.mxu0 %v274
  %1310 = vmatprep.subr.mxu0 0.0
  %1311 = vmatpush1.msra.mxu0 %v275
  %1312 = vmatprep.subr.mxu0 0.0
  %1313 = vmatpush1.msra.mxu0 %v276
  %1314 = vmatprep.subr.mxu0 0.0
  %1315 = vmatpush1.msra.mxu0 %v277
  %1316 = vmatprep.subr.mxu0 0.0
  %1317 = vmatpush1.msra.mxu0 %v278
  %1318 = vmatprep.subr.mxu0 0.0
  %1319 = vmatpush1.msra.mxu0 %v279
  %1320 = vmatprep.subr.mxu0 0.0
  %1321 = vmatpush1.msra.mxu0 0.0
  %1322 = vmatprep.subr.mxu0 0.0
  %1323 = vmatpush1.msra.mxu0 0.0
  %1324 = vmatprep.subr.mxu0 0.0
  %1325 = vmatpush1.msra.mxu0 0.0
  %1326 = vmatprep.subr.mxu0 0.0
  %1327 = vmatpush1.msra.mxu0 0.0
  %1328 = vmatprep.subr.mxu0 0.0
  %1329 = vmatpush1.msra.mxu0 0.0
  %1330 = vmatprep.subr.mxu0 0.0
  %1331 = vmatpush1.msra.mxu0 0.0
  %1332 = vmatprep.subr.mxu0 0.0
  %1333 = vmatpush1.msra.mxu0 0.0
  %1334 = vmatprep.subr.mxu0 0.0
  %1335 = vmatpush1.msra.mxu0 0.0
  %1336 = vmatprep.subr.mxu0 0.0
  %1337 = vmatpush1.msra.mxu0 0.0
  %1338 = vmatprep.subr.mxu0 0.0
  %1339 = vmatpush1.msra.mxu0 0.0
  %1340 = vmatprep.subr.mxu0 0.0
  %1341 = vmatpush1.msra.mxu0 0.0
  %1342 = vmatprep.subr.mxu0 0.0
  %1343 = vmatpush1.msra.mxu0 0.0
  %1344 = vmatprep.subr.mxu0 0.0
  %1345 = vmatpush1.msra.mxu0 0.0
  %1346 = vmatprep.subr.mxu0 0.0
  %1347 = vmatpush1.msra.mxu0 0.0
  %1348 = vmatprep.subr.mxu0 0.0
  %1349 = vmatpush1.msra.mxu0 0.0
  %1350 = vmatprep.subr.mxu0 0.0
  %1351 = vmatpush1.msra.mxu0 0.0
  %1352 = vmatprep.subr.mxu0 0.0
  %1353 = vmatpush1.msra.mxu0 0.0
  %1354 = vmatprep.subr.mxu0 0.0
  %1355 = vmatpush1.msra.mxu0 0.0
  %1356 = vmatprep.subr.mxu0 0.0
  %1357 = vmatpush1.msra.mxu0 0.0
  %1358 = vmatprep.subr.mxu0 0.0
  %1359 = vmatpush1.msra.mxu0 0.0
  %1360 = vmatprep.subr.mxu0 0.0
  %1361 = vmatpush1.msra.mxu0 0.0
  %1362 = vmatprep.subr.mxu0 0.0
  %1363 = vmatpush1.msra.mxu0 0.0
  %1364 = vmatprep.subr.mxu0 0.0
  %1365 = vmatpush1.msra.mxu0 0.0
  %1366 = vmatprep.subr.mxu0 0.0
  %1367 = vmatpush1.msra.mxu0 0.0
  %1368 = vmatprep.mubr.f32.mxu0 0.0
  %1369 = vmatmul.mubr.f32.gmra.mrb[0].mxu0 %v1299
  %v1370 = vpop.f32.mrb[0].mxu0
  %v1371 = vadd.f32 %v1296, %v1370
  %v1372 = vpop.f32.mrb[0].mxu0
  %1373 = vmatprep.mubr.f32.mxu0 0.0
  %1374 = vmatmul.mubr.f32.gmra.mrb[0].mxu0 %v1302
  %v1375 = vpop.f32.mrb[0].mxu0
  %v1376 = vadd.f32 %v1296, %v1375
  %v1377 = vpop.f32.mrb[0].mxu0
  %1378 = vdwg.mxu0
  %v1379 = vadd.f32 %v1185, %v1371
  %v1380 = vadd.f32 %v1186, %v1376
  %v1381 = vsel %vm208, %v1379, 0.0
  %1382 = vadd.xlane.f32.xlu0 %v1381
  %v1383 = vpop.xlane.xlu0 %1382
  %v1384 = vsel %vm208, %v1380, 0.0
  %1385 = vadd.xlane.f32.xlu0 %v1384
  %v1386 = vpop.xlane.xlu0 %1385
  %v1387 = vmul.f32 %v1383, %v215
  %v1388 = vmul.f32 %v1386, %v215
  %v1389 = vsub.f32 %v1379, %v1387
  %v1390 = vsub.f32 %v1380, %v1388
  %v1391 = vmul.f32 %v1389, %v1389
  %v1392 = vmul.f32 %v1390, %v1390
  %v1393 = vsel %vm208, %v1391, 0.0
  %1394 = vadd.xlane.f32.xlu0 %v1393
  %v1395 = vpop.xlane.xlu0 %1394
  %v1396 = vsel %vm208, %v1392, 0.0
  %1397 = vadd.xlane.f32.xlu0 %v1396
  %v1398 = vpop.xlane.xlu0 %1397
  %v1399 = vmul.f32 %v1395, %v215
  %v1400 = vmul.f32 %v1398, %v215
  %v1401 = vadd.f32 %v1399, 1e-05
  %v1402 = vadd.f32 %v1400, 1e-05
  %v1403 = vrsqrt.pop %v1401
  %v1404 = vrsqrt.pop %v1402
  %v1405 = vmul.f32 %v1389, %v1403
  %v1406 = vmul.f32 %v1390, %v1404
  %v1408 = vlaneseq
  %v1409 = vshrl.u32 %v1408, 7
  %v1410 = vsub.s32 0, %v1409
  %v1411 = vrot.slane %v281, %v1410
  %v1413 = vmul.f32 %v1405, %v1411
  %v1414 = vmul.f32 %v1406, %v1411
  %v1416 = vlaneseq
  %v1417 = vshrl.u32 %v1416, 7
  %v1418 = vsub.s32 0, %v1417
  %v1419 = vrot.slane %v282, %v1418
  %v1421 = vadd.f32 %v1413, %v1419
  %v1422 = vadd.f32 %v1414, %v1419
  %v1423 = vlaneseq
  %v1424 = vshrl.u32 %v1423, 7
  %v1425 = vmul.u32 %v1424, 8
  %vm1426 = vcmp.eq.s32.totalorder %v74, %v1425
  %v1427 = vsel %vm1426, 1, 0
  %v1428 = vcvt.s32.f32 %v1427
  %v1430 = vsel %vm373, %v1428, 0
  %1432 = vmatprep.subr.mxu0 0.0
  %1433 = vmatpush1.msra.mxu0 %v1421
  %1434 = vmatprep.subr.mxu0 0.0
  %1435 = vmatpush1.msra.mxu0 %v1422
  %1436 = vmatprep.subr.mxu0 0.0
  %1437 = vmatpush1.msra.mxu0 0.0
  %1438 = vmatprep.subr.mxu0 0.0
  %1439 = vmatpush1.msra.mxu0 0.0
  %1440 = vmatprep.subr.mxu0 0.0
  %1441 = vmatpush1.msra.mxu0 0.0
  %1442 = vmatprep.subr.mxu0 0.0
  %1443 = vmatpush1.msra.mxu0 0.0
  %1444 = vmatprep.subr.mxu0 0.0
  %1445 = vmatpush1.msra.mxu0 0.0
  %1446 = vmatprep.subr.mxu0 0.0
  %1447 = vmatpush1.msra.mxu0 0.0
  %1448 = vmatprep.subr.mxu0 0.0
  %1449 = vmatpush1.msra.mxu0 0.0
  %1450 = vmatprep.subr.mxu0 0.0
  %1451 = vmatpush1.msra.mxu0 0.0
  %1452 = vmatprep.subr.mxu0 0.0
  %1453 = vmatpush1.msra.mxu0 0.0
  %1454 = vmatprep.subr.mxu0 0.0
  %1455 = vmatpush1.msra.mxu0 0.0
  %1456 = vmatprep.subr.mxu0 0.0
  %1457 = vmatpush1.msra.mxu0 0.0
  %1458 = vmatprep.subr.mxu0 0.0
  %1459 = vmatpush1.msra.mxu0 0.0
  %1460 = vmatprep.subr.mxu0 0.0
  %1461 = vmatpush1.msra.mxu0 0.0
  %1462 = vmatprep.subr.mxu0 0.0
  %1463 = vmatpush1.msra.mxu0 0.0
  %1464 = vmatprep.subr.mxu0 0.0
  %1465 = vmatpush1.msra.mxu0 0.0
  %1466 = vmatprep.subr.mxu0 0.0
  %1467 = vmatpush1.msra.mxu0 0.0
  %1468 = vmatprep.subr.mxu0 0.0
  %1469 = vmatpush1.msra.mxu0 0.0
  %1470 = vmatprep.subr.mxu0 0.0
  %1471 = vmatpush1.msra.mxu0 0.0
  %1472 = vmatprep.subr.mxu0 0.0
  %1473 = vmatpush1.msra.mxu0 0.0
  %1474 = vmatprep.subr.mxu0 0.0
  %1475 = vmatpush1.msra.mxu0 0.0
  %1476 = vmatprep.subr.mxu0 0.0
  %1477 = vmatpush1.msra.mxu0 0.0
  %1478 = vmatprep.subr.mxu0 0.0
  %1479 = vmatpush1.msra.mxu0 0.0
  %1480 = vmatprep.subr.mxu0 0.0
  %1481 = vmatpush1.msra.mxu0 0.0
  %1482 = vmatprep.subr.mxu0 0.0
  %1483 = vmatpush1.msra.mxu0 0.0
  %1484 = vmatprep.subr.mxu0 0.0
  %1485 = vmatpush1.msra.mxu0 0.0
  %1486 = vmatprep.subr.mxu0 0.0
  %1487 = vmatpush1.msra.mxu0 0.0
  %1488 = vmatprep.subr.mxu0 0.0
  %1489 = vmatpush1.msra.mxu0 0.0
  %1490 = vmatprep.subr.mxu0 0.0
  %1491 = vmatpush1.msra.mxu0 0.0
  %1492 = vmatprep.subr.mxu0 0.0
  %1493 = vmatpush1.msra.mxu0 0.0
  %1494 = vmatprep.subr.mxu0 0.0
  %1495 = vmatpush1.msra.mxu0 0.0
  %1496 = vmatprep.mubr.f32.mxu0 0.0
  %1497 = vmatmul.mubr.f32.gmra.mrb[0].mxu0 %v1430
  %v1498 = vpop.f32.mrb[0].mxu0
  %v1499 = vadd.f32 0.0, %v1498
  %v1500 = vpop.f32.mrb[0].mxu0
  %1501 = vdwg.mxu0
  %v1502 = vld [vmem:[%s20] sm:$0xff]
  %v1503 = vld [vmem:[%s20 + $0x8] sm:$0xff]
  %v1504 = vld [vmem:[%s20 + $0x10] sm:$0xff]
  %v1505 = vld [vmem:[%s20 + $0x18] sm:$0xff]
  %v1506 = vld [vmem:[%s21] sm:$0x1]
  %v1508 = vlaneseq
  %v1509 = vshrl.u32 %v1508, 7
  %v1510 = vsub.s32 0, %v1509
  %v1511 = vrot.slane %v1506, %v1510
  %v1514 = vsel %vm208, %v1499, 0
  %1516 = vmatprep.subr.mxu0 0.0
  %1517 = vmatpush1.msra.mxu0 %v1502
  %1518 = vmatprep.subr.mxu0 0.0
  %1519 = vmatpush1.msra.mxu0 %v1503
  %1520 = vmatprep.subr.mxu0 0.0
  %1521 = vmatpush1.msra.mxu0 %v1504
  %1522 = vmatprep.subr.mxu0 0.0
  %1523 = vmatpush1.msra.mxu0 %v1505
  %1524 = vmatprep.subr.mxu0 0.0
  %1525 = vmatpush1.msra.mxu0 0.0
  %1526 = vmatprep.subr.mxu0 0.0
  %1527 = vmatpush1.msra.mxu0 0.0
  %1528 = vmatprep.subr.mxu0 0.0
  %1529 = vmatpush1.msra.mxu0 0.0
  %1530 = vmatprep.subr.mxu0 0.0
  %1531 = vmatpush1.msra.mxu0 0.0
  %1532 = vmatprep.subr.mxu0 0.0
  %1533 = vmatpush1.msra.mxu0 0.0
  %1534 = vmatprep.subr.mxu0 0.0
  %1535 = vmatpush1.msra.mxu0 0.0
  %1536 = vmatprep.subr.mxu0 0.0
  %1537 = vmatpush1.msra.mxu0 0.0
  %1538 = vmatprep.subr.mxu0 0.0
  %1539 = vmatpush1.msra.mxu0 0.0
  %1540 = vmatprep.subr.mxu0 0.0
  %1541 = vmatpush1.msra.mxu0 0.0
  %1542 = vmatprep.subr.mxu0 0.0
  %1543 = vmatpush1.msra.mxu0 0.0
  %1544 = vmatprep.subr.mxu0 0.0
  %1545 = vmatpush1.msra.mxu0 0.0
  %1546 = vmatprep.subr.mxu0 0.0
  %1547 = vmatpush1.msra.mxu0 0.0
  %1548 = vmatprep.subr.mxu0 0.0
  %1549 = vmatpush1.msra.mxu0 0.0
  %1550 = vmatprep.subr.mxu0 0.0
  %1551 = vmatpush1.msra.mxu0 0.0
  %1552 = vmatprep.subr.mxu0 0.0
  %1553 = vmatpush1.msra.mxu0 0.0
  %1554 = vmatprep.subr.mxu0 0.0
  %1555 = vmatpush1.msra.mxu0 0.0
  %1556 = vmatprep.subr.mxu0 0.0
  %1557 = vmatpush1.msra.mxu0 0.0
  %1558 = vmatprep.subr.mxu0 0.0
  %1559 = vmatpush1.msra.mxu0 0.0
  %1560 = vmatprep.subr.mxu0 0.0
  %1561 = vmatpush1.msra.mxu0 0.0
  %1562 = vmatprep.subr.mxu0 0.0
  %1563 = vmatpush1.msra.mxu0 0.0
  %1564 = vmatprep.subr.mxu0 0.0
  %1565 = vmatpush1.msra.mxu0 0.0
  %1566 = vmatprep.subr.mxu0 0.0
  %1567 = vmatpush1.msra.mxu0 0.0
  %1568 = vmatprep.subr.mxu0 0.0
  %1569 = vmatpush1.msra.mxu0 0.0
  %1570 = vmatprep.subr.mxu0 0.0
  %1571 = vmatpush1.msra.mxu0 0.0
  %1572 = vmatprep.subr.mxu0 0.0
  %1573 = vmatpush1.msra.mxu0 0.0
  %1574 = vmatprep.subr.mxu0 0.0
  %1575 = vmatpush1.msra.mxu0 0.0
  %1576 = vmatprep.subr.mxu0 0.0
  %1577 = vmatpush1.msra.mxu0 0.0
  %1578 = vmatprep.subr.mxu0 0.0
  %1579 = vmatpush1.msra.mxu0 0.0
  %1580 = vmatprep.mubr.f32.mxu0 0.0
  %1581 = vmatmul.mubr.f32.gmra.mrb[0].mxu0 %v1514
  %v1582 = vpop.f32.mrb[0].mxu0
  %v1583 = vadd.f32 %v1511, %v1582
  %v1584 = vpop.f32.mrb[0].mxu0
  %1585 = vdwg.mxu0
  %vm1586 = vcmask 254976
  %1587 = vst.msk [vmem:[%s22] sm:$0x3] %vm1586, %v1583
  // Predicated region
  $region90: #{retina_clip_forward.4} parent=0 // pred_check
    _
  $region91: #{retina_clip_forward.4} parent=0 // pred_check_branch
    %1589 = sbr.rel (0) target = $region93
  $region92: #{retina_clip_forward.4} parent=0 // pred_region
    _
  $region93: #{retina_clip_forward.4} parent=0 // pred_fallthru
    _
  // Predicated region
  $region94: #{retina_clip_forward.4} parent=0 // pred_check
    _
  $region95: #{retina_clip_forward.4} parent=0 // pred_check_branch
    %1591 = sbr.rel (0) target = $region97
  $region96: #{retina_clip_forward.4} parent=0 // pred_region
    _
  $region97: #{retina_clip_forward.4} parent=0 // pred_fallthru
    _

</llo_original>
